<compile_context>
chip_gen: v7x
topology: tpu7x:2x2x1
jax: 0.10.0
libtpu: 0.0.40
codegen_flags: <defaults>
</compile_context>

<pallas_src>
import jax
import jax.numpy as jnp
from jax.experimental import pallas as pl
from jax.experimental.pallas import tpu as pltpu

EPS = 1e-5      # BatchNorm eps (PyTorch default)
SLOPE = 0.2     # LeakyReLU negative slope
K = 4           # conv kernel size

_COMPILER_PARAMS = pltpu.CompilerParams(vmem_limit_bytes=32 * 1024 * 1024)


def _vmem_spec():
    return pl.BlockSpec(memory_space=pltpu.MemorySpace.VMEM)


# ------------------------------ kernel bodies -------------------------------

def _bn_lrelu(acc, gamma, beta):
    """Train-mode BatchNorm (single-pass sum / sum-of-squares) + LeakyReLU."""
    m = acc.shape[0]
    inv_m = 1.0 / m
    mean = jnp.sum(acc, axis=0, keepdims=True) * inv_m
    var = jnp.maximum(
        jnp.sum(acc * acc, axis=0, keepdims=True) * inv_m - mean * mean, 0.0)
    y = (acc - mean) * jax.lax.rsqrt(var + EPS) * gamma + beta
    return jnp.where(y >= 0, y, SLOPE * y)


def _conv_folded(slab0_ref, slab1_ref, w_ref, m):
    """k4/s2/p1 conv as 4 MXU dots with K = 4*Cin (kw folded into channels).

    slab{p}_ref: [(OH+1)*X*Y, 4*Cin] bf16, rows ordered (hh, X, Y); slab row hh
                 holds padded input row 2*hh + p with the 4 kw taps folded into
                 the channel axis (order kw=0..3).
    w_ref:       [4, 4*Cin, Cout] bf16; index p*2 + a holds taps for kh = 2a+p.
    """
    shift = slab0_ref.shape[0] - m          # row offset for the a = 1 (kh//2) taps
    cout = w_ref.shape[-1]
    acc = jnp.zeros((m, cout), jnp.float32)
    for p, s_ref in enumerate((slab0_ref, slab1_ref)):
        for a in range(2):
            acc = acc + jnp.dot(s_ref[pl.ds(a * shift, m), :],
                                w_ref[p * 2 + a],
                                preferred_element_type=jnp.float32)
    return acc


def _layer0_kernel(x_ref, w_ref, g_ref, b_ref, o_ref):
    # x_ref: full 16-tap im2col [M0, 16*Cin]; ONE dot with K = 16*Cin (= 48).
    acc = jnp.dot(x_ref[...], w_ref[...], preferred_element_type=jnp.float32)
    o_ref[...] = _bn_lrelu(acc, g_ref[...], b_ref[...]).astype(o_ref.dtype)


def _hidden_kernel(s0_ref, s1_ref, w_ref, g_ref, b_ref, o_ref):
    acc = _conv_folded(s0_ref, s1_ref, w_ref, o_ref.shape[0])
    o_ref[...] = _bn_lrelu(acc, g_ref[...], b_ref[...]).astype(o_ref.dtype)


def _final_kernel(s0_ref, s1_ref, w_ref, g_ref, b_ref, w3_ref, o_ref):
    n = o_ref.shape[0]
    r_spatial = w3_ref.shape[0]                 # 16 = 4x4 final-conv taps
    m = r_spatial * n
    acc = _conv_folded(s0_ref, s1_ref, w_ref, m)
    y = _bn_lrelu(acc, g_ref[...], b_ref[...])  # [m, C2] f32, rows (oh2, ow2, n)
    # Fused final Conv(4H -> 1, k4, s1, valid): rows of spatial tap r are the
    # contiguous block [r*n, (r+1)*n); weighted accumulate + one lane reduce.
    # No selection matmul, no batch-expanded weight.
    w3 = w3_ref[...]                            # [16, C2] f32
    per_img = jnp.zeros((n, w3.shape[1]), jnp.float32)
    for r in range(r_spatial):
        per_img = per_img + y[r * n:(r + 1) * n, :] * w3[r:r + 1, :]
    o_ref[...] = jnp.sum(per_img, axis=1, keepdims=True)


# ----------------------------- pallas_call wrappers --------------------------

def _layer0(x2col, w, g, b):
    m, cout = x2col.shape[0], w.shape[1]
    return pl.pallas_call(
        _layer0_kernel,
        out_shape=jax.ShapeDtypeStruct((m, cout), jnp.bfloat16),
        in_specs=[_vmem_spec()] * 4,
        out_specs=_vmem_spec(),
        compiler_params=_COMPILER_PARAMS,
    )(x2col, w, g, b)


def _hidden(slabs, w, g, b, m):
    cout = w.shape[-1]
    return pl.pallas_call(
        _hidden_kernel,
        out_shape=jax.ShapeDtypeStruct((m, cout), jnp.bfloat16),
        in_specs=[_vmem_spec()] * 5,
        out_specs=_vmem_spec(),
        compiler_params=_COMPILER_PARAMS,
    )(*slabs, w, g, b)


def _final(slabs, w, g, b, w3, n):
    return pl.pallas_call(
        _final_kernel,
        out_shape=jax.ShapeDtypeStruct((n, 1), jnp.float32),
        in_specs=[_vmem_spec()] * 6,
        out_specs=_vmem_spec(),
        compiler_params=_COMPILER_PARAMS,
    )(*slabs, w, g, b, w3)


# ------------------------------ JAX-side glue --------------------------------

def _pad_hw(x):
    # x: (H, N, W, C) -> zero-pad H and W by 1 on each side.
    return jnp.pad(x, ((1, 1), (0, 0), (1, 1), (0, 0)))


def _im2col_l0(x):
    """x: (H, N, W, C) bf16 -> [OH*N*OW, 16*C], channel order (kh, kw, c)."""
    h, n, w, c = x.shape
    oh, ow = h // 2, w // 2
    xp = _pad_hw(x)
    parts = []
    for kh in range(K):
        for kw in range(K):
            parts.append(xp[kh:kh + 2 * oh:2, :, kw:kw + 2 * ow:2, :])
    return jnp.concatenate(parts, axis=-1).reshape(oh * n * ow, K * K * c)


def _kw_folded_slabs(x, *, n_minor=False):
    """x: (H, N, W, C) bf16. Returns 2 row-parity slabs [(OH+1)*N*OW, 4*C].

    Column pairs of the padded input are folded into channels (free reshape),
    so slab p at row hh holds padded row 2*hh + p with the 4 kw taps at output
    column ow living in the contiguous channel blocks [0:2C] and [2C:4C] of
    w2-slots ow and ow+1 (channel order kw=0..3, each C wide).  Rows are
    ordered (hh, n, ow), or (hh, ow, n) when n_minor=True (used by the last
    layer so the fused final conv reduces over contiguous per-image blocks).
    """
    h, n, w, c = x.shape
    oh, ow = h // 2, w // 2
    xp = _pad_hw(x)                                   # (h+2, n, w+2, c)
    xr = xp.reshape(h + 2, n, (w + 2) // 2, 2 * c)    # fold column pairs into C
    slabs = []
    for p in range(2):
        xpp = xr[p::2]                                # (oh+1, n, ow+1, 2c)
        s = jnp.concatenate([xpp[:, :, :ow, :], xpp[:, :, 1:, :]], axis=-1)
        if n_minor:
            s = jnp.transpose(s, (0, 2, 1, 3))        # (oh+1, ow, n, 4c)
        slabs.append(s.reshape((oh + 1) * n * ow, 4 * c))
    return slabs


def prepare_params(raw):
    """Pre-flatten conv weights once (bf16), BN affine in f32."""
    prep = {}
    # Layer 0: full-im2col weight [16*Cin, Cout], channel order (kh, kw, cin).
    w0 = raw["w0"]                                         # [C0, Cin, 4, 4] OIHW
    cin0, c0 = w0.shape[1], w0.shape[0]
    prep["w0"] = (jnp.transpose(w0, (2, 3, 1, 0))
                  .reshape(K * K * cin0, c0).astype(jnp.bfloat16))
    # Layers 1, 2: kw-folded weights [4, 4*Cin, Cout]; index p*2+a <-> kh = 2a+p.
    for i in (1, 2):
        w = raw[f"w{i}"]                                   # [Cout, Cin, 4, 4]
        cout, cin = w.shape[0], w.shape[1]
        wt = jnp.transpose(w, (2, 3, 1, 0)).reshape(K, K * cin, cout)  # (kh,(kw,cin),cout)
        w_pa = jnp.stack([wt[2 * a + p] for p in range(2) for a in range(2)])
        prep[f"w{i}"] = w_pa.astype(jnp.bfloat16)          # [4, 4*cin, cout]
    for i in range(3):
        prep[f"g{i}"] = raw[f"g{i}"].reshape(1, -1).astype(jnp.float32)
        prep[f"b{i}"] = raw[f"b{i}"].reshape(1, -1).astype(jnp.float32)
    # Final conv weight kept raw: [16, C2] f32, rows ordered (kh, kw).
    w3 = raw["w3"][0]                                      # [C2, 4, 4]
    prep["w3"] = jnp.transpose(w3, (1, 2, 0)).reshape(K * K, w3.shape[0]).astype(jnp.float32)
    return prep


def discriminator_forward(x_nchw, prep):
    """x_nchw: [N, Cin, H, W] f32. Returns [N, 1, 1, 1] f32 (PyTorch-equivalent)."""
    n, _, h_dim, w_dim = x_nchw.shape
    assert h_dim // 8 == K and w_dim // 8 == K, "final 4x4 valid conv expects 32x32 input"
    # Single boundary transpose NCHW -> (H, N, W, C); channels-last inside.
    h = jnp.transpose(x_nchw, (2, 0, 3, 1)).astype(jnp.bfloat16)

    # Layer 0: one im2col matmul (K = 16*Cin), fused BN + LeakyReLU.
    oh, ow = h_dim // 2, w_dim // 2
    c0 = prep["w0"].shape[1]
    y = _layer0(_im2col_l0(h), prep["w0"], prep["g0"], prep["b0"])
    h = y.reshape(oh, n, ow, c0)

    # Layer 1: kw-folded parity slabs, 4 dots with K = 4*C0, fused BN + LReLU.
    oh, ow = oh // 2, ow // 2
    c1 = prep["w1"].shape[-1]
    slabs = _kw_folded_slabs(h, n_minor=False)
    y = _hidden(slabs, prep["w1"], prep["g1"], prep["b1"], oh * n * ow)
    h = y.reshape(oh, n, ow, c1)

    # Layer 2 + final Conv(4H->1) fused: slabs ordered (hh, ow, n) so the
    # per-image reduction of the final conv is over contiguous row blocks.
    slabs = _kw_folded_slabs(h, n_minor=True)
    out = _final(slabs, prep["w2"], prep["g2"], prep["b2"], prep["w3"], n)
    return out.reshape(n, 1, 1, 1)


# --------------------------- reference (matched) -----------------------------

def discriminator_ref(x, raw):
    """lax.conv reference with the same bf16 quantization points as the kernel
    (bf16 MXU inputs, f32 accumulation/BN, bf16 stored hidden activations)."""
    def conv(h, w, stride, pad, cast):
        if cast:
            h, w = h.astype(jnp.bfloat16), w.astype(jnp.bfloat16)
        return jax.lax.conv_general_dilated(
            h, w, (stride, stride), [(pad, pad), (pad, pad)],
            dimension_numbers=("NCHW", "OIHW", "NCHW"),
            preferred_element_type=jnp.float32)

    h = x
    for i in range(3):
        h = conv(h, raw[f"w{i}"], 2, 1, cast=True)
        mean = jnp.mean(h, axis=(0, 2, 3), keepdims=True)
        var = jnp.mean((h - mean) ** 2, axis=(0, 2, 3), keepdims=True)
        h = (h - mean) * jax.lax.rsqrt(var + EPS)
        h = h * raw[f"g{i}"].reshape(1, -1, 1, 1) + raw[f"b{i}"].reshape(1, -1, 1, 1)
        h = jnp.where(h >= 0, h, SLOPE * h)
        if i < 2:
            h = h.astype(jnp.bfloat16).astype(jnp.float32)   # kernel stores bf16 activations
    return conv(h, raw["w3"], 1, 0, cast=False)              # last conv stays f32


# --------------------------------- main --------------------------------------

if __name__ == "__main__":
    key = jax.random.PRNGKey(0)
    n, im_channels, hidden_dim, s = 2, 3, 16, 32   # small hidden_dim; 32x32 like CIFAR-10

    k0, k1, k2, k3, kg, kb, kx = jax.random.split(key, 7)
    raw = {
        "w0": 0.02 * jax.random.normal(k0, (hidden_dim, im_channels, 4, 4), jnp.float32),
        "w1": 0.02 * jax.random.normal(k1, (hidden_dim * 2, hidden_dim, 4, 4), jnp.float32),
        "w2": 0.02 * jax.random.normal(k2, (hidden_dim * 4, hidden_dim * 2, 4, 4), jnp.float32),
        "w3": 0.02 * jax.random.normal(k3, (1, hidden_dim * 4, 4, 4), jnp.float32),
    }
    gks = jax.random.split(kg, 3)
    bks = jax.random.split(kb, 3)
    for i, c in enumerate([hidden_dim, hidden_dim * 2, hidden_dim * 4]):
        raw[f"g{i}"] = 1.0 + 0.1 * jax.random.normal(gks[i], (c,), jnp.float32)
        raw[f"b{i}"] = 0.1 * jax.random.normal(bks[i], (c,), jnp.float32)
    x = jax.random.normal(kx, (n, im_channels, s, s), jnp.float32)

    prep = prepare_params(raw)
    fwd = jax.jit(discriminator_forward)
    out = jax.block_until_ready(fwd(x, prep))
    ref = jax.block_until_ready(discriminator_ref(x, raw))

    assert out.shape == (n, 1, 1, 1), out.shape
    assert jnp.allclose(out, ref, atol=2e-2, rtol=2e-2), (out, ref)
    print("KERNEL_OK")
</pallas_src>

<mosaic_0001>
module attributes {stable_mosaic.version = 11 : i64} {
  func.func @_layer0_kernel(%arg0: memref<512x48xbf16, #tpu.memory_space<vmem>>, %arg1: memref<48x16xbf16, #tpu.memory_space<vmem>>, %arg2: memref<1x16xf32, #tpu.memory_space<vmem>>, %arg3: memref<1x16xf32, #tpu.memory_space<vmem>>, %arg4: memref<512x16xbf16, #tpu.memory_space<vmem>>) attributes {dimension_semantics = [], scalar_prefetch = 0 : i64, scratch_operands = 0 : i64, tpu.core_type = #tpu.core_type<tc>} {
    %c0 = arith.constant 0 : index
    %c0_0 = arith.constant 0 : index
    %0 = vector.load %arg0[%c0, %c0_0] : memref<512x48xbf16, #tpu.memory_space<vmem>>, vector<512x48xbf16>
    %c0_1 = arith.constant 0 : index
    %c0_2 = arith.constant 0 : index
    %1 = vector.load %arg1[%c0_1, %c0_2] : memref<48x16xbf16, #tpu.memory_space<vmem>>, vector<48x16xbf16>
    %cst = arith.constant dense<0.000000e+00> : vector<512x16xf32>
    %2 = tpu.matmul %0, %1, %cst {dimension_numbers = #tpu.dot_dimension_numbers<[1], [0], [0], [1], [0, 0, 1, 1], [], []>} : vector<512x48xbf16>, vector<48x16xbf16>, vector<512x16xf32> -> vector<512x16xf32>
    %c0_3 = arith.constant 0 : index
    %c0_4 = arith.constant 0 : index
    %3 = vector.load %arg2[%c0_3, %c0_4] : memref<1x16xf32, #tpu.memory_space<vmem>>, vector<1x16xf32>
    %c0_5 = arith.constant 0 : index
    %c0_6 = arith.constant 0 : index
    %4 = vector.load %arg3[%c0_5, %c0_6] : memref<1x16xf32, #tpu.memory_space<vmem>>, vector<1x16xf32>
    %cst_7 = arith.constant dense<0.000000e+00> : vector<16xf32>
    %5 = vector.multi_reduction <add>, %2, %cst_7 [0] : vector<512x16xf32> to vector<16xf32>
    %6 = vector.shape_cast %5 : vector<16xf32> to vector<1x16xf32>
    %cst_8 = arith.constant 0.001953125 : f32
    %7 = vector.broadcast %cst_8 : f32 to vector<1x16xf32>
    %8 = arith.mulf %6, %7 : vector<1x16xf32>
    %9 = arith.mulf %2, %2 : vector<512x16xf32>
    %cst_9 = arith.constant dense<0.000000e+00> : vector<16xf32>
    %10 = vector.multi_reduction <add>, %9, %cst_9 [0] : vector<512x16xf32> to vector<16xf32>
    %11 = vector.shape_cast %10 : vector<16xf32> to vector<1x16xf32>
    %cst_10 = arith.constant 0.001953125 : f32
    %12 = vector.broadcast %cst_10 : f32 to vector<1x16xf32>
    %13 = arith.mulf %11, %12 : vector<1x16xf32>
    %14 = arith.mulf %8, %8 : vector<1x16xf32>
    %15 = arith.subf %13, %14 : vector<1x16xf32>
    %cst_11 = arith.constant 0.000000e+00 : f32
    %16 = vector.broadcast %cst_11 : f32 to vector<1x16xf32>
    %17 = arith.maximumf %15, %16 : vector<1x16xf32>
    %18 = vector.broadcast %8 : vector<1x16xf32> to vector<512x16xf32>
    %19 = arith.subf %2, %18 : vector<512x16xf32>
    %cst_12 = arith.constant 9.99999974E-6 : f32
    %20 = vector.broadcast %cst_12 : f32 to vector<1x16xf32>
    %21 = arith.addf %17, %20 : vector<1x16xf32>
    %22 = math.rsqrt %21 : vector<1x16xf32>
    %23 = vector.broadcast %22 : vector<1x16xf32> to vector<512x16xf32>
    %24 = arith.mulf %19, %23 : vector<512x16xf32>
    %25 = vector.broadcast %3 : vector<1x16xf32> to vector<512x16xf32>
    %26 = arith.mulf %24, %25 : vector<512x16xf32>
    %27 = vector.broadcast %4 : vector<1x16xf32> to vector<512x16xf32>
    %28 = arith.addf %26, %27 : vector<512x16xf32>
    %cst_13 = arith.constant 0.000000e+00 : f32
    %29 = vector.broadcast %cst_13 : f32 to vector<512x16xf32>
    %30 = arith.cmpf oge, %28, %29 : vector<512x16xf32>
    %cst_14 = arith.constant 2.000000e-01 : f32
    %31 = vector.broadcast %cst_14 : f32 to vector<512x16xf32>
    %32 = arith.mulf %31, %28 : vector<512x16xf32>
    %33 = arith.select %30, %28, %32 : vector<512x16xi1>, vector<512x16xf32>
    %34 = arith.truncf %33 : vector<512x16xf32> to vector<512x16xbf16>
    %c0_15 = arith.constant 0 : index
    %c0_16 = arith.constant 0 : index
    %35 = vector.load %arg4[%c0_15, %c0_16] : memref<512x16xbf16, #tpu.memory_space<vmem>>, vector<512x16xbf16>
    tpu.vector_store %arg4[%c0_15, %c0_16], %34 {strides = array<i32>} : memref<512x16xbf16, #tpu.memory_space<vmem>>, vector<512x16xbf16>,
    return
  }
}

module attributes {stable_mosaic.version = 11 : i64} {
  func.func @_hidden_kernel(%arg0: memref<144x64xbf16, #tpu.memory_space<vmem>>, %arg1: memref<144x64xbf16, #tpu.memory_space<vmem>>, %arg2: memref<4x64x32xbf16, #tpu.memory_space<vmem>>, %arg3: memref<1x32xf32, #tpu.memory_space<vmem>>, %arg4: memref<1x32xf32, #tpu.memory_space<vmem>>, %arg5: memref<128x32xbf16, #tpu.memory_space<vmem>>) attributes {dimension_semantics = [], scalar_prefetch = 0 : i64, scratch_operands = 0 : i64, tpu.core_type = #tpu.core_type<tc>} {
    %cst = arith.constant 0.000000e+00 : f32
    %0 = vector.broadcast %cst : f32 to vector<128x32xf32>
    %c0 = arith.constant 0 : index
    %c0_0 = arith.constant 0 : index
    %1 = vector.load %arg0[%c0, %c0_0] : memref<144x64xbf16, #tpu.memory_space<vmem>>, vector<128x64xbf16>
    %c0_1 = arith.constant 0 : index
    %c0_2 = arith.constant 0 : index
    %c0_3 = arith.constant 0 : index
    %2 = vector.load %arg2[%c0_1, %c0_2, %c0_3] : memref<4x64x32xbf16, #tpu.memory_space<vmem>>, vector<1x64x32xbf16>
    %3 = vector.shape_cast %2 : vector<1x64x32xbf16> to vector<64x32xbf16>
    %cst_4 = arith.constant dense<0.000000e+00> : vector<128x32xf32>
    %4 = tpu.matmul %1, %3, %cst_4 {dimension_numbers = #tpu.dot_dimension_numbers<[1], [0], [0], [1], [0, 0, 1, 1], [], []>} : vector<128x64xbf16>, vector<64x32xbf16>, vector<128x32xf32> -> vector<128x32xf32>
    %5 = arith.addf %0, %4 : vector<128x32xf32>
    %c16 = arith.constant 16 : index
    %c0_5 = arith.constant 0 : index
    %6 = vector.load %arg0[%c16, %c0_5] : memref<144x64xbf16, #tpu.memory_space<vmem>>, vector<128x64xbf16>
    %c1 = arith.constant 1 : index
    %c0_6 = arith.constant 0 : index
    %c0_7 = arith.constant 0 : index
    %7 = vector.load %arg2[%c1, %c0_6, %c0_7] : memref<4x64x32xbf16, #tpu.memory_space<vmem>>, vector<1x64x32xbf16>
    %8 = vector.shape_cast %7 : vector<1x64x32xbf16> to vector<64x32xbf16>
    %cst_8 = arith.constant dense<0.000000e+00> : vector<128x32xf32>
    %9 = tpu.matmul %6, %8, %cst_8 {dimension_numbers = #tpu.dot_dimension_numbers<[1], [0], [0], [1], [0, 0, 1, 1], [], []>} : vector<128x64xbf16>, vector<64x32xbf16>, vector<128x32xf32> -> vector<128x32xf32>
    %10 = arith.addf %5, %9 : vector<128x32xf32>
    %c0_9 = arith.constant 0 : index
    %c0_10 = arith.constant 0 : index
    %11 = vector.load %arg1[%c0_9, %c0_10] : memref<144x64xbf16, #tpu.memory_space<vmem>>, vector<128x64xbf16>
    %c2 = arith.constant 2 : index
    %c0_11 = arith.constant 0 : index
    %c0_12 = arith.constant 0 : index
    %12 = vector.load %arg2[%c2, %c0_11, %c0_12] : memref<4x64x32xbf16, #tpu.memory_space<vmem>>, vector<1x64x32xbf16>
    %13 = vector.shape_cast %12 : vector<1x64x32xbf16> to vector<64x32xbf16>
    %cst_13 = arith.constant dense<0.000000e+00> : vector<128x32xf32>
    %14 = tpu.matmul %11, %13, %cst_13 {dimension_numbers = #tpu.dot_dimension_numbers<[1], [0], [0], [1], [0, 0, 1, 1], [], []>} : vector<128x64xbf16>, vector<64x32xbf16>, vector<128x32xf32> -> vector<128x32xf32>
    %15 = arith.addf %10, %14 : vector<128x32xf32>
    %c16_14 = arith.constant 16 : index
    %c0_15 = arith.constant 0 : index
    %16 = vector.load %arg1[%c16_14, %c0_15] : memref<144x64xbf16, #tpu.memory_space<vmem>>, vector<128x64xbf16>
    %c3 = arith.constant 3 : index
    %c0_16 = arith.constant 0 : index
    %c0_17 = arith.constant 0 : index
    %17 = vector.load %arg2[%c3, %c0_16, %c0_17] : memref<4x64x32xbf16, #tpu.memory_space<vmem>>, vector<1x64x32xbf16>
    %18 = vector.shape_cast %17 : vector<1x64x32xbf16> to vector<64x32xbf16>
    %cst_18 = arith.constant dense<0.000000e+00> : vector<128x32xf32>
    %19 = tpu.matmul %16, %18, %cst_18 {dimension_numbers = #tpu.dot_dimension_numbers<[1], [0], [0], [1], [0, 0, 1, 1], [], []>} : vector<128x64xbf16>, vector<64x32xbf16>, vector<128x32xf32> -> vector<128x32xf32>
    %20 = arith.addf %15, %19 : vector<128x32xf32>
    %c0_19 = arith.constant 0 : index
    %c0_20 = arith.constant 0 : index
    %21 = vector.load %arg3[%c0_19, %c0_20] : memref<1x32xf32, #tpu.memory_space<vmem>>, vector<1x32xf32>
    %c0_21 = arith.constant 0 : index
    %c0_22 = arith.constant 0 : index
    %22 = vector.load %arg4[%c0_21, %c0_22] : memref<1x32xf32, #tpu.memory_space<vmem>>, vector<1x32xf32>
    %cst_23 = arith.constant dense<0.000000e+00> : vector<32xf32>
    %23 = vector.multi_reduction <add>, %20, %cst_23 [0] : vector<128x32xf32> to vector<32xf32>
    %24 = vector.shape_cast %23 : vector<32xf32> to vector<1x32xf32>
    %cst_24 = arith.constant 7.812500e-03 : f32
    %25 = vector.broadcast %cst_24 : f32 to vector<1x32xf32>
    %26 = arith.mulf %24, %25 : vector<1x32xf32>
    %27 = arith.mulf %20, %20 : vector<128x32xf32>
    %cst_25 = arith.constant dense<0.000000e+00> : vector<32xf32>
    %28 = vector.multi_reduction <add>, %27, %cst_25 [0] : vector<128x32xf32> to vector<32xf32>
    %29 = vector.shape_cast %28 : vector<32xf32> to vector<1x32xf32>
    %cst_26 = arith.constant 7.812500e-03 : f32
    %30 = vector.broadcast %cst_26 : f32 to vector<1x32xf32>
    %31 = arith.mulf %29, %30 : vector<1x32xf32>
    %32 = arith.mulf %26, %26 : vector<1x32xf32>
    %33 = arith.subf %31, %32 : vector<1x32xf32>
    %cst_27 = arith.constant 0.000000e+00 : f32
    %34 = vector.broadcast %cst_27 : f32 to vector<1x32xf32>
    %35 = arith.maximumf %33, %34 : vector<1x32xf32>
    %36 = vector.broadcast %26 : vector<1x32xf32> to vector<128x32xf32>
    %37 = arith.subf %20, %36 : vector<128x32xf32>
    %cst_28 = arith.constant 9.99999974E-6 : f32
    %38 = vector.broadcast %cst_28 : f32 to vector<1x32xf32>
    %39 = arith.addf %35, %38 : vector<1x32xf32>
    %40 = math.rsqrt %39 : vector<1x32xf32>
    %41 = vector.broadcast %40 : vector<1x32xf32> to vector<128x32xf32>
    %42 = arith.mulf %37, %41 : vector<128x32xf32>
    %43 = vector.broadcast %21 : vector<1x32xf32> to vector<128x32xf32>
    %44 = arith.mulf %42, %43 : vector<128x32xf32>
    %45 = vector.broadcast %22 : vector<1x32xf32> to vector<128x32xf32>
    %46 = arith.addf %44, %45 : vector<128x32xf32>
    %cst_29 = arith.constant 0.000000e+00 : f32
    %47 = vector.broadcast %cst_29 : f32 to vector<128x32xf32>
    %48 = arith.cmpf oge, %46, %47 : vector<128x32xf32>
    %cst_30 = arith.constant 2.000000e-01 : f32
    %49 = vector.broadcast %cst_30 : f32 to vector<128x32xf32>
    %50 = arith.mulf %49, %46 : vector<128x32xf32>
    %51 = arith.select %48, %46, %50 : vector<128x32xi1>, vector<128x32xf32>
    %52 = arith.truncf %51 : vector<128x32xf32> to vector<128x32xbf16>
    %c0_31 = arith.constant 0 : index
    %c0_32 = arith.constant 0 : index
    %53 = vector.load %arg5[%c0_31, %c0_32] : memref<128x32xbf16, #tpu.memory_space<vmem>>, vector<128x32xbf16>
    tpu.vector_store %arg5[%c0_31, %c0_32], %52 {strides = array<i32>} : memref<128x32xbf16, #tpu.memory_space<vmem>>, vector<128x32xbf16>,
    return
  }
}

module attributes {stable_mosaic.version = 11 : i64} {
  func.func @_final_kernel(%arg0: memref<40x128xbf16, #tpu.memory_space<vmem>>, %arg1: memref<40x128xbf16, #tpu.memory_space<vmem>>, %arg2: memref<4x128x64xbf16, #tpu.memory_space<vmem>>, %arg3: memref<1x64xf32, #tpu.memory_space<vmem>>, %arg4: memref<1x64xf32, #tpu.memory_space<vmem>>, %arg5: memref<16x64xf32, #tpu.memory_space<vmem>>, %arg6: memref<2x1xf32, #tpu.memory_space<vmem>>) attributes {dimension_semantics = [], scalar_prefetch = 0 : i64, scratch_operands = 0 : i64, tpu.core_type = #tpu.core_type<tc>} {
    %cst = arith.constant 0.000000e+00 : f32
    %0 = vector.broadcast %cst : f32 to vector<32x64xf32>
    %c0 = arith.constant 0 : index
    %c0_0 = arith.constant 0 : index
    %1 = vector.load %arg0[%c0, %c0_0] : memref<40x128xbf16, #tpu.memory_space<vmem>>, vector<32x128xbf16>
    %c0_1 = arith.constant 0 : index
    %c0_2 = arith.constant 0 : index
    %c0_3 = arith.constant 0 : index
    %2 = vector.load %arg2[%c0_1, %c0_2, %c0_3] : memref<4x128x64xbf16, #tpu.memory_space<vmem>>, vector<1x128x64xbf16>
    %3 = vector.shape_cast %2 : vector<1x128x64xbf16> to vector<128x64xbf16>
    %cst_4 = arith.constant dense<0.000000e+00> : vector<32x64xf32>
    %4 = tpu.matmul %1, %3, %cst_4 {dimension_numbers = #tpu.dot_dimension_numbers<[1], [0], [0], [1], [0, 0, 1, 1], [], []>} : vector<32x128xbf16>, vector<128x64xbf16>, vector<32x64xf32> -> vector<32x64xf32>
    %5 = arith.addf %0, %4 : vector<32x64xf32>
    %c8 = arith.constant 8 : index
    %c0_5 = arith.constant 0 : index
    %6 = vector.load %arg0[%c8, %c0_5] : memref<40x128xbf16, #tpu.memory_space<vmem>>, vector<32x128xbf16>
    %c1 = arith.constant 1 : index
    %c0_6 = arith.constant 0 : index
    %c0_7 = arith.constant 0 : index
    %7 = vector.load %arg2[%c1, %c0_6, %c0_7] : memref<4x128x64xbf16, #tpu.memory_space<vmem>>, vector<1x128x64xbf16>
    %8 = vector.shape_cast %7 : vector<1x128x64xbf16> to vector<128x64xbf16>
    %cst_8 = arith.constant dense<0.000000e+00> : vector<32x64xf32>
    %9 = tpu.matmul %6, %8, %cst_8 {dimension_numbers = #tpu.dot_dimension_numbers<[1], [0], [0], [1], [0, 0, 1, 1], [], []>} : vector<32x128xbf16>, vector<128x64xbf16>, vector<32x64xf32> -> vector<32x64xf32>
    %10 = arith.addf %5, %9 : vector<32x64xf32>
    %c0_9 = arith.constant 0 : index
    %c0_10 = arith.constant 0 : index
    %11 = vector.load %arg1[%c0_9, %c0_10] : memref<40x128xbf16, #tpu.memory_space<vmem>>, vector<32x128xbf16>
    %c2 = arith.constant 2 : index
    %c0_11 = arith.constant 0 : index
    %c0_12 = arith.constant 0 : index
    %12 = vector.load %arg2[%c2, %c0_11, %c0_12] : memref<4x128x64xbf16, #tpu.memory_space<vmem>>, vector<1x128x64xbf16>
    %13 = vector.shape_cast %12 : vector<1x128x64xbf16> to vector<128x64xbf16>
    %cst_13 = arith.constant dense<0.000000e+00> : vector<32x64xf32>
    %14 = tpu.matmul %11, %13, %cst_13 {dimension_numbers = #tpu.dot_dimension_numbers<[1], [0], [0], [1], [0, 0, 1, 1], [], []>} : vector<32x128xbf16>, vector<128x64xbf16>, vector<32x64xf32> -> vector<32x64xf32>
    %15 = arith.addf %10, %14 : vector<32x64xf32>
    %c8_14 = arith.constant 8 : index
    %c0_15 = arith.constant 0 : index
    %16 = vector.load %arg1[%c8_14, %c0_15] : memref<40x128xbf16, #tpu.memory_space<vmem>>, vector<32x128xbf16>
    %c3 = arith.constant 3 : index
    %c0_16 = arith.constant 0 : index
    %c0_17 = arith.constant 0 : index
    %17 = vector.load %arg2[%c3, %c0_16, %c0_17] : memref<4x128x64xbf16, #tpu.memory_space<vmem>>, vector<1x128x64xbf16>
    %18 = vector.shape_cast %17 : vector<1x128x64xbf16> to vector<128x64xbf16>
    %cst_18 = arith.constant dense<0.000000e+00> : vector<32x64xf32>
    %19 = tpu.matmul %16, %18, %cst_18 {dimension_numbers = #tpu.dot_dimension_numbers<[1], [0], [0], [1], [0, 0, 1, 1], [], []>} : vector<32x128xbf16>, vector<128x64xbf16>, vector<32x64xf32> -> vector<32x64xf32>
    %20 = arith.addf %15, %19 : vector<32x64xf32>
    %c0_19 = arith.constant 0 : index
    %c0_20 = arith.constant 0 : index
    %21 = vector.load %arg3[%c0_19, %c0_20] : memref<1x64xf32, #tpu.memory_space<vmem>>, vector<1x64xf32>
    %c0_21 = arith.constant 0 : index
    %c0_22 = arith.constant 0 : index
    %22 = vector.load %arg4[%c0_21, %c0_22] : memref<1x64xf32, #tpu.memory_space<vmem>>, vector<1x64xf32>
    %cst_23 = arith.constant dense<0.000000e+00> : vector<64xf32>
    %23 = vector.multi_reduction <add>, %20, %cst_23 [0] : vector<32x64xf32> to vector<64xf32>
    %24 = vector.shape_cast %23 : vector<64xf32> to vector<1x64xf32>
    %cst_24 = arith.constant 3.125000e-02 : f32
    %25 = vector.broadcast %cst_24 : f32 to vector<1x64xf32>
    %26 = arith.mulf %24, %25 : vector<1x64xf32>
    %27 = arith.mulf %20, %20 : vector<32x64xf32>
    %cst_25 = arith.constant dense<0.000000e+00> : vector<64xf32>
    %28 = vector.multi_reduction <add>, %27, %cst_25 [0] : vector<32x64xf32> to vector<64xf32>
    %29 = vector.shape_cast %28 : vector<64xf32> to vector<1x64xf32>
    %cst_26 = arith.constant 3.125000e-02 : f32
    %30 = vector.broadcast %cst_26 : f32 to vector<1x64xf32>
    %31 = arith.mulf %29, %30 : vector<1x64xf32>
    %32 = arith.mulf %26, %26 : vector<1x64xf32>
    %33 = arith.subf %31, %32 : vector<1x64xf32>
    %cst_27 = arith.constant 0.000000e+00 : f32
    %34 = vector.broadcast %cst_27 : f32 to vector<1x64xf32>
    %35 = arith.maximumf %33, %34 : vector<1x64xf32>
    %36 = vector.broadcast %26 : vector<1x64xf32> to vector<32x64xf32>
    %37 = arith.subf %20, %36 : vector<32x64xf32>
    %cst_28 = arith.constant 9.99999974E-6 : f32
    %38 = vector.broadcast %cst_28 : f32 to vector<1x64xf32>
    %39 = arith.addf %35, %38 : vector<1x64xf32>
    %40 = math.rsqrt %39 : vector<1x64xf32>
    %41 = vector.broadcast %40 : vector<1x64xf32> to vector<32x64xf32>
    %42 = arith.mulf %37, %41 : vector<32x64xf32>
    %43 = vector.broadcast %21 : vector<1x64xf32> to vector<32x64xf32>
    %44 = arith.mulf %42, %43 : vector<32x64xf32>
    %45 = vector.broadcast %22 : vector<1x64xf32> to vector<32x64xf32>
    %46 = arith.addf %44, %45 : vector<32x64xf32>
    %cst_29 = arith.constant 0.000000e+00 : f32
    %47 = vector.broadcast %cst_29 : f32 to vector<32x64xf32>
    %48 = arith.cmpf oge, %46, %47 : vector<32x64xf32>
    %cst_30 = arith.constant 2.000000e-01 : f32
    %49 = vector.broadcast %cst_30 : f32 to vector<32x64xf32>
    %50 = arith.mulf %49, %46 : vector<32x64xf32>
    %51 = arith.select %48, %46, %50 : vector<32x64xi1>, vector<32x64xf32>
    %c0_31 = arith.constant 0 : index
    %c0_32 = arith.constant 0 : index
    %52 = vector.load %arg5[%c0_31, %c0_32] : memref<16x64xf32, #tpu.memory_space<vmem>>, vector<16x64xf32>
    %cst_33 = arith.constant 0.000000e+00 : f32
    %53 = vector.broadcast %cst_33 : f32 to vector<2x64xf32>
    %54 = vector.extract_strided_slice %51 {offsets = [0, 0], sizes = [2, 64], strides = [1, 1]} : vector<32x64xf32> to vector<2x64xf32>
    %55 = vector.extract_strided_slice %52 {offsets = [0, 0], sizes = [1, 64], strides = [1, 1]} : vector<16x64xf32> to vector<1x64xf32>
    %56 = vector.broadcast %55 : vector<1x64xf32> to vector<2x64xf32>
    %57 = arith.mulf %54, %56 : vector<2x64xf32>
    %58 = arith.addf %53, %57 : vector<2x64xf32>
    %59 = vector.extract_strided_slice %51 {offsets = [2, 0], sizes = [2, 64], strides = [1, 1]} : vector<32x64xf32> to vector<2x64xf32>
    %60 = vector.extract_strided_slice %52 {offsets = [1, 0], sizes = [1, 64], strides = [1, 1]} : vector<16x64xf32> to vector<1x64xf32>
    %61 = vector.broadcast %60 : vector<1x64xf32> to vector<2x64xf32>
    %62 = arith.mulf %59, %61 : vector<2x64xf32>
    %63 = arith.addf %58, %62 : vector<2x64xf32>
    %64 = vector.extract_strided_slice %51 {offsets = [4, 0], sizes = [2, 64], strides = [1, 1]} : vector<32x64xf32> to vector<2x64xf32>
    %65 = vector.extract_strided_slice %52 {offsets = [2, 0], sizes = [1, 64], strides = [1, 1]} : vector<16x64xf32> to vector<1x64xf32>
    %66 = vector.broadcast %65 : vector<1x64xf32> to vector<2x64xf32>
    %67 = arith.mulf %64, %66 : vector<2x64xf32>
    %68 = arith.addf %63, %67 : vector<2x64xf32>
    %69 = vector.extract_strided_slice %51 {offsets = [6, 0], sizes = [2, 64], strides = [1, 1]} : vector<32x64xf32> to vector<2x64xf32>
    %70 = vector.extract_strided_slice %52 {offsets = [3, 0], sizes = [1, 64], strides = [1, 1]} : vector<16x64xf32> to vector<1x64xf32>
    %71 = vector.broadcast %70 : vector<1x64xf32> to vector<2x64xf32>
    %72 = arith.mulf %69, %71 : vector<2x64xf32>
    %73 = arith.addf %68, %72 : vector<2x64xf32>
    %74 = vector.extract_strided_slice %51 {offsets = [8, 0], sizes = [2, 64], strides = [1, 1]} : vector<32x64xf32> to vector<2x64xf32>
    %75 = vector.extract_strided_slice %52 {offsets = [4, 0], sizes = [1, 64], strides = [1, 1]} : vector<16x64xf32> to vector<1x64xf32>
    %76 = vector.broadcast %75 : vector<1x64xf32> to vector<2x64xf32>
    %77 = arith.mulf %74, %76 : vector<2x64xf32>
    %78 = arith.addf %73, %77 : vector<2x64xf32>
    %79 = vector.extract_strided_slice %51 {offsets = [10, 0], sizes = [2, 64], strides = [1, 1]} : vector<32x64xf32> to vector<2x64xf32>
    %80 = vector.extract_strided_slice %52 {offsets = [5, 0], sizes = [1, 64], strides = [1, 1]} : vector<16x64xf32> to vector<1x64xf32>
    %81 = vector.broadcast %80 : vector<1x64xf32> to vector<2x64xf32>
    %82 = arith.mulf %79, %81 : vector<2x64xf32>
    %83 = arith.addf %78, %82 : vector<2x64xf32>
    %84 = vector.extract_strided_slice %51 {offsets = [12, 0], sizes = [2, 64], strides = [1, 1]} : vector<32x64xf32> to vector<2x64xf32>
    %85 = vector.extract_strided_slice %52 {offsets = [6, 0], sizes = [1, 64], strides = [1, 1]} : vector<16x64xf32> to vector<1x64xf32>
    %86 = vector.broadcast %85 : vector<1x64xf32> to vector<2x64xf32>
    %87 = arith.mulf %84, %86 : vector<2x64xf32>
    %88 = arith.addf %83, %87 : vector<2x64xf32>
    %89 = vector.extract_strided_slice %51 {offsets = [14, 0], sizes = [2, 64], strides = [1, 1]} : vector<32x64xf32> to vector<2x64xf32>
    %90 = vector.extract_strided_slice %52 {offsets = [7, 0], sizes = [1, 64], strides = [1, 1]} : vector<16x64xf32> to vector<1x64xf32>
    %91 = vector.broadcast %90 : vector<1x64xf32> to vector<2x64xf32>
    %92 = arith.mulf %89, %91 : vector<2x64xf32>
    %93 = arith.addf %88, %92 : vector<2x64xf32>
    %94 = vector.extract_strided_slice %51 {offsets = [16, 0], sizes = [2, 64], strides = [1, 1]} : vector<32x64xf32> to vector<2x64xf32>
    %95 = vector.extract_strided_slice %52 {offsets = [8, 0], sizes = [1, 64], strides = [1, 1]} : vector<16x64xf32> to vector<1x64xf32>
    %96 = vector.broadcast %95 : vector<1x64xf32> to vector<2x64xf32>
    %97 = arith.mulf %94, %96 : vector<2x64xf32>
    %98 = arith.addf %93, %97 : vector<2x64xf32>
    %99 = vector.extract_strided_slice %51 {offsets = [18, 0], sizes = [2, 64], strides = [1, 1]} : vector<32x64xf32> to vector<2x64xf32>
    %100 = vector.extract_strided_slice %52 {offsets = [9, 0], sizes = [1, 64], strides = [1, 1]} : vector<16x64xf32> to vector<1x64xf32>
    %101 = vector.broadcast %100 : vector<1x64xf32> to vector<2x64xf32>
    %102 = arith.mulf %99, %101 : vector<2x64xf32>
    %103 = arith.addf %98, %102 : vector<2x64xf32>
    %104 = vector.extract_strided_slice %51 {offsets = [20, 0], sizes = [2, 64], strides = [1, 1]} : vector<32x64xf32> to vector<2x64xf32>
    %105 = vector.extract_strided_slice %52 {offsets = [10, 0], sizes = [1, 64], strides = [1, 1]} : vector<16x64xf32> to vector<1x64xf32>
    %106 = vector.broadcast %105 : vector<1x64xf32> to vector<2x64xf32>
    %107 = arith.mulf %104, %106 : vector<2x64xf32>
    %108 = arith.addf %103, %107 : vector<2x64xf32>
    %109 = vector.extract_strided_slice %51 {offsets = [22, 0], sizes = [2, 64], strides = [1, 1]} : vector<32x64xf32> to vector<2x64xf32>
    %110 = vector.extract_strided_slice %52 {offsets = [11, 0], sizes = [1, 64], strides = [1, 1]} : vector<16x64xf32> to vector<1x64xf32>
    %111 = vector.broadcast %110 : vector<1x64xf32> to vector<2x64xf32>
    %112 = arith.mulf %109, %111 : vector<2x64xf32>
    %113 = arith.addf %108, %112 : vector<2x64xf32>
    %114 = vector.extract_strided_slice %51 {offsets = [24, 0], sizes = [2, 64], strides = [1, 1]} : vector<32x64xf32> to vector<2x64xf32>
    %115 = vector.extract_strided_slice %52 {offsets = [12, 0], sizes = [1, 64], strides = [1, 1]} : vector<16x64xf32> to vector<1x64xf32>
    %116 = vector.broadcast %115 : vector<1x64xf32> to vector<2x64xf32>
    %117 = arith.mulf %114, %116 : vector<2x64xf32>
    %118 = arith.addf %113, %117 : vector<2x64xf32>
    %119 = vector.extract_strided_slice %51 {offsets = [26, 0], sizes = [2, 64], strides = [1, 1]} : vector<32x64xf32> to vector<2x64xf32>
    %120 = vector.extract_strided_slice %52 {offsets = [13, 0], sizes = [1, 64], strides = [1, 1]} : vector<16x64xf32> to vector<1x64xf32>
    %121 = vector.broadcast %120 : vector<1x64xf32> to vector<2x64xf32>
    %122 = arith.mulf %119, %121 : vector<2x64xf32>
    %123 = arith.addf %118, %122 : vector<2x64xf32>
    %124 = vector.extract_strided_slice %51 {offsets = [28, 0], sizes = [2, 64], strides = [1, 1]} : vector<32x64xf32> to vector<2x64xf32>
    %125 = vector.extract_strided_slice %52 {offsets = [14, 0], sizes = [1, 64], strides = [1, 1]} : vector<16x64xf32> to vector<1x64xf32>
    %126 = vector.broadcast %125 : vector<1x64xf32> to vector<2x64xf32>
    %127 = arith.mulf %124, %126 : vector<2x64xf32>
    %128 = arith.addf %123, %127 : vector<2x64xf32>
    %129 = vector.extract_strided_slice %51 {offsets = [30, 0], sizes = [2, 64], strides = [1, 1]} : vector<32x64xf32> to vector<2x64xf32>
    %130 = vector.extract_strided_slice %52 {offsets = [15, 0], sizes = [1, 64], strides = [1, 1]} : vector<16x64xf32> to vector<1x64xf32>
    %131 = vector.broadcast %130 : vector<1x64xf32> to vector<2x64xf32>
    %132 = arith.mulf %129, %131 : vector<2x64xf32>
    %133 = arith.addf %128, %132 : vector<2x64xf32>
    %cst_34 = arith.constant dense<0.000000e+00> : vector<2xf32>
    %134 = vector.multi_reduction <add>, %133, %cst_34 [1] : vector<2x64xf32> to vector<2xf32>
    %135 = vector.shape_cast %134 : vector<2xf32> to vector<2x1xf32>
    %c0_35 = arith.constant 0 : index
    %c0_36 = arith.constant 0 : index
    %136 = vector.load %arg6[%c0_35, %c0_36] : memref<2x1xf32, #tpu.memory_space<vmem>>, vector<2x1xf32>
    tpu.vector_store %arg6[%c0_35, %c0_36], %135 {strides = array<i32>} : memref<2x1xf32, #tpu.memory_space<vmem>>, vector<2x1xf32>,
    return
  }
}

</mosaic_0001>

<llo_original>
// kernel: discriminator_forward.3
$region0: #{discriminator_forward.3}
  #allocation0 [shape = 'u32[]', space=smem, size = 0x4, offset = 0x4, fixed_abs, tag = 'smem constant byte address 0x4 - core index']
  #allocation1 [shape = 'u32[144,128]{1,0:T(1,128)}', space=vmem, size = 0x12000, scoped, tag = 'internal scratch']
  %s0 = inlined_call_operand.vmem [shape: bf16[512,48], index: 0, kind: input, shape index: {}]
  %s1 = inlined_call_operand.vmem [shape: bf16[48,16], index: 1, kind: input, shape index: {}]
  %s2 = inlined_call_operand.vmem [shape: f32[1,16], index: 2, kind: input, shape index: {}]
  %s3 = inlined_call_operand.vmem [shape: f32[1,16], index: 3, kind: input, shape index: {}]
  %s4 = inlined_call_operand.vmem [shape: bf16[512,16], index: 4, kind: output, shape index: {}]
  %s5 = sld [smem:[#allocation0]]
  $region26: #{discriminator_forward.3} parent=0
    _
  %s7 = ssub.s32 1, %s5
  %s8 = scalar_select 0, %s7, %s5
  // Predicated region
  $region2: #{discriminator_forward.3} parent=0 // pred_check
    _
  $region3: #{discriminator_forward.3} parent=0 // pred_check_branch
    %10 = sbr.rel (0) target = $region5
  $region4: #{discriminator_forward.3} parent=0 // pred_region
    _
  $region5: #{discriminator_forward.3} parent=0 // pred_fallthru
    _
  // Predicated region
  $region6: #{discriminator_forward.3} parent=0 // pred_check
    _
  $region7: #{discriminator_forward.3} parent=0 // pred_check_branch
    %12 = sbr.rel (0) target = $region9
  $region8: #{discriminator_forward.3} parent=0 // pred_region
    _
  $region9: #{discriminator_forward.3} parent=0 // pred_fallthru
    _
  // Predicated region
  $region10: #{discriminator_forward.3} parent=0 // pred_check
    _
  $region11: #{discriminator_forward.3} parent=0 // pred_check_branch
    %14 = sbr.rel (0) target = $region13
  $region12: #{discriminator_forward.3} parent=0 // pred_region
    _
  $region13: #{discriminator_forward.3} parent=0 // pred_fallthru
    _
  // Predicated region
  $region14: #{discriminator_forward.3} parent=0 // pred_check
    _
  $region15: #{discriminator_forward.3} parent=0 // pred_check_branch
    %16 = sbr.rel (0) target = $region17
  $region16: #{discriminator_forward.3} parent=0 // pred_region
    _
  $region17: #{discriminator_forward.3} parent=0 // pred_fallthru
    _
  %v18 = vld [vmem:[%s0] sm:$0xf]
  %v19 = vld [vmem:[%s0 + $0x4] sm:$0xf]
  %v20 = vld [vmem:[%s0 + $0x8] sm:$0xf]
  %v21 = vld [vmem:[%s0 + $0xc] sm:$0xf]
  %v22 = vld [vmem:[%s0 + $0x10] sm:$0xf]
  %v23 = vld [vmem:[%s0 + $0x14] sm:$0xf]
  %v24 = vld [vmem:[%s0 + $0x18] sm:$0xf]
  %v25 = vld [vmem:[%s0 + $0x1c] sm:$0xf]
  %v26 = vld [vmem:[%s0 + $0x20] sm:$0xf]
  %v27 = vld [vmem:[%s0 + $0x24] sm:$0xf]
  %v28 = vld [vmem:[%s0 + $0x28] sm:$0xf]
  %v29 = vld [vmem:[%s0 + $0x2c] sm:$0xf]
  %v30 = vld [vmem:[%s0 + $0x30] sm:$0xf]
  %v31 = vld [vmem:[%s0 + $0x34] sm:$0xf]
  %v32 = vld [vmem:[%s0 + $0x38] sm:$0xf]
  %v33 = vld [vmem:[%s0 + $0x3c] sm:$0xf]
  %v34 = vld [vmem:[%s0 + $0x40] sm:$0xf]
  %v35 = vld [vmem:[%s0 + $0x44] sm:$0xf]
  %v36 = vld [vmem:[%s0 + $0x48] sm:$0xf]
  %v37 = vld [vmem:[%s0 + $0x4c] sm:$0xf]
  %v38 = vld [vmem:[%s0 + $0x50] sm:$0xf]
  %v39 = vld [vmem:[%s0 + $0x54] sm:$0xf]
  %v40 = vld [vmem:[%s0 + $0x58] sm:$0xf]
  %v41 = vld [vmem:[%s0 + $0x5c] sm:$0xf]
  %v42 = vld [vmem:[%s0 + $0x60] sm:$0xf]
  %v43 = vld [vmem:[%s0 + $0x64] sm:$0xf]
  %v44 = vld [vmem:[%s0 + $0x68] sm:$0xf]
  %v45 = vld [vmem:[%s0 + $0x6c] sm:$0xf]
  %v46 = vld [vmem:[%s0 + $0x70] sm:$0xf]
  %v47 = vld [vmem:[%s0 + $0x74] sm:$0xf]
  %v48 = vld [vmem:[%s0 + $0x78] sm:$0xf]
  %v49 = vld [vmem:[%s0 + $0x7c] sm:$0xf]
  %v50 = vld [vmem:[%s0 + $0x80] sm:$0xf]
  %v51 = vld [vmem:[%s0 + $0x84] sm:$0xf]
  %v52 = vld [vmem:[%s0 + $0x88] sm:$0xf]
  %v53 = vld [vmem:[%s0 + $0x8c] sm:$0xf]
  %v54 = vld [vmem:[%s0 + $0x90] sm:$0xf]
  %v55 = vld [vmem:[%s0 + $0x94] sm:$0xf]
  %v56 = vld [vmem:[%s0 + $0x98] sm:$0xf]
  %v57 = vld [vmem:[%s0 + $0x9c] sm:$0xf]
  %v58 = vld [vmem:[%s0 + $0xa0] sm:$0xf]
  %v59 = vld [vmem:[%s0 + $0xa4] sm:$0xf]
  %v60 = vld [vmem:[%s0 + $0xa8] sm:$0xf]
  %v61 = vld [vmem:[%s0 + $0xac] sm:$0xf]
  %v62 = vld [vmem:[%s0 + $0xb0] sm:$0xf]
  %v63 = vld [vmem:[%s0 + $0xb4] sm:$0xf]
  %v64 = vld [vmem:[%s0 + $0xb8] sm:$0xf]
  %v65 = vld [vmem:[%s0 + $0xbc] sm:$0xf]
  %v66 = vld [vmem:[%s0 + $0xc0] sm:$0xf]
  %v67 = vld [vmem:[%s0 + $0xc4] sm:$0xf]
  %v68 = vld [vmem:[%s0 + $0xc8] sm:$0xf]
  %v69 = vld [vmem:[%s0 + $0xcc] sm:$0xf]
  %v70 = vld [vmem:[%s0 + $0xd0] sm:$0xf]
  %v71 = vld [vmem:[%s0 + $0xd4] sm:$0xf]
  %v72 = vld [vmem:[%s0 + $0xd8] sm:$0xf]
  %v73 = vld [vmem:[%s0 + $0xdc] sm:$0xf]
  %v74 = vld [vmem:[%s0 + $0xe0] sm:$0xf]
  %v75 = vld [vmem:[%s0 + $0xe4] sm:$0xf]
  %v76 = vld [vmem:[%s0 + $0xe8] sm:$0xf]
  %v77 = vld [vmem:[%s0 + $0xec] sm:$0xf]
  %v78 = vld [vmem:[%s0 + $0xf0] sm:$0xf]
  %v79 = vld [vmem:[%s0 + $0xf4] sm:$0xf]
  %v80 = vld [vmem:[%s0 + $0xf8] sm:$0xf]
  %v81 = vld [vmem:[%s0 + $0xfc] sm:$0xf]
  %v82 = vld [vmem:[%s1] sm:$0xf]
  %v83 = vld [vmem:[%s1 + $0x4] sm:$0xf]
  %v84 = vld [vmem:[%s1 + $0x8] sm:$0xf]
  %v85 = vld [vmem:[%s1 + $0xc] sm:$0xf]
  %v86 = vld [vmem:[%s1 + $0x10] sm:$0xf]
  %v87 = vld [vmem:[%s1 + $0x14] sm:$0xf]
  %v152 = vunpack.c.l.b16 %v18
  %v153 = vunpack.c.l.b16 %v19
  %v154 = vunpack.c.l.b16 %v20
  %v155 = vunpack.c.l.b16 %v21
  %v156 = vunpack.c.l.b16 %v22
  %v157 = vunpack.c.l.b16 %v23
  %v158 = vunpack.c.l.b16 %v24
  %v159 = vunpack.c.l.b16 %v25
  %v160 = vunpack.c.l.b16 %v26
  %v161 = vunpack.c.l.b16 %v27
  %v162 = vunpack.c.l.b16 %v28
  %v163 = vunpack.c.l.b16 %v29
  %v164 = vunpack.c.l.b16 %v30
  %v165 = vunpack.c.l.b16 %v31
  %v166 = vunpack.c.l.b16 %v32
  %v167 = vunpack.c.l.b16 %v33
  %v168 = vunpack.c.l.b16 %v34
  %v169 = vunpack.c.l.b16 %v35
  %v170 = vunpack.c.l.b16 %v36
  %v171 = vunpack.c.l.b16 %v37
  %v172 = vunpack.c.l.b16 %v38
  %v173 = vunpack.c.l.b16 %v39
  %v174 = vunpack.c.l.b16 %v40
  %v175 = vunpack.c.l.b16 %v41
  %v176 = vunpack.c.l.b16 %v42
  %v177 = vunpack.c.l.b16 %v43
  %v178 = vunpack.c.l.b16 %v44
  %v179 = vunpack.c.l.b16 %v45
  %v180 = vunpack.c.l.b16 %v46
  %v181 = vunpack.c.l.b16 %v47
  %v182 = vunpack.c.l.b16 %v48
  %v183 = vunpack.c.l.b16 %v49
  %v184 = vunpack.c.l.b16 %v50
  %v185 = vunpack.c.l.b16 %v51
  %v186 = vunpack.c.l.b16 %v52
  %v187 = vunpack.c.l.b16 %v53
  %v188 = vunpack.c.l.b16 %v54
  %v189 = vunpack.c.l.b16 %v55
  %v190 = vunpack.c.l.b16 %v56
  %v191 = vunpack.c.l.b16 %v57
  %v192 = vunpack.c.l.b16 %v58
  %v193 = vunpack.c.l.b16 %v59
  %v194 = vunpack.c.l.b16 %v60
  %v195 = vunpack.c.l.b16 %v61
  %v196 = vunpack.c.l.b16 %v62
  %v197 = vunpack.c.l.b16 %v63
  %v198 = vunpack.c.l.b16 %v64
  %v199 = vunpack.c.l.b16 %v65
  %v200 = vunpack.c.l.b16 %v66
  %v201 = vunpack.c.l.b16 %v67
  %v202 = vunpack.c.l.b16 %v68
  %v203 = vunpack.c.l.b16 %v69
  %v204 = vunpack.c.l.b16 %v70
  %v205 = vunpack.c.l.b16 %v71
  %v206 = vunpack.c.l.b16 %v72
  %v207 = vunpack.c.l.b16 %v73
  %v208 = vunpack.c.l.b16 %v74
  %v209 = vunpack.c.l.b16 %v75
  %v210 = vunpack.c.l.b16 %v76
  %v211 = vunpack.c.l.b16 %v77
  %v212 = vunpack.c.l.b16 %v78
  %v213 = vunpack.c.l.b16 %v79
  %v214 = vunpack.c.l.b16 %v80
  %v215 = vunpack.c.l.b16 %v81
  %v216 = vpack.c.b16 %v153, %v152
  %v217 = vpack.c.b16 %v155, %v154
  %v218 = vpack.c.b16 %v157, %v156
  %v219 = vpack.c.b16 %v159, %v158
  %v220 = vpack.c.b16 %v161, %v160
  %v221 = vpack.c.b16 %v163, %v162
  %v222 = vpack.c.b16 %v165, %v164
  %v223 = vpack.c.b16 %v167, %v166
  %v224 = vpack.c.b16 %v169, %v168
  %v225 = vpack.c.b16 %v171, %v170
  %v226 = vpack.c.b16 %v173, %v172
  %v227 = vpack.c.b16 %v175, %v174
  %v228 = vpack.c.b16 %v177, %v176
  %v229 = vpack.c.b16 %v179, %v178
  %v230 = vpack.c.b16 %v181, %v180
  %v231 = vpack.c.b16 %v183, %v182
  %v232 = vpack.c.b16 %v185, %v184
  %v233 = vpack.c.b16 %v187, %v186
  %v234 = vpack.c.b16 %v189, %v188
  %v235 = vpack.c.b16 %v191, %v190
  %v236 = vpack.c.b16 %v193, %v192
  %v237 = vpack.c.b16 %v195, %v194
  %v238 = vpack.c.b16 %v197, %v196
  %v239 = vpack.c.b16 %v199, %v198
  %v240 = vpack.c.b16 %v201, %v200
  %v241 = vpack.c.b16 %v203, %v202
  %v242 = vpack.c.b16 %v205, %v204
  %v243 = vpack.c.b16 %v207, %v206
  %v244 = vpack.c.b16 %v209, %v208
  %v245 = vpack.c.b16 %v211, %v210
  %v246 = vpack.c.b16 %v213, %v212
  %v247 = vpack.c.b16 %v215, %v214
  %v254 = vunpack.c.l.b16 %v82
  %v255 = vunpack.c.l.b16 %v83
  %v256 = vunpack.c.l.b16 %v84
  %v257 = vunpack.c.l.b16 %v85
  %v258 = vunpack.c.l.b16 %v86
  %v259 = vunpack.c.l.b16 %v87
  %v260 = vpack.c.b16 %v255, %v254
  %v261 = vpack.c.b16 %v257, %v256
  %v262 = vpack.c.b16 %v259, %v258
  %vm266 = vcmask 392192
  %v268 = vsel %vm266, %v216, 0
  %v271 = vsel %vm266, %v217, 0
  %v274 = vsel %vm266, %v218, 0
  %v277 = vsel %vm266, %v219, 0
  %v280 = vsel %vm266, %v220, 0
  %v283 = vsel %vm266, %v221, 0
  %v286 = vsel %vm266, %v222, 0
  %v289 = vsel %vm266, %v223, 0
  %v292 = vsel %vm266, %v224, 0
  %v295 = vsel %vm266, %v225, 0
  %v298 = vsel %vm266, %v226, 0
  %v301 = vsel %vm266, %v227, 0
  %v304 = vsel %vm266, %v228, 0
  %v307 = vsel %vm266, %v229, 0
  %v310 = vsel %vm266, %v230, 0
  %v313 = vsel %vm266, %v231, 0
  %v316 = vsel %vm266, %v232, 0
  %v319 = vsel %vm266, %v233, 0
  %v322 = vsel %vm266, %v234, 0
  %v325 = vsel %vm266, %v235, 0
  %v328 = vsel %vm266, %v236, 0
  %v331 = vsel %vm266, %v237, 0
  %v334 = vsel %vm266, %v238, 0
  %v337 = vsel %vm266, %v239, 0
  %v340 = vsel %vm266, %v240, 0
  %v343 = vsel %vm266, %v241, 0
  %v346 = vsel %vm266, %v242, 0
  %v349 = vsel %vm266, %v243, 0
  %v352 = vsel %vm266, %v244, 0
  %v355 = vsel %vm266, %v245, 0
  %v358 = vsel %vm266, %v246, 0
  %v361 = vsel %vm266, %v247, 0
  %363 = vmatprep.subr.bf16.mxu0 0
  %364 = vmatpush1.bf16.msra.mxu0 %v260
  %365 = vmatprep.subr.bf16.mxu0 0
  %366 = vmatpush1.bf16.msra.mxu0 %v261
  %367 = vmatprep.subr.bf16.mxu0 0
  %368 = vmatpush1.bf16.msra.mxu0 %v262
  %369 = vmatprep.subr.bf16.mxu0 0
  %370 = vmatpush1.bf16.msra.mxu0 0
  %371 = vmatprep.subr.bf16.mxu0 0
  %372 = vmatpush1.bf16.msra.mxu0 0
  %373 = vmatprep.subr.bf16.mxu0 0
  %374 = vmatpush1.bf16.msra.mxu0 0
  %375 = vmatprep.subr.bf16.mxu0 0
  %376 = vmatpush1.bf16.msra.mxu0 0
  %377 = vmatprep.subr.bf16.mxu0 0
  %378 = vmatpush1.bf16.msra.mxu0 0
  %379 = vmatprep.subr.bf16.mxu0 0
  %380 = vmatpush1.bf16.msra.mxu0 0
  %381 = vmatprep.subr.bf16.mxu0 0
  %382 = vmatpush1.bf16.msra.mxu0 0
  %383 = vmatprep.subr.bf16.mxu0 0
  %384 = vmatpush1.bf16.msra.mxu0 0
  %385 = vmatprep.subr.bf16.mxu0 0
  %386 = vmatpush1.bf16.msra.mxu0 0
  %387 = vmatprep.subr.bf16.mxu0 0
  %388 = vmatpush1.bf16.msra.mxu0 0
  %389 = vmatprep.subr.bf16.mxu0 0
  %390 = vmatpush1.bf16.msra.mxu0 0
  %391 = vmatprep.subr.bf16.mxu0 0
  %392 = vmatpush1.bf16.msra.mxu0 0
  %393 = vmatprep.subr.bf16.mxu0 0
  %394 = vmatpush1.bf16.msra.mxu0 0
  %395 = vmatprep.mubr.bf16.mxu0 0
  %396 = vmatmul.mubr.bf16.gmra.mrb[0].mxu0 %v268
  %v397 = vpop.f32.mrb[0].mxu0
  %v398 = vadd.f32 0.0, %v397
  %v399 = vpop.f32.mrb[0].mxu0
  %v400 = vpop.f32.mrb[0].mxu0
  %v401 = vadd.f32 0.0, %v400
  %v402 = vpop.f32.mrb[0].mxu0
  %403 = vmatprep.mubr.bf16.mxu0 0
  %404 = vmatmul.mubr.bf16.gmra.mrb[0].mxu0 %v271
  %v405 = vpop.f32.mrb[0].mxu0
  %v406 = vadd.f32 0.0, %v405
  %v407 = vpop.f32.mrb[0].mxu0
  %v408 = vpop.f32.mrb[0].mxu0
  %v409 = vadd.f32 0.0, %v408
  %v410 = vpop.f32.mrb[0].mxu0
  %411 = vmatprep.mubr.bf16.mxu0 0
  %412 = vmatmul.mubr.bf16.gmra.mrb[0].mxu0 %v274
  %v413 = vpop.f32.mrb[0].mxu0
  %v414 = vadd.f32 0.0, %v413
  %v415 = vpop.f32.mrb[0].mxu0
  %v416 = vpop.f32.mrb[0].mxu0
  %v417 = vadd.f32 0.0, %v416
  %v418 = vpop.f32.mrb[0].mxu0
  %419 = vmatprep.mubr.bf16.mxu0 0
  %420 = vmatmul.mubr.bf16.gmra.mrb[0].mxu0 %v277
  %v421 = vpop.f32.mrb[0].mxu0
  %v422 = vadd.f32 0.0, %v421
  %v423 = vpop.f32.mrb[0].mxu0
  %v424 = vpop.f32.mrb[0].mxu0
  %v425 = vadd.f32 0.0, %v424
  %v426 = vpop.f32.mrb[0].mxu0
  %427 = vmatprep.mubr.bf16.mxu0 0
  %428 = vmatmul.mubr.bf16.gmra.mrb[0].mxu0 %v280
  %v429 = vpop.f32.mrb[0].mxu0
  %v430 = vadd.f32 0.0, %v429
  %v431 = vpop.f32.mrb[0].mxu0
  %v432 = vpop.f32.mrb[0].mxu0
  %v433 = vadd.f32 0.0, %v432
  %v434 = vpop.f32.mrb[0].mxu0
  %435 = vmatprep.mubr.bf16.mxu0 0
  %436 = vmatmul.mubr.bf16.gmra.mrb[0].mxu0 %v283
  %v437 = vpop.f32.mrb[0].mxu0
  %v438 = vadd.f32 0.0, %v437
  %v439 = vpop.f32.mrb[0].mxu0
  %v440 = vpop.f32.mrb[0].mxu0
  %v441 = vadd.f32 0.0, %v440
  %v442 = vpop.f32.mrb[0].mxu0
  %443 = vmatprep.mubr.bf16.mxu0 0
  %444 = vmatmul.mubr.bf16.gmra.mrb[0].mxu0 %v286
  %v445 = vpop.f32.mrb[0].mxu0
  %v446 = vadd.f32 0.0, %v445
  %v447 = vpop.f32.mrb[0].mxu0
  %v448 = vpop.f32.mrb[0].mxu0
  %v449 = vadd.f32 0.0, %v448
  %v450 = vpop.f32.mrb[0].mxu0
  %451 = vmatprep.mubr.bf16.mxu0 0
  %452 = vmatmul.mubr.bf16.gmra.mrb[0].mxu0 %v289
  %v453 = vpop.f32.mrb[0].mxu0
  %v454 = vadd.f32 0.0, %v453
  %v455 = vpop.f32.mrb[0].mxu0
  %v456 = vpop.f32.mrb[0].mxu0
  %v457 = vadd.f32 0.0, %v456
  %v458 = vpop.f32.mrb[0].mxu0
  %459 = vmatprep.mubr.bf16.mxu0 0
  %460 = vmatmul.mubr.bf16.gmra.mrb[0].mxu0 %v292
  %v461 = vpop.f32.mrb[0].mxu0
  %v462 = vadd.f32 0.0, %v461
  %v463 = vpop.f32.mrb[0].mxu0
  %v464 = vpop.f32.mrb[0].mxu0
  %v465 = vadd.f32 0.0, %v464
  %v466 = vpop.f32.mrb[0].mxu0
  %467 = vmatprep.mubr.bf16.mxu0 0
  %468 = vmatmul.mubr.bf16.gmra.mrb[0].mxu0 %v295
  %v469 = vpop.f32.mrb[0].mxu0
  %v470 = vadd.f32 0.0, %v469
  %v471 = vpop.f32.mrb[0].mxu0
  %v472 = vpop.f32.mrb[0].mxu0
  %v473 = vadd.f32 0.0, %v472
  %v474 = vpop.f32.mrb[0].mxu0
  %475 = vmatprep.mubr.bf16.mxu0 0
  %476 = vmatmul.mubr.bf16.gmra.mrb[0].mxu0 %v298
  %v477 = vpop.f32.mrb[0].mxu0
  %v478 = vadd.f32 0.0, %v477
  %v479 = vpop.f32.mrb[0].mxu0
  %v480 = vpop.f32.mrb[0].mxu0
  %v481 = vadd.f32 0.0, %v480
  %v482 = vpop.f32.mrb[0].mxu0
  %483 = vmatprep.mubr.bf16.mxu0 0
  %484 = vmatmul.mubr.bf16.gmra.mrb[0].mxu0 %v301
  %v485 = vpop.f32.mrb[0].mxu0
  %v486 = vadd.f32 0.0, %v485
  %v487 = vpop.f32.mrb[0].mxu0
  %v488 = vpop.f32.mrb[0].mxu0
  %v489 = vadd.f32 0.0, %v488
  %v490 = vpop.f32.mrb[0].mxu0
  %491 = vmatprep.mubr.bf16.mxu0 0
  %492 = vmatmul.mubr.bf16.gmra.mrb[0].mxu0 %v304
  %v493 = vpop.f32.mrb[0].mxu0
  %v494 = vadd.f32 0.0, %v493
  %v495 = vpop.f32.mrb[0].mxu0
  %v496 = vpop.f32.mrb[0].mxu0
  %v497 = vadd.f32 0.0, %v496
  %v498 = vpop.f32.mrb[0].mxu0
  %499 = vmatprep.mubr.bf16.mxu0 0
  %500 = vmatmul.mubr.bf16.gmra.mrb[0].mxu0 %v307
  %v501 = vpop.f32.mrb[0].mxu0
  %v502 = vadd.f32 0.0, %v501
  %v503 = vpop.f32.mrb[0].mxu0
  %v504 = vpop.f32.mrb[0].mxu0
  %v505 = vadd.f32 0.0, %v504
  %v506 = vpop.f32.mrb[0].mxu0
  %507 = vmatprep.mubr.bf16.mxu0 0
  %508 = vmatmul.mubr.bf16.gmra.mrb[0].mxu0 %v310
  %v509 = vpop.f32.mrb[0].mxu0
  %v510 = vadd.f32 0.0, %v509
  %v511 = vpop.f32.mrb[0].mxu0
  %v512 = vpop.f32.mrb[0].mxu0
  %v513 = vadd.f32 0.0, %v512
  %v514 = vpop.f32.mrb[0].mxu0
  %515 = vmatprep.mubr.bf16.mxu0 0
  %516 = vmatmul.mubr.bf16.gmra.mrb[0].mxu0 %v313
  %v517 = vpop.f32.mrb[0].mxu0
  %v518 = vadd.f32 0.0, %v517
  %v519 = vpop.f32.mrb[0].mxu0
  %v520 = vpop.f32.mrb[0].mxu0
  %v521 = vadd.f32 0.0, %v520
  %v522 = vpop.f32.mrb[0].mxu0
  %523 = vmatprep.mubr.bf16.mxu0 0
  %524 = vmatmul.mubr.bf16.gmra.mrb[0].mxu0 %v316
  %v525 = vpop.f32.mrb[0].mxu0
  %v526 = vadd.f32 0.0, %v525
  %v527 = vpop.f32.mrb[0].mxu0
  %v528 = vpop.f32.mrb[0].mxu0
  %v529 = vadd.f32 0.0, %v528
  %v530 = vpop.f32.mrb[0].mxu0
  %531 = vmatprep.mubr.bf16.mxu0 0
  %532 = vmatmul.mubr.bf16.gmra.mrb[0].mxu0 %v319
  %v533 = vpop.f32.mrb[0].mxu0
  %v534 = vadd.f32 0.0, %v533
  %v535 = vpop.f32.mrb[0].mxu0
  %v536 = vpop.f32.mrb[0].mxu0
  %v537 = vadd.f32 0.0, %v536
  %v538 = vpop.f32.mrb[0].mxu0
  %539 = vmatprep.mubr.bf16.mxu0 0
  %540 = vmatmul.mubr.bf16.gmra.mrb[0].mxu0 %v322
  %v541 = vpop.f32.mrb[0].mxu0
  %v542 = vadd.f32 0.0, %v541
  %v543 = vpop.f32.mrb[0].mxu0
  %v544 = vpop.f32.mrb[0].mxu0
  %v545 = vadd.f32 0.0, %v544
  %v546 = vpop.f32.mrb[0].mxu0
  %547 = vmatprep.mubr.bf16.mxu0 0
  %548 = vmatmul.mubr.bf16.gmra.mrb[0].mxu0 %v325
  %v549 = vpop.f32.mrb[0].mxu0
  %v550 = vadd.f32 0.0, %v549
  %v551 = vpop.f32.mrb[0].mxu0
  %v552 = vpop.f32.mrb[0].mxu0
  %v553 = vadd.f32 0.0, %v552
  %v554 = vpop.f32.mrb[0].mxu0
  %555 = vmatprep.mubr.bf16.mxu0 0
  %556 = vmatmul.mubr.bf16.gmra.mrb[0].mxu0 %v328
  %v557 = vpop.f32.mrb[0].mxu0
  %v558 = vadd.f32 0.0, %v557
  %v559 = vpop.f32.mrb[0].mxu0
  %v560 = vpop.f32.mrb[0].mxu0
  %v561 = vadd.f32 0.0, %v560
  %v562 = vpop.f32.mrb[0].mxu0
  %563 = vmatprep.mubr.bf16.mxu0 0
  %564 = vmatmul.mubr.bf16.gmra.mrb[0].mxu0 %v331
  %v565 = vpop.f32.mrb[0].mxu0
  %v566 = vadd.f32 0.0, %v565
  %v567 = vpop.f32.mrb[0].mxu0
  %v568 = vpop.f32.mrb[0].mxu0
  %v569 = vadd.f32 0.0, %v568
  %v570 = vpop.f32.mrb[0].mxu0
  %571 = vmatprep.mubr.bf16.mxu0 0
  %572 = vmatmul.mubr.bf16.gmra.mrb[0].mxu0 %v334
  %v573 = vpop.f32.mrb[0].mxu0
  %v574 = vadd.f32 0.0, %v573
  %v575 = vpop.f32.mrb[0].mxu0
  %v576 = vpop.f32.mrb[0].mxu0
  %v577 = vadd.f32 0.0, %v576
  %v578 = vpop.f32.mrb[0].mxu0
  %579 = vmatprep.mubr.bf16.mxu0 0
  %580 = vmatmul.mubr.bf16.gmra.mrb[0].mxu0 %v337
  %v581 = vpop.f32.mrb[0].mxu0
  %v582 = vadd.f32 0.0, %v581
  %v583 = vpop.f32.mrb[0].mxu0
  %v584 = vpop.f32.mrb[0].mxu0
  %v585 = vadd.f32 0.0, %v584
  %v586 = vpop.f32.mrb[0].mxu0
  %587 = vmatprep.mubr.bf16.mxu0 0
  %588 = vmatmul.mubr.bf16.gmra.mrb[0].mxu0 %v340
  %v589 = vpop.f32.mrb[0].mxu0
  %v590 = vadd.f32 0.0, %v589
  %v591 = vpop.f32.mrb[0].mxu0
  %v592 = vpop.f32.mrb[0].mxu0
  %v593 = vadd.f32 0.0, %v592
  %v594 = vpop.f32.mrb[0].mxu0
  %595 = vmatprep.mubr.bf16.mxu0 0
  %596 = vmatmul.mubr.bf16.gmra.mrb[0].mxu0 %v343
  %v597 = vpop.f32.mrb[0].mxu0
  %v598 = vadd.f32 0.0, %v597
  %v599 = vpop.f32.mrb[0].mxu0
  %v600 = vpop.f32.mrb[0].mxu0
  %v601 = vadd.f32 0.0, %v600
  %v602 = vpop.f32.mrb[0].mxu0
  %603 = vmatprep.mubr.bf16.mxu0 0
  %604 = vmatmul.mubr.bf16.gmra.mrb[0].mxu0 %v346
  %v605 = vpop.f32.mrb[0].mxu0
  %v606 = vadd.f32 0.0, %v605
  %v607 = vpop.f32.mrb[0].mxu0
  %v608 = vpop.f32.mrb[0].mxu0
  %v609 = vadd.f32 0.0, %v608
  %v610 = vpop.f32.mrb[0].mxu0
  %611 = vmatprep.mubr.bf16.mxu0 0
  %612 = vmatmul.mubr.bf16.gmra.mrb[0].mxu0 %v349
  %v613 = vpop.f32.mrb[0].mxu0
  %v614 = vadd.f32 0.0, %v613
  %v615 = vpop.f32.mrb[0].mxu0
  %v616 = vpop.f32.mrb[0].mxu0
  %v617 = vadd.f32 0.0, %v616
  %v618 = vpop.f32.mrb[0].mxu0
  %619 = vmatprep.mubr.bf16.mxu0 0
  %620 = vmatmul.mubr.bf16.gmra.mrb[0].mxu0 %v352
  %v621 = vpop.f32.mrb[0].mxu0
  %v622 = vadd.f32 0.0, %v621
  %v623 = vpop.f32.mrb[0].mxu0
  %v624 = vpop.f32.mrb[0].mxu0
  %v625 = vadd.f32 0.0, %v624
  %v626 = vpop.f32.mrb[0].mxu0
  %627 = vmatprep.mubr.bf16.mxu0 0
  %628 = vmatmul.mubr.bf16.gmra.mrb[0].mxu0 %v355
  %v629 = vpop.f32.mrb[0].mxu0
  %v630 = vadd.f32 0.0, %v629
  %v631 = vpop.f32.mrb[0].mxu0
  %v632 = vpop.f32.mrb[0].mxu0
  %v633 = vadd.f32 0.0, %v632
  %v634 = vpop.f32.mrb[0].mxu0
  %635 = vmatprep.mubr.bf16.mxu0 0
  %636 = vmatmul.mubr.bf16.gmra.mrb[0].mxu0 %v358
  %v637 = vpop.f32.mrb[0].mxu0
  %v638 = vadd.f32 0.0, %v637
  %v639 = vpop.f32.mrb[0].mxu0
  %v640 = vpop.f32.mrb[0].mxu0
  %v641 = vadd.f32 0.0, %v640
  %v642 = vpop.f32.mrb[0].mxu0
  %643 = vmatprep.mubr.bf16.mxu0 0
  %644 = vmatmul.mubr.bf16.gmra.mrb[0].mxu0 %v361
  %v645 = vpop.f32.mrb[0].mxu0
  %v646 = vadd.f32 0.0, %v645
  %v647 = vpop.f32.mrb[0].mxu0
  %v648 = vpop.f32.mrb[0].mxu0
  %v649 = vadd.f32 0.0, %v648
  %v650 = vpop.f32.mrb[0].mxu0
  %651 = vdwg.mxu0
  %v652 = vld [vmem:[%s2] sm:$0x1]
  %v653 = vld [vmem:[%s3] sm:$0x1]
  %vm654 = vcmask 130048
  %v655 = vsel %vm654, %v398, 0.0
  %v656 = vsel %vm654, %v401, 0.0
  %v657 = vadd.f32 %v655, %v656
  %v658 = vsel %vm654, %v406, 0.0
  %v659 = vadd.f32 %v657, %v658
  %v660 = vsel %vm654, %v409, 0.0
  %v661 = vadd.f32 %v659, %v660
  %v662 = vsel %vm654, %v414, 0.0
  %v663 = vadd.f32 %v661, %v662
  %v664 = vsel %vm654, %v417, 0.0
  %v665 = vadd.f32 %v663, %v664
  %v666 = vsel %vm654, %v422, 0.0
  %v667 = vadd.f32 %v665, %v666
  %v668 = vsel %vm654, %v425, 0.0
  %v669 = vadd.f32 %v667, %v668
  %v670 = vsel %vm654, %v430, 0.0
  %v671 = vadd.f32 %v669, %v670
  %v672 = vsel %vm654, %v433, 0.0
  %v673 = vadd.f32 %v671, %v672
  %v674 = vsel %vm654, %v438, 0.0
  %v675 = vadd.f32 %v673, %v674
  %v676 = vsel %vm654, %v441, 0.0
  %v677 = vadd.f32 %v675, %v676
  %v678 = vsel %vm654, %v446, 0.0
  %v679 = vadd.f32 %v677, %v678
  %v680 = vsel %vm654, %v449, 0.0
  %v681 = vadd.f32 %v679, %v680
  %v682 = vsel %vm654, %v454, 0.0
  %v683 = vadd.f32 %v681, %v682
  %v684 = vsel %vm654, %v457, 0.0
  %v685 = vadd.f32 %v683, %v684
  %v686 = vsel %vm654, %v462, 0.0
  %v687 = vadd.f32 %v685, %v686
  %v688 = vsel %vm654, %v465, 0.0
  %v689 = vadd.f32 %v687, %v688
  %v690 = vsel %vm654, %v470, 0.0
  %v691 = vadd.f32 %v689, %v690
  %v692 = vsel %vm654, %v473, 0.0
  %v693 = vadd.f32 %v691, %v692
  %v694 = vsel %vm654, %v478, 0.0
  %v695 = vadd.f32 %v693, %v694
  %v696 = vsel %vm654, %v481, 0.0
  %v697 = vadd.f32 %v695, %v696
  %v698 = vsel %vm654, %v486, 0.0
  %v699 = vadd.f32 %v697, %v698
  %v700 = vsel %vm654, %v489, 0.0
  %v701 = vadd.f32 %v699, %v700
  %v702 = vsel %vm654, %v494, 0.0
  %v703 = vadd.f32 %v701, %v702
  %v704 = vsel %vm654, %v497, 0.0
  %v705 = vadd.f32 %v703, %v704
  %v706 = vsel %vm654, %v502, 0.0
  %v707 = vadd.f32 %v705, %v706
  %v708 = vsel %vm654, %v505, 0.0
  %v709 = vadd.f32 %v707, %v708
  %v710 = vsel %vm654, %v510, 0.0
  %v711 = vadd.f32 %v709, %v710
  %v712 = vsel %vm654, %v513, 0.0
  %v713 = vadd.f32 %v711, %v712
  %v714 = vsel %vm654, %v518, 0.0
  %v715 = vadd.f32 %v713, %v714
  %v716 = vsel %vm654, %v521, 0.0
  %v717 = vadd.f32 %v715, %v716
  %v718 = vsel %vm654, %v526, 0.0
  %v719 = vadd.f32 %v717, %v718
  %v720 = vsel %vm654, %v529, 0.0
  %v721 = vadd.f32 %v719, %v720
  %v722 = vsel %vm654, %v534, 0.0
  %v723 = vadd.f32 %v721, %v722
  %v724 = vsel %vm654, %v537, 0.0
  %v725 = vadd.f32 %v723, %v724
  %v726 = vsel %vm654, %v542, 0.0
  %v727 = vadd.f32 %v725, %v726
  %v728 = vsel %vm654, %v545, 0.0
  %v729 = vadd.f32 %v727, %v728
  %v730 = vsel %vm654, %v550, 0.0
  %v731 = vadd.f32 %v729, %v730
  %v732 = vsel %vm654, %v553, 0.0
  %v733 = vadd.f32 %v731, %v732
  %v734 = vsel %vm654, %v558, 0.0
  %v735 = vadd.f32 %v733, %v734
  %v736 = vsel %vm654, %v561, 0.0
  %v737 = vadd.f32 %v735, %v736
  %v738 = vsel %vm654, %v566, 0.0
  %v739 = vadd.f32 %v737, %v738
  %v740 = vsel %vm654, %v569, 0.0
  %v741 = vadd.f32 %v739, %v740
  %v742 = vsel %vm654, %v574, 0.0
  %v743 = vadd.f32 %v741, %v742
  %v744 = vsel %vm654, %v577, 0.0
  %v745 = vadd.f32 %v743, %v744
  %v746 = vsel %vm654, %v582, 0.0
  %v747 = vadd.f32 %v745, %v746
  %v748 = vsel %vm654, %v585, 0.0
  %v749 = vadd.f32 %v747, %v748
  %v750 = vsel %vm654, %v590, 0.0
  %v751 = vadd.f32 %v749, %v750
  %v752 = vsel %vm654, %v593, 0.0
  %v753 = vadd.f32 %v751, %v752
  %v754 = vsel %vm654, %v598, 0.0
  %v755 = vadd.f32 %v753, %v754
  %v756 = vsel %vm654, %v601, 0.0
  %v757 = vadd.f32 %v755, %v756
  %v758 = vsel %vm654, %v606, 0.0
  %v759 = vadd.f32 %v757, %v758
  %v760 = vsel %vm654, %v609, 0.0
  %v761 = vadd.f32 %v759, %v760
  %v762 = vsel %vm654, %v614, 0.0
  %v763 = vadd.f32 %v761, %v762
  %v764 = vsel %vm654, %v617, 0.0
  %v765 = vadd.f32 %v763, %v764
  %v766 = vsel %vm654, %v622, 0.0
  %v767 = vadd.f32 %v765, %v766
  %v768 = vsel %vm654, %v625, 0.0
  %v769 = vadd.f32 %v767, %v768
  %v770 = vsel %vm654, %v630, 0.0
  %v771 = vadd.f32 %v769, %v770
  %v772 = vsel %vm654, %v633, 0.0
  %v773 = vadd.f32 %v771, %v772
  %v774 = vsel %vm654, %v638, 0.0
  %v775 = vadd.f32 %v773, %v774
  %v776 = vsel %vm654, %v641, 0.0
  %v777 = vadd.f32 %v775, %v776
  %v778 = vsel %vm654, %v646, 0.0
  %v779 = vadd.f32 %v777, %v778
  %v780 = vsel %vm654, %v649, 0.0
  %v781 = vadd.f32 %v779, %v780
  %v782 = vrot.slane %v781, 4
  %v783 = vadd.f32 %v781, %v782
  %v784 = vrot.slane %v783, 2
  %v785 = vadd.f32 %v783, %v784
  %v786 = vrot.slane %v785, 1
  %v787 = vadd.f32 %v785, %v786
  %v788 = vmul.f32 %v787, 0.001953125
  %v789 = vmul.f32 %v398, %v398
  %v790 = vmul.f32 %v401, %v401
  %v791 = vmul.f32 %v406, %v406
  %v792 = vmul.f32 %v409, %v409
  %v793 = vmul.f32 %v414, %v414
  %v794 = vmul.f32 %v417, %v417
  %v795 = vmul.f32 %v422, %v422
  %v796 = vmul.f32 %v425, %v425
  %v797 = vmul.f32 %v430, %v430
  %v798 = vmul.f32 %v433, %v433
  %v799 = vmul.f32 %v438, %v438
  %v800 = vmul.f32 %v441, %v441
  %v801 = vmul.f32 %v446, %v446
  %v802 = vmul.f32 %v449, %v449
  %v803 = vmul.f32 %v454, %v454
  %v804 = vmul.f32 %v457, %v457
  %v805 = vmul.f32 %v462, %v462
  %v806 = vmul.f32 %v465, %v465
  %v807 = vmul.f32 %v470, %v470
  %v808 = vmul.f32 %v473, %v473
  %v809 = vmul.f32 %v478, %v478
  %v810 = vmul.f32 %v481, %v481
  %v811 = vmul.f32 %v486, %v486
  %v812 = vmul.f32 %v489, %v489
  %v813 = vmul.f32 %v494, %v494
  %v814 = vmul.f32 %v497, %v497
  %v815 = vmul.f32 %v502, %v502
  %v816 = vmul.f32 %v505, %v505
  %v817 = vmul.f32 %v510, %v510
  %v818 = vmul.f32 %v513, %v513
  %v819 = vmul.f32 %v518, %v518
  %v820 = vmul.f32 %v521, %v521
  %v821 = vmul.f32 %v526, %v526
  %v822 = vmul.f32 %v529, %v529
  %v823 = vmul.f32 %v534, %v534
  %v824 = vmul.f32 %v537, %v537
  %v825 = vmul.f32 %v542, %v542
  %v826 = vmul.f32 %v545, %v545
  %v827 = vmul.f32 %v550, %v550
  %v828 = vmul.f32 %v553, %v553
  %v829 = vmul.f32 %v558, %v558
  %v830 = vmul.f32 %v561, %v561
  %v831 = vmul.f32 %v566, %v566
  %v832 = vmul.f32 %v569, %v569
  %v833 = vmul.f32 %v574, %v574
  %v834 = vmul.f32 %v577, %v577
  %v835 = vmul.f32 %v582, %v582
  %v836 = vmul.f32 %v585, %v585
  %v837 = vmul.f32 %v590, %v590
  %v838 = vmul.f32 %v593, %v593
  %v839 = vmul.f32 %v598, %v598
  %v840 = vmul.f32 %v601, %v601
  %v841 = vmul.f32 %v606, %v606
  %v842 = vmul.f32 %v609, %v609
  %v843 = vmul.f32 %v614, %v614
  %v844 = vmul.f32 %v617, %v617
  %v845 = vmul.f32 %v622, %v622
  %v846 = vmul.f32 %v625, %v625
  %v847 = vmul.f32 %v630, %v630
  %v848 = vmul.f32 %v633, %v633
  %v849 = vmul.f32 %v638, %v638
  %v850 = vmul.f32 %v641, %v641
  %v851 = vmul.f32 %v646, %v646
  %v852 = vmul.f32 %v649, %v649
  %v853 = vsel %vm654, %v789, 0.0
  %v854 = vsel %vm654, %v790, 0.0
  %v855 = vadd.f32 %v853, %v854
  %v856 = vsel %vm654, %v791, 0.0
  %v857 = vadd.f32 %v855, %v856
  %v858 = vsel %vm654, %v792, 0.0
  %v859 = vadd.f32 %v857, %v858
  %v860 = vsel %vm654, %v793, 0.0
  %v861 = vadd.f32 %v859, %v860
  %v862 = vsel %vm654, %v794, 0.0
  %v863 = vadd.f32 %v861, %v862
  %v864 = vsel %vm654, %v795, 0.0
  %v865 = vadd.f32 %v863, %v864
  %v866 = vsel %vm654, %v796, 0.0
  %v867 = vadd.f32 %v865, %v866
  %v868 = vsel %vm654, %v797, 0.0
  %v869 = vadd.f32 %v867, %v868
  %v870 = vsel %vm654, %v798, 0.0
  %v871 = vadd.f32 %v869, %v870
  %v872 = vsel %vm654, %v799, 0.0
  %v873 = vadd.f32 %v871, %v872
  %v874 = vsel %vm654, %v800, 0.0
  %v875 = vadd.f32 %v873, %v874
  %v876 = vsel %vm654, %v801, 0.0
  %v877 = vadd.f32 %v875, %v876
  %v878 = vsel %vm654, %v802, 0.0
  %v879 = vadd.f32 %v877, %v878
  %v880 = vsel %vm654, %v803, 0.0
  %v881 = vadd.f32 %v879, %v880
  %v882 = vsel %vm654, %v804, 0.0
  %v883 = vadd.f32 %v881, %v882
  %v884 = vsel %vm654, %v805, 0.0
  %v885 = vadd.f32 %v883, %v884
  %v886 = vsel %vm654, %v806, 0.0
  %v887 = vadd.f32 %v885, %v886
  %v888 = vsel %vm654, %v807, 0.0
  %v889 = vadd.f32 %v887, %v888
  %v890 = vsel %vm654, %v808, 0.0
  %v891 = vadd.f32 %v889, %v890
  %v892 = vsel %vm654, %v809, 0.0
  %v893 = vadd.f32 %v891, %v892
  %v894 = vsel %vm654, %v810, 0.0
  %v895 = vadd.f32 %v893, %v894
  %v896 = vsel %vm654, %v811, 0.0
  %v897 = vadd.f32 %v895, %v896
  %v898 = vsel %vm654, %v812, 0.0
  %v899 = vadd.f32 %v897, %v898
  %v900 = vsel %vm654, %v813, 0.0
  %v901 = vadd.f32 %v899, %v900
  %v902 = vsel %vm654, %v814, 0.0
  %v903 = vadd.f32 %v901, %v902
  %v904 = vsel %vm654, %v815, 0.0
  %v905 = vadd.f32 %v903, %v904
  %v906 = vsel %vm654, %v816, 0.0
  %v907 = vadd.f32 %v905, %v906
  %v908 = vsel %vm654, %v817, 0.0
  %v909 = vadd.f32 %v907, %v908
  %v910 = vsel %vm654, %v818, 0.0
  %v911 = vadd.f32 %v909, %v910
  %v912 = vsel %vm654, %v819, 0.0
  %v913 = vadd.f32 %v911, %v912
  %v914 = vsel %vm654, %v820, 0.0
  %v915 = vadd.f32 %v913, %v914
  %v916 = vsel %vm654, %v821, 0.0
  %v917 = vadd.f32 %v915, %v916
  %v918 = vsel %vm654, %v822, 0.0
  %v919 = vadd.f32 %v917, %v918
  %v920 = vsel %vm654, %v823, 0.0
  %v921 = vadd.f32 %v919, %v920
  %v922 = vsel %vm654, %v824, 0.0
  %v923 = vadd.f32 %v921, %v922
  %v924 = vsel %vm654, %v825, 0.0
  %v925 = vadd.f32 %v923, %v924
  %v926 = vsel %vm654, %v826, 0.0
  %v927 = vadd.f32 %v925, %v926
  %v928 = vsel %vm654, %v827, 0.0
  %v929 = vadd.f32 %v927, %v928
  %v930 = vsel %vm654, %v828, 0.0
  %v931 = vadd.f32 %v929, %v930
  %v932 = vsel %vm654, %v829, 0.0
  %v933 = vadd.f32 %v931, %v932
  %v934 = vsel %vm654, %v830, 0.0
  %v935 = vadd.f32 %v933, %v934
  %v936 = vsel %vm654, %v831, 0.0
  %v937 = vadd.f32 %v935, %v936
  %v938 = vsel %vm654, %v832, 0.0
  %v939 = vadd.f32 %v937, %v938
  %v940 = vsel %vm654, %v833, 0.0
  %v941 = vadd.f32 %v939, %v940
  %v942 = vsel %vm654, %v834, 0.0
  %v943 = vadd.f32 %v941, %v942
  %v944 = vsel %vm654, %v835, 0.0
  %v945 = vadd.f32 %v943, %v944
  %v946 = vsel %vm654, %v836, 0.0
  %v947 = vadd.f32 %v945, %v946
  %v948 = vsel %vm654, %v837, 0.0
  %v949 = vadd.f32 %v947, %v948
  %v950 = vsel %vm654, %v838, 0.0
  %v951 = vadd.f32 %v949, %v950
  %v952 = vsel %vm654, %v839, 0.0
  %v953 = vadd.f32 %v951, %v952
  %v954 = vsel %vm654, %v840, 0.0
  %v955 = vadd.f32 %v953, %v954
  %v956 = vsel %vm654, %v841, 0.0
  %v957 = vadd.f32 %v955, %v956
  %v958 = vsel %vm654, %v842, 0.0
  %v959 = vadd.f32 %v957, %v958
  %v960 = vsel %vm654, %v843, 0.0
  %v961 = vadd.f32 %v959, %v960
  %v962 = vsel %vm654, %v844, 0.0
  %v963 = vadd.f32 %v961, %v962
  %v964 = vsel %vm654, %v845, 0.0
  %v965 = vadd.f32 %v963, %v964
  %v966 = vsel %vm654, %v846, 0.0
  %v967 = vadd.f32 %v965, %v966
  %v968 = vsel %vm654, %v847, 0.0
  %v969 = vadd.f32 %v967, %v968
  %v970 = vsel %vm654, %v848, 0.0
  %v971 = vadd.f32 %v969, %v970
  %v972 = vsel %vm654, %v849, 0.0
  %v973 = vadd.f32 %v971, %v972
  %v974 = vsel %vm654, %v850, 0.0
  %v975 = vadd.f32 %v973, %v974
  %v976 = vsel %vm654, %v851, 0.0
  %v977 = vadd.f32 %v975, %v976
  %v978 = vsel %vm654, %v852, 0.0
  %v979 = vadd.f32 %v977, %v978
  %v980 = vrot.slane %v979, 4
  %v981 = vadd.f32 %v979, %v980
  %v982 = vrot.slane %v981, 2
  %v983 = vadd.f32 %v981, %v982
  %v984 = vrot.slane %v983, 1
  %v985 = vadd.f32 %v983, %v984
  %v986 = vmul.f32 %v985, 0.001953125
  %v987 = vmul.f32 %v788, %v788
  %v988 = vsub.f32 %v986, %v987
  %v989 = vmax.f32 %v988, 0.0
  %v990 = vsub.f32 %v398, %v788
  %v991 = vsub.f32 %v401, %v788
  %v992 = vsub.f32 %v406, %v788
  %v993 = vsub.f32 %v409, %v788
  %v994 = vsub.f32 %v414, %v788
  %v995 = vsub.f32 %v417, %v788
  %v996 = vsub.f32 %v422, %v788
  %v997 = vsub.f32 %v425, %v788
  %v998 = vsub.f32 %v430, %v788
  %v999 = vsub.f32 %v433, %v788
  %v1000 = vsub.f32 %v438, %v788
  %v1001 = vsub.f32 %v441, %v788
  %v1002 = vsub.f32 %v446, %v788
  %v1003 = vsub.f32 %v449, %v788
  %v1004 = vsub.f32 %v454, %v788
  %v1005 = vsub.f32 %v457, %v788
  %v1006 = vsub.f32 %v462, %v788
  %v1007 = vsub.f32 %v465, %v788
  %v1008 = vsub.f32 %v470, %v788
  %v1009 = vsub.f32 %v473, %v788
  %v1010 = vsub.f32 %v478, %v788
  %v1011 = vsub.f32 %v481, %v788
  %v1012 = vsub.f32 %v486, %v788
  %v1013 = vsub.f32 %v489, %v788
  %v1014 = vsub.f32 %v494, %v788
  %v1015 = vsub.f32 %v497, %v788
  %v1016 = vsub.f32 %v502, %v788
  %v1017 = vsub.f32 %v505, %v788
  %v1018 = vsub.f32 %v510, %v788
  %v1019 = vsub.f32 %v513, %v788
  %v1020 = vsub.f32 %v518, %v788
  %v1021 = vsub.f32 %v521, %v788
  %v1022 = vsub.f32 %v526, %v788
  %v1023 = vsub.f32 %v529, %v788
  %v1024 = vsub.f32 %v534, %v788
  %v1025 = vsub.f32 %v537, %v788
  %v1026 = vsub.f32 %v542, %v788
  %v1027 = vsub.f32 %v545, %v788
  %v1028 = vsub.f32 %v550, %v788
  %v1029 = vsub.f32 %v553, %v788
  %v1030 = vsub.f32 %v558, %v788
  %v1031 = vsub.f32 %v561, %v788
  %v1032 = vsub.f32 %v566, %v788
  %v1033 = vsub.f32 %v569, %v788
  %v1034 = vsub.f32 %v574, %v788
  %v1035 = vsub.f32 %v577, %v788
  %v1036 = vsub.f32 %v582, %v788
  %v1037 = vsub.f32 %v585, %v788
  %v1038 = vsub.f32 %v590, %v788
  %v1039 = vsub.f32 %v593, %v788
  %v1040 = vsub.f32 %v598, %v788
  %v1041 = vsub.f32 %v601, %v788
  %v1042 = vsub.f32 %v606, %v788
  %v1043 = vsub.f32 %v609, %v788
  %v1044 = vsub.f32 %v614, %v788
  %v1045 = vsub.f32 %v617, %v788
  %v1046 = vsub.f32 %v622, %v788
  %v1047 = vsub.f32 %v625, %v788
  %v1048 = vsub.f32 %v630, %v788
  %v1049 = vsub.f32 %v633, %v788
  %v1050 = vsub.f32 %v638, %v788
  %v1051 = vsub.f32 %v641, %v788
  %v1052 = vsub.f32 %v646, %v788
  %v1053 = vsub.f32 %v649, %v788
  %v1054 = vadd.f32 %v989, 1e-05
  %v1055 = vrsqrt.pop %v1054
  %v1056 = vmul.f32 %v990, %v1055
  %v1057 = vmul.f32 %v991, %v1055
  %v1058 = vmul.f32 %v992, %v1055
  %v1059 = vmul.f32 %v993, %v1055
  %v1060 = vmul.f32 %v994, %v1055
  %v1061 = vmul.f32 %v995, %v1055
  %v1062 = vmul.f32 %v996, %v1055
  %v1063 = vmul.f32 %v997, %v1055
  %v1064 = vmul.f32 %v998, %v1055
  %v1065 = vmul.f32 %v999, %v1055
  %v1066 = vmul.f32 %v1000, %v1055
  %v1067 = vmul.f32 %v1001, %v1055
  %v1068 = vmul.f32 %v1002, %v1055
  %v1069 = vmul.f32 %v1003, %v1055
  %v1070 = vmul.f32 %v1004, %v1055
  %v1071 = vmul.f32 %v1005, %v1055
  %v1072 = vmul.f32 %v1006, %v1055
  %v1073 = vmul.f32 %v1007, %v1055
  %v1074 = vmul.f32 %v1008, %v1055
  %v1075 = vmul.f32 %v1009, %v1055
  %v1076 = vmul.f32 %v1010, %v1055
  %v1077 = vmul.f32 %v1011, %v1055
  %v1078 = vmul.f32 %v1012, %v1055
  %v1079 = vmul.f32 %v1013, %v1055
  %v1080 = vmul.f32 %v1014, %v1055
  %v1081 = vmul.f32 %v1015, %v1055
  %v1082 = vmul.f32 %v1016, %v1055
  %v1083 = vmul.f32 %v1017, %v1055
  %v1084 = vmul.f32 %v1018, %v1055
  %v1085 = vmul.f32 %v1019, %v1055
  %v1086 = vmul.f32 %v1020, %v1055
  %v1087 = vmul.f32 %v1021, %v1055
  %v1088 = vmul.f32 %v1022, %v1055
  %v1089 = vmul.f32 %v1023, %v1055
  %v1090 = vmul.f32 %v1024, %v1055
  %v1091 = vmul.f32 %v1025, %v1055
  %v1092 = vmul.f32 %v1026, %v1055
  %v1093 = vmul.f32 %v1027, %v1055
  %v1094 = vmul.f32 %v1028, %v1055
  %v1095 = vmul.f32 %v1029, %v1055
  %v1096 = vmul.f32 %v1030, %v1055
  %v1097 = vmul.f32 %v1031, %v1055
  %v1098 = vmul.f32 %v1032, %v1055
  %v1099 = vmul.f32 %v1033, %v1055
  %v1100 = vmul.f32 %v1034, %v1055
  %v1101 = vmul.f32 %v1035, %v1055
  %v1102 = vmul.f32 %v1036, %v1055
  %v1103 = vmul.f32 %v1037, %v1055
  %v1104 = vmul.f32 %v1038, %v1055
  %v1105 = vmul.f32 %v1039, %v1055
  %v1106 = vmul.f32 %v1040, %v1055
  %v1107 = vmul.f32 %v1041, %v1055
  %v1108 = vmul.f32 %v1042, %v1055
  %v1109 = vmul.f32 %v1043, %v1055
  %v1110 = vmul.f32 %v1044, %v1055
  %v1111 = vmul.f32 %v1045, %v1055
  %v1112 = vmul.f32 %v1046, %v1055
  %v1113 = vmul.f32 %v1047, %v1055
  %v1114 = vmul.f32 %v1048, %v1055
  %v1115 = vmul.f32 %v1049, %v1055
  %v1116 = vmul.f32 %v1050, %v1055
  %v1117 = vmul.f32 %v1051, %v1055
  %v1118 = vmul.f32 %v1052, %v1055
  %v1119 = vmul.f32 %v1053, %v1055
  %v1121 = vlaneseq
  %v1122 = vshrl.u32 %v1121, 7
  %v1123 = vsub.s32 0, %v1122
  %v1124 = vrot.slane %v652, %v1123
  %v1126 = vmul.f32 %v1056, %v1124
  %v1127 = vmul.f32 %v1057, %v1124
  %v1128 = vmul.f32 %v1058, %v1124
  %v1129 = vmul.f32 %v1059, %v1124
  %v1130 = vmul.f32 %v1060, %v1124
  %v1131 = vmul.f32 %v1061, %v1124
  %v1132 = vmul.f32 %v1062, %v1124
  %v1133 = vmul.f32 %v1063, %v1124
  %v1134 = vmul.f32 %v1064, %v1124
  %v1135 = vmul.f32 %v1065, %v1124
  %v1136 = vmul.f32 %v1066, %v1124
  %v1137 = vmul.f32 %v1067, %v1124
  %v1138 = vmul.f32 %v1068, %v1124
  %v1139 = vmul.f32 %v1069, %v1124
  %v1140 = vmul.f32 %v1070, %v1124
  %v1141 = vmul.f32 %v1071, %v1124
  %v1142 = vmul.f32 %v1072, %v1124
  %v1143 = vmul.f32 %v1073, %v1124
  %v1144 = vmul.f32 %v1074, %v1124
  %v1145 = vmul.f32 %v1075, %v1124
  %v1146 = vmul.f32 %v1076, %v1124
  %v1147 = vmul.f32 %v1077, %v1124
  %v1148 = vmul.f32 %v1078, %v1124
  %v1149 = vmul.f32 %v1079, %v1124
  %v1150 = vmul.f32 %v1080, %v1124
  %v1151 = vmul.f32 %v1081, %v1124
  %v1152 = vmul.f32 %v1082, %v1124
  %v1153 = vmul.f32 %v1083, %v1124
  %v1154 = vmul.f32 %v1084, %v1124
  %v1155 = vmul.f32 %v1085, %v1124
  %v1156 = vmul.f32 %v1086, %v1124
  %v1157 = vmul.f32 %v1087, %v1124
  %v1158 = vmul.f32 %v1088, %v1124
  %v1159 = vmul.f32 %v1089, %v1124
  %v1160 = vmul.f32 %v1090, %v1124
  %v1161 = vmul.f32 %v1091, %v1124
  %v1162 = vmul.f32 %v1092, %v1124
  %v1163 = vmul.f32 %v1093, %v1124
  %v1164 = vmul.f32 %v1094, %v1124
  %v1165 = vmul.f32 %v1095, %v1124
  %v1166 = vmul.f32 %v1096, %v1124
  %v1167 = vmul.f32 %v1097, %v1124
  %v1168 = vmul.f32 %v1098, %v1124
  %v1169 = vmul.f32 %v1099, %v1124
  %v1170 = vmul.f32 %v1100, %v1124
  %v1171 = vmul.f32 %v1101, %v1124
  %v1172 = vmul.f32 %v1102, %v1124
  %v1173 = vmul.f32 %v1103, %v1124
  %v1174 = vmul.f32 %v1104, %v1124
  %v1175 = vmul.f32 %v1105, %v1124
  %v1176 = vmul.f32 %v1106, %v1124
  %v1177 = vmul.f32 %v1107, %v1124
  %v1178 = vmul.f32 %v1108, %v1124
  %v1179 = vmul.f32 %v1109, %v1124
  %v1180 = vmul.f32 %v1110, %v1124
  %v1181 = vmul.f32 %v1111, %v1124
  %v1182 = vmul.f32 %v1112, %v1124
  %v1183 = vmul.f32 %v1113, %v1124
  %v1184 = vmul.f32 %v1114, %v1124
  %v1185 = vmul.f32 %v1115, %v1124
  %v1186 = vmul.f32 %v1116, %v1124
  %v1187 = vmul.f32 %v1117, %v1124
  %v1188 = vmul.f32 %v1118, %v1124
  %v1189 = vmul.f32 %v1119, %v1124
  %v1191 = vlaneseq
  %v1192 = vshrl.u32 %v1191, 7
  %v1193 = vsub.s32 0, %v1192
  %v1194 = vrot.slane %v653, %v1193
  %v1196 = vadd.f32 %v1126, %v1194
  %v1197 = vadd.f32 %v1127, %v1194
  %v1198 = vadd.f32 %v1128, %v1194
  %v1199 = vadd.f32 %v1129, %v1194
  %v1200 = vadd.f32 %v1130, %v1194
  %v1201 = vadd.f32 %v1131, %v1194
  %v1202 = vadd.f32 %v1132, %v1194
  %v1203 = vadd.f32 %v1133, %v1194
  %v1204 = vadd.f32 %v1134, %v1194
  %v1205 = vadd.f32 %v1135, %v1194
  %v1206 = vadd.f32 %v1136, %v1194
  %v1207 = vadd.f32 %v1137, %v1194
  %v1208 = vadd.f32 %v1138, %v1194
  %v1209 = vadd.f32 %v1139, %v1194
  %v1210 = vadd.f32 %v1140, %v1194
  %v1211 = vadd.f32 %v1141, %v1194
  %v1212 = vadd.f32 %v1142, %v1194
  %v1213 = vadd.f32 %v1143, %v1194
  %v1214 = vadd.f32 %v1144, %v1194
  %v1215 = vadd.f32 %v1145, %v1194
  %v1216 = vadd.f32 %v1146, %v1194
  %v1217 = vadd.f32 %v1147, %v1194
  %v1218 = vadd.f32 %v1148, %v1194
  %v1219 = vadd.f32 %v1149, %v1194
  %v1220 = vadd.f32 %v1150, %v1194
  %v1221 = vadd.f32 %v1151, %v1194
  %v1222 = vadd.f32 %v1152, %v1194
  %v1223 = vadd.f32 %v1153, %v1194
  %v1224 = vadd.f32 %v1154, %v1194
  %v1225 = vadd.f32 %v1155, %v1194
  %v1226 = vadd.f32 %v1156, %v1194
  %v1227 = vadd.f32 %v1157, %v1194
  %v1228 = vadd.f32 %v1158, %v1194
  %v1229 = vadd.f32 %v1159, %v1194
  %v1230 = vadd.f32 %v1160, %v1194
  %v1231 = vadd.f32 %v1161, %v1194
  %v1232 = vadd.f32 %v1162, %v1194
  %v1233 = vadd.f32 %v1163, %v1194
  %v1234 = vadd.f32 %v1164, %v1194
  %v1235 = vadd.f32 %v1165, %v1194
  %v1236 = vadd.f32 %v1166, %v1194
  %v1237 = vadd.f32 %v1167, %v1194
  %v1238 = vadd.f32 %v1168, %v1194
  %v1239 = vadd.f32 %v1169, %v1194
  %v1240 = vadd.f32 %v1170, %v1194
  %v1241 = vadd.f32 %v1171, %v1194
  %v1242 = vadd.f32 %v1172, %v1194
  %v1243 = vadd.f32 %v1173, %v1194
  %v1244 = vadd.f32 %v1174, %v1194
  %v1245 = vadd.f32 %v1175, %v1194
  %v1246 = vadd.f32 %v1176, %v1194
  %v1247 = vadd.f32 %v1177, %v1194
  %v1248 = vadd.f32 %v1178, %v1194
  %v1249 = vadd.f32 %v1179, %v1194
  %v1250 = vadd.f32 %v1180, %v1194
  %v1251 = vadd.f32 %v1181, %v1194
  %v1252 = vadd.f32 %v1182, %v1194
  %v1253 = vadd.f32 %v1183, %v1194
  %v1254 = vadd.f32 %v1184, %v1194
  %v1255 = vadd.f32 %v1185, %v1194
  %v1256 = vadd.f32 %v1186, %v1194
  %v1257 = vadd.f32 %v1187, %v1194
  %v1258 = vadd.f32 %v1188, %v1194
  %v1259 = vadd.f32 %v1189, %v1194
  %vm1260 = vcmp.ge.f32.partialorder %v1196, 0.0
  %vm1261 = vcmp.ge.f32.partialorder %v1197, 0.0
  %vm1262 = vcmp.ge.f32.partialorder %v1198, 0.0
  %vm1263 = vcmp.ge.f32.partialorder %v1199, 0.0
  %vm1264 = vcmp.ge.f32.partialorder %v1200, 0.0
  %vm1265 = vcmp.ge.f32.partialorder %v1201, 0.0
  %vm1266 = vcmp.ge.f32.partialorder %v1202, 0.0
  %vm1267 = vcmp.ge.f32.partialorder %v1203, 0.0
  %vm1268 = vcmp.ge.f32.partialorder %v1204, 0.0
  %vm1269 = vcmp.ge.f32.partialorder %v1205, 0.0
  %vm1270 = vcmp.ge.f32.partialorder %v1206, 0.0
  %vm1271 = vcmp.ge.f32.partialorder %v1207, 0.0
  %vm1272 = vcmp.ge.f32.partialorder %v1208, 0.0
  %vm1273 = vcmp.ge.f32.partialorder %v1209, 0.0
  %vm1274 = vcmp.ge.f32.partialorder %v1210, 0.0
  %vm1275 = vcmp.ge.f32.partialorder %v1211, 0.0
  %vm1276 = vcmp.ge.f32.partialorder %v1212, 0.0
  %vm1277 = vcmp.ge.f32.partialorder %v1213, 0.0
  %vm1278 = vcmp.ge.f32.partialorder %v1214, 0.0
  %vm1279 = vcmp.ge.f32.partialorder %v1215, 0.0
  %vm1280 = vcmp.ge.f32.partialorder %v1216, 0.0
  %vm1281 = vcmp.ge.f32.partialorder %v1217, 0.0
  %vm1282 = vcmp.ge.f32.partialorder %v1218, 0.0
  %vm1283 = vcmp.ge.f32.partialorder %v1219, 0.0
  %vm1284 = vcmp.ge.f32.partialorder %v1220, 0.0
  %vm1285 = vcmp.ge.f32.partialorder %v1221, 0.0
  %vm1286 = vcmp.ge.f32.partialorder %v1222, 0.0
  %vm1287 = vcmp.ge.f32.partialorder %v1223, 0.0
  %vm1288 = vcmp.ge.f32.partialorder %v1224, 0.0
  %vm1289 = vcmp.ge.f32.partialorder %v1225, 0.0
  %vm1290 = vcmp.ge.f32.partialorder %v1226, 0.0
  %vm1291 = vcmp.ge.f32.partialorder %v1227, 0.0
  %vm1292 = vcmp.ge.f32.partialorder %v1228, 0.0
  %vm1293 = vcmp.ge.f32.partialorder %v1229, 0.0
  %vm1294 = vcmp.ge.f32.partialorder %v1230, 0.0
  %vm1295 = vcmp.ge.f32.partialorder %v1231, 0.0
  %vm1296 = vcmp.ge.f32.partialorder %v1232, 0.0
  %vm1297 = vcmp.ge.f32.partialorder %v1233, 0.0
  %vm1298 = vcmp.ge.f32.partialorder %v1234, 0.0
  %vm1299 = vcmp.ge.f32.partialorder %v1235, 0.0
  %vm1300 = vcmp.ge.f32.partialorder %v1236, 0.0
  %vm1301 = vcmp.ge.f32.partialorder %v1237, 0.0
  %vm1302 = vcmp.ge.f32.partialorder %v1238, 0.0
  %vm1303 = vcmp.ge.f32.partialorder %v1239, 0.0
  %vm1304 = vcmp.ge.f32.partialorder %v1240, 0.0
  %vm1305 = vcmp.ge.f32.partialorder %v1241, 0.0
  %vm1306 = vcmp.ge.f32.partialorder %v1242, 0.0
  %vm1307 = vcmp.ge.f32.partialorder %v1243, 0.0
  %vm1308 = vcmp.ge.f32.partialorder %v1244, 0.0
  %vm1309 = vcmp.ge.f32.partialorder %v1245, 0.0
  %vm1310 = vcmp.ge.f32.partialorder %v1246, 0.0
  %vm1311 = vcmp.ge.f32.partialorder %v1247, 0.0
  %vm1312 = vcmp.ge.f32.partialorder %v1248, 0.0
  %vm1313 = vcmp.ge.f32.partialorder %v1249, 0.0
  %vm1314 = vcmp.ge.f32.partialorder %v1250, 0.0
  %vm1315 = vcmp.ge.f32.partialorder %v1251, 0.0
  %vm1316 = vcmp.ge.f32.partialorder %v1252, 0.0
  %vm1317 = vcmp.ge.f32.partialorder %v1253, 0.0
  %vm1318 = vcmp.ge.f32.partialorder %v1254, 0.0
  %vm1319 = vcmp.ge.f32.partialorder %v1255, 0.0
  %vm1320 = vcmp.ge.f32.partialorder %v1256, 0.0
  %vm1321 = vcmp.ge.f32.partialorder %v1257, 0.0
  %vm1322 = vcmp.ge.f32.partialorder %v1258, 0.0
  %vm1323 = vcmp.ge.f32.partialorder %v1259, 0.0
  %v1324 = vmul.f32 %v1196, 0.2
  %v1325 = vmul.f32 %v1197, 0.2
  %v1326 = vmul.f32 %v1198, 0.2
  %v1327 = vmul.f32 %v1199, 0.2
  %v1328 = vmul.f32 %v1200, 0.2
  %v1329 = vmul.f32 %v1201, 0.2
  %v1330 = vmul.f32 %v1202, 0.2
  %v1331 = vmul.f32 %v1203, 0.2
  %v1332 = vmul.f32 %v1204, 0.2
  %v1333 = vmul.f32 %v1205, 0.2
  %v1334 = vmul.f32 %v1206, 0.2
  %v1335 = vmul.f32 %v1207, 0.2
  %v1336 = vmul.f32 %v1208, 0.2
  %v1337 = vmul.f32 %v1209, 0.2
  %v1338 = vmul.f32 %v1210, 0.2
  %v1339 = vmul.f32 %v1211, 0.2
  %v1340 = vmul.f32 %v1212, 0.2
  %v1341 = vmul.f32 %v1213, 0.2
  %v1342 = vmul.f32 %v1214, 0.2
  %v1343 = vmul.f32 %v1215, 0.2
  %v1344 = vmul.f32 %v1216, 0.2
  %v1345 = vmul.f32 %v1217, 0.2
  %v1346 = vmul.f32 %v1218, 0.2
  %v1347 = vmul.f32 %v1219, 0.2
  %v1348 = vmul.f32 %v1220, 0.2
  %v1349 = vmul.f32 %v1221, 0.2
  %v1350 = vmul.f32 %v1222, 0.2
  %v1351 = vmul.f32 %v1223, 0.2
  %v1352 = vmul.f32 %v1224, 0.2
  %v1353 = vmul.f32 %v1225, 0.2
  %v1354 = vmul.f32 %v1226, 0.2
  %v1355 = vmul.f32 %v1227, 0.2
  %v1356 = vmul.f32 %v1228, 0.2
  %v1357 = vmul.f32 %v1229, 0.2
  %v1358 = vmul.f32 %v1230, 0.2
  %v1359 = vmul.f32 %v1231, 0.2
  %v1360 = vmul.f32 %v1232, 0.2
  %v1361 = vmul.f32 %v1233, 0.2
  %v1362 = vmul.f32 %v1234, 0.2
  %v1363 = vmul.f32 %v1235, 0.2
  %v1364 = vmul.f32 %v1236, 0.2
  %v1365 = vmul.f32 %v1237, 0.2
  %v1366 = vmul.f32 %v1238, 0.2
  %v1367 = vmul.f32 %v1239, 0.2
  %v1368 = vmul.f32 %v1240, 0.2
  %v1369 = vmul.f32 %v1241, 0.2
  %v1370 = vmul.f32 %v1242, 0.2
  %v1371 = vmul.f32 %v1243, 0.2
  %v1372 = vmul.f32 %v1244, 0.2
  %v1373 = vmul.f32 %v1245, 0.2
  %v1374 = vmul.f32 %v1246, 0.2
  %v1375 = vmul.f32 %v1247, 0.2
  %v1376 = vmul.f32 %v1248, 0.2
  %v1377 = vmul.f32 %v1249, 0.2
  %v1378 = vmul.f32 %v1250, 0.2
  %v1379 = vmul.f32 %v1251, 0.2
  %v1380 = vmul.f32 %v1252, 0.2
  %v1381 = vmul.f32 %v1253, 0.2
  %v1382 = vmul.f32 %v1254, 0.2
  %v1383 = vmul.f32 %v1255, 0.2
  %v1384 = vmul.f32 %v1256, 0.2
  %v1385 = vmul.f32 %v1257, 0.2
  %v1386 = vmul.f32 %v1258, 0.2
  %v1387 = vmul.f32 %v1259, 0.2
  %v1388 = vsel %vm1260, %v1196, %v1324
  %v1389 = vsel %vm1261, %v1197, %v1325
  %v1390 = vsel %vm1262, %v1198, %v1326
  %v1391 = vsel %vm1263, %v1199, %v1327
  %v1392 = vsel %vm1264, %v1200, %v1328
  %v1393 = vsel %vm1265, %v1201, %v1329
  %v1394 = vsel %vm1266, %v1202, %v1330
  %v1395 = vsel %vm1267, %v1203, %v1331
  %v1396 = vsel %vm1268, %v1204, %v1332
  %v1397 = vsel %vm1269, %v1205, %v1333
  %v1398 = vsel %vm1270, %v1206, %v1334
  %v1399 = vsel %vm1271, %v1207, %v1335
  %v1400 = vsel %vm1272, %v1208, %v1336
  %v1401 = vsel %vm1273, %v1209, %v1337
  %v1402 = vsel %vm1274, %v1210, %v1338
  %v1403 = vsel %vm1275, %v1211, %v1339
  %v1404 = vsel %vm1276, %v1212, %v1340
  %v1405 = vsel %vm1277, %v1213, %v1341
  %v1406 = vsel %vm1278, %v1214, %v1342
  %v1407 = vsel %vm1279, %v1215, %v1343
  %v1408 = vsel %vm1280, %v1216, %v1344
  %v1409 = vsel %vm1281, %v1217, %v1345
  %v1410 = vsel %vm1282, %v1218, %v1346
  %v1411 = vsel %vm1283, %v1219, %v1347
  %v1412 = vsel %vm1284, %v1220, %v1348
  %v1413 = vsel %vm1285, %v1221, %v1349
  %v1414 = vsel %vm1286, %v1222, %v1350
  %v1415 = vsel %vm1287, %v1223, %v1351
  %v1416 = vsel %vm1288, %v1224, %v1352
  %v1417 = vsel %vm1289, %v1225, %v1353
  %v1418 = vsel %vm1290, %v1226, %v1354
  %v1419 = vsel %vm1291, %v1227, %v1355
  %v1420 = vsel %vm1292, %v1228, %v1356
  %v1421 = vsel %vm1293, %v1229, %v1357
  %v1422 = vsel %vm1294, %v1230, %v1358
  %v1423 = vsel %vm1295, %v1231, %v1359
  %v1424 = vsel %vm1296, %v1232, %v1360
  %v1425 = vsel %vm1297, %v1233, %v1361
  %v1426 = vsel %vm1298, %v1234, %v1362
  %v1427 = vsel %vm1299, %v1235, %v1363
  %v1428 = vsel %vm1300, %v1236, %v1364
  %v1429 = vsel %vm1301, %v1237, %v1365
  %v1430 = vsel %vm1302, %v1238, %v1366
  %v1431 = vsel %vm1303, %v1239, %v1367
  %v1432 = vsel %vm1304, %v1240, %v1368
  %v1433 = vsel %vm1305, %v1241, %v1369
  %v1434 = vsel %vm1306, %v1242, %v1370
  %v1435 = vsel %vm1307, %v1243, %v1371
  %v1436 = vsel %vm1308, %v1244, %v1372
  %v1437 = vsel %vm1309, %v1245, %v1373
  %v1438 = vsel %vm1310, %v1246, %v1374
  %v1439 = vsel %vm1311, %v1247, %v1375
  %v1440 = vsel %vm1312, %v1248, %v1376
  %v1441 = vsel %vm1313, %v1249, %v1377
  %v1442 = vsel %vm1314, %v1250, %v1378
  %v1443 = vsel %vm1315, %v1251, %v1379
  %v1444 = vsel %vm1316, %v1252, %v1380
  %v1445 = vsel %vm1317, %v1253, %v1381
  %v1446 = vsel %vm1318, %v1254, %v1382
  %v1447 = vsel %vm1319, %v1255, %v1383
  %v1448 = vsel %vm1320, %v1256, %v1384
  %v1449 = vsel %vm1321, %v1257, %v1385
  %v1450 = vsel %vm1322, %v1258, %v1386
  %v1451 = vsel %vm1323, %v1259, %v1387
  %v1452 = vpack.c.bf16 %v1389, %v1388
  %v1453 = vpack.c.bf16 %v1391, %v1390
  %v1454 = vpack.c.bf16 %v1393, %v1392
  %v1455 = vpack.c.bf16 %v1395, %v1394
  %v1456 = vpack.c.bf16 %v1397, %v1396
  %v1457 = vpack.c.bf16 %v1399, %v1398
  %v1458 = vpack.c.bf16 %v1401, %v1400
  %v1459 = vpack.c.bf16 %v1403, %v1402
  %v1460 = vpack.c.bf16 %v1405, %v1404
  %v1461 = vpack.c.bf16 %v1407, %v1406
  %v1462 = vpack.c.bf16 %v1409, %v1408
  %v1463 = vpack.c.bf16 %v1411, %v1410
  %v1464 = vpack.c.bf16 %v1413, %v1412
  %v1465 = vpack.c.bf16 %v1415, %v1414
  %v1466 = vpack.c.bf16 %v1417, %v1416
  %v1467 = vpack.c.bf16 %v1419, %v1418
  %v1468 = vpack.c.bf16 %v1421, %v1420
  %v1469 = vpack.c.bf16 %v1423, %v1422
  %v1470 = vpack.c.bf16 %v1425, %v1424
  %v1471 = vpack.c.bf16 %v1427, %v1426
  %v1472 = vpack.c.bf16 %v1429, %v1428
  %v1473 = vpack.c.bf16 %v1431, %v1430
  %v1474 = vpack.c.bf16 %v1433, %v1432
  %v1475 = vpack.c.bf16 %v1435, %v1434
  %v1476 = vpack.c.bf16 %v1437, %v1436
  %v1477 = vpack.c.bf16 %v1439, %v1438
  %v1478 = vpack.c.bf16 %v1441, %v1440
  %v1479 = vpack.c.bf16 %v1443, %v1442
  %v1480 = vpack.c.bf16 %v1445, %v1444
  %v1481 = vpack.c.bf16 %v1447, %v1446
  %v1482 = vpack.c.bf16 %v1449, %v1448
  %v1483 = vpack.c.bf16 %v1451, %v1450
  %v1516 = vunpack.c.l.b16 %v1452
  %v1517 = vunpack.c.h.b16 %v1452
  %v1518 = vunpack.c.l.b16 %v1453
  %v1519 = vunpack.c.h.b16 %v1453
  %v1520 = vunpack.c.l.b16 %v1454
  %v1521 = vunpack.c.h.b16 %v1454
  %v1522 = vunpack.c.l.b16 %v1455
  %v1523 = vunpack.c.h.b16 %v1455
  %v1524 = vunpack.c.l.b16 %v1456
  %v1525 = vunpack.c.h.b16 %v1456
  %v1526 = vunpack.c.l.b16 %v1457
  %v1527 = vunpack.c.h.b16 %v1457
  %v1528 = vunpack.c.l.b16 %v1458
  %v1529 = vunpack.c.h.b16 %v1458
  %v1530 = vunpack.c.l.b16 %v1459
  %v1531 = vunpack.c.h.b16 %v1459
  %v1532 = vunpack.c.l.b16 %v1460
  %v1533 = vunpack.c.h.b16 %v1460
  %v1534 = vunpack.c.l.b16 %v1461
  %v1535 = vunpack.c.h.b16 %v1461
  %v1536 = vunpack.c.l.b16 %v1462
  %v1537 = vunpack.c.h.b16 %v1462
  %v1538 = vunpack.c.l.b16 %v1463
  %v1539 = vunpack.c.h.b16 %v1463
  %v1540 = vunpack.c.l.b16 %v1464
  %v1541 = vunpack.c.h.b16 %v1464
  %v1542 = vunpack.c.l.b16 %v1465
  %v1543 = vunpack.c.h.b16 %v1465
  %v1544 = vunpack.c.l.b16 %v1466
  %v1545 = vunpack.c.h.b16 %v1466
  %v1546 = vunpack.c.l.b16 %v1467
  %v1547 = vunpack.c.h.b16 %v1467
  %v1548 = vunpack.c.l.b16 %v1468
  %v1549 = vunpack.c.h.b16 %v1468
  %v1550 = vunpack.c.l.b16 %v1469
  %v1551 = vunpack.c.h.b16 %v1469
  %v1552 = vunpack.c.l.b16 %v1470
  %v1553 = vunpack.c.h.b16 %v1470
  %v1554 = vunpack.c.l.b16 %v1471
  %v1555 = vunpack.c.h.b16 %v1471
  %v1556 = vunpack.c.l.b16 %v1472
  %v1557 = vunpack.c.h.b16 %v1472
  %v1558 = vunpack.c.l.b16 %v1473
  %v1559 = vunpack.c.h.b16 %v1473
  %v1560 = vunpack.c.l.b16 %v1474
  %v1561 = vunpack.c.h.b16 %v1474
  %v1562 = vunpack.c.l.b16 %v1475
  %v1563 = vunpack.c.h.b16 %v1475
  %v1564 = vunpack.c.l.b16 %v1476
  %v1565 = vunpack.c.h.b16 %v1476
  %v1566 = vunpack.c.l.b16 %v1477
  %v1567 = vunpack.c.h.b16 %v1477
  %v1568 = vunpack.c.l.b16 %v1478
  %v1569 = vunpack.c.h.b16 %v1478
  %v1570 = vunpack.c.l.b16 %v1479
  %v1571 = vunpack.c.h.b16 %v1479
  %v1572 = vunpack.c.l.b16 %v1480
  %v1573 = vunpack.c.h.b16 %v1480
  %v1574 = vunpack.c.l.b16 %v1481
  %v1575 = vunpack.c.h.b16 %v1481
  %v1576 = vunpack.c.l.b16 %v1482
  %v1577 = vunpack.c.h.b16 %v1482
  %v1578 = vunpack.c.l.b16 %v1483
  %v1579 = vunpack.c.h.b16 %v1483
  %v1580 = vpack.c.b16 %v1516, %v1516
  %v1581 = vpack.c.b16 %v1517, %v1517
  %v1582 = vpack.c.b16 %v1518, %v1518
  %v1583 = vpack.c.b16 %v1519, %v1519
  %v1584 = vpack.c.b16 %v1520, %v1520
  %v1585 = vpack.c.b16 %v1521, %v1521
  %v1586 = vpack.c.b16 %v1522, %v1522
  %v1587 = vpack.c.b16 %v1523, %v1523
  %v1588 = vpack.c.b16 %v1524, %v1524
  %v1589 = vpack.c.b16 %v1525, %v1525
  %v1590 = vpack.c.b16 %v1526, %v1526
  %v1591 = vpack.c.b16 %v1527, %v1527
  %v1592 = vpack.c.b16 %v1528, %v1528
  %v1593 = vpack.c.b16 %v1529, %v1529
  %v1594 = vpack.c.b16 %v1530, %v1530
  %v1595 = vpack.c.b16 %v1531, %v1531
  %v1596 = vpack.c.b16 %v1532, %v1532
  %v1597 = vpack.c.b16 %v1533, %v1533
  %v1598 = vpack.c.b16 %v1534, %v1534
  %v1599 = vpack.c.b16 %v1535, %v1535
  %v1600 = vpack.c.b16 %v1536, %v1536
  %v1601 = vpack.c.b16 %v1537, %v1537
  %v1602 = vpack.c.b16 %v1538, %v1538
  %v1603 = vpack.c.b16 %v1539, %v1539
  %v1604 = vpack.c.b16 %v1540, %v1540
  %v1605 = vpack.c.b16 %v1541, %v1541
  %v1606 = vpack.c.b16 %v1542, %v1542
  %v1607 = vpack.c.b16 %v1543, %v1543
  %v1608 = vpack.c.b16 %v1544, %v1544
  %v1609 = vpack.c.b16 %v1545, %v1545
  %v1610 = vpack.c.b16 %v1546, %v1546
  %v1611 = vpack.c.b16 %v1547, %v1547
  %v1612 = vpack.c.b16 %v1548, %v1548
  %v1613 = vpack.c.b16 %v1549, %v1549
  %v1614 = vpack.c.b16 %v1550, %v1550
  %v1615 = vpack.c.b16 %v1551, %v1551
  %v1616 = vpack.c.b16 %v1552, %v1552
  %v1617 = vpack.c.b16 %v1553, %v1553
  %v1618 = vpack.c.b16 %v1554, %v1554
  %v1619 = vpack.c.b16 %v1555, %v1555
  %v1620 = vpack.c.b16 %v1556, %v1556
  %v1621 = vpack.c.b16 %v1557, %v1557
  %v1622 = vpack.c.b16 %v1558, %v1558
  %v1623 = vpack.c.b16 %v1559, %v1559
  %v1624 = vpack.c.b16 %v1560, %v1560
  %v1625 = vpack.c.b16 %v1561, %v1561
  %v1626 = vpack.c.b16 %v1562, %v1562
  %v1627 = vpack.c.b16 %v1563, %v1563
  %v1628 = vpack.c.b16 %v1564, %v1564
  %v1629 = vpack.c.b16 %v1565, %v1565
  %v1630 = vpack.c.b16 %v1566, %v1566
  %v1631 = vpack.c.b16 %v1567, %v1567
  %v1632 = vpack.c.b16 %v1568, %v1568
  %v1633 = vpack.c.b16 %v1569, %v1569
  %v1634 = vpack.c.b16 %v1570, %v1570
  %v1635 = vpack.c.b16 %v1571, %v1571
  %v1636 = vpack.c.b16 %v1572, %v1572
  %v1637 = vpack.c.b16 %v1573, %v1573
  %v1638 = vpack.c.b16 %v1574, %v1574
  %v1639 = vpack.c.b16 %v1575, %v1575
  %v1640 = vpack.c.b16 %v1576, %v1576
  %v1641 = vpack.c.b16 %v1577, %v1577
  %v1642 = vpack.c.b16 %v1578, %v1578
  %v1643 = vpack.c.b16 %v1579, %v1579
  %vm1708 = vcmask 125952
  %1709 = vst.msk [vmem:[%s4] sm:$0xf] %vm1708, %v1580
  %1710 = vst.msk [vmem:[%s4 + $0x4] sm:$0xf] %vm1708, %v1581
  %1711 = vst.msk [vmem:[%s4 + $0x8] sm:$0xf] %vm1708, %v1582
  %1712 = vst.msk [vmem:[%s4 + $0xc] sm:$0xf] %vm1708, %v1583
  %1713 = vst.msk [vmem:[%s4 + $0x10] sm:$0xf] %vm1708, %v1584
  %1714 = vst.msk [vmem:[%s4 + $0x14] sm:$0xf] %vm1708, %v1585
  %1715 = vst.msk [vmem:[%s4 + $0x18] sm:$0xf] %vm1708, %v1586
  %1716 = vst.msk [vmem:[%s4 + $0x1c] sm:$0xf] %vm1708, %v1587
  %1717 = vst.msk [vmem:[%s4 + $0x20] sm:$0xf] %vm1708, %v1588
  %1718 = vst.msk [vmem:[%s4 + $0x24] sm:$0xf] %vm1708, %v1589
  %1719 = vst.msk [vmem:[%s4 + $0x28] sm:$0xf] %vm1708, %v1590
  %1720 = vst.msk [vmem:[%s4 + $0x2c] sm:$0xf] %vm1708, %v1591
  %1721 = vst.msk [vmem:[%s4 + $0x30] sm:$0xf] %vm1708, %v1592
  %1722 = vst.msk [vmem:[%s4 + $0x34] sm:$0xf] %vm1708, %v1593
  %1723 = vst.msk [vmem:[%s4 + $0x38] sm:$0xf] %vm1708, %v1594
  %1724 = vst.msk [vmem:[%s4 + $0x3c] sm:$0xf] %vm1708, %v1595
  %1725 = vst.msk [vmem:[%s4 + $0x40] sm:$0xf] %vm1708, %v1596
  %1726 = vst.msk [vmem:[%s4 + $0x44] sm:$0xf] %vm1708, %v1597
  %1727 = vst.msk [vmem:[%s4 + $0x48] sm:$0xf] %vm1708, %v1598
  %1728 = vst.msk [vmem:[%s4 + $0x4c] sm:$0xf] %vm1708, %v1599
  %1729 = vst.msk [vmem:[%s4 + $0x50] sm:$0xf] %vm1708, %v1600
  %1730 = vst.msk [vmem:[%s4 + $0x54] sm:$0xf] %vm1708, %v1601
  %1731 = vst.msk [vmem:[%s4 + $0x58] sm:$0xf] %vm1708, %v1602
  %1732 = vst.msk [vmem:[%s4 + $0x5c] sm:$0xf] %vm1708, %v1603
  %1733 = vst.msk [vmem:[%s4 + $0x60] sm:$0xf] %vm1708, %v1604
  %1734 = vst.msk [vmem:[%s4 + $0x64] sm:$0xf] %vm1708, %v1605
  %1735 = vst.msk [vmem:[%s4 + $0x68] sm:$0xf] %vm1708, %v1606
  %1736 = vst.msk [vmem:[%s4 + $0x6c] sm:$0xf] %vm1708, %v1607
  %1737 = vst.msk [vmem:[%s4 + $0x70] sm:$0xf] %vm1708, %v1608
  %1738 = vst.msk [vmem:[%s4 + $0x74] sm:$0xf] %vm1708, %v1609
  %1739 = vst.msk [vmem:[%s4 + $0x78] sm:$0xf] %vm1708, %v1610
  %1740 = vst.msk [vmem:[%s4 + $0x7c] sm:$0xf] %vm1708, %v1611
  %1741 = vst.msk [vmem:[%s4 + $0x80] sm:$0xf] %vm1708, %v1612
  %1742 = vst.msk [vmem:[%s4 + $0x84] sm:$0xf] %vm1708, %v1613
  %1743 = vst.msk [vmem:[%s4 + $0x88] sm:$0xf] %vm1708, %v1614
  %1744 = vst.msk [vmem:[%s4 + $0x8c] sm:$0xf] %vm1708, %v1615
  %1745 = vst.msk [vmem:[%s4 + $0x90] sm:$0xf] %vm1708, %v1616
  %1746 = vst.msk [vmem:[%s4 + $0x94] sm:$0xf] %vm1708, %v1617
  %1747 = vst.msk [vmem:[%s4 + $0x98] sm:$0xf] %vm1708, %v1618
  %1748 = vst.msk [vmem:[%s4 + $0x9c] sm:$0xf] %vm1708, %v1619
  %1749 = vst.msk [vmem:[%s4 + $0xa0] sm:$0xf] %vm1708, %v1620
  %1750 = vst.msk [vmem:[%s4 + $0xa4] sm:$0xf] %vm1708, %v1621
  %1751 = vst.msk [vmem:[%s4 + $0xa8] sm:$0xf] %vm1708, %v1622
  %1752 = vst.msk [vmem:[%s4 + $0xac] sm:$0xf] %vm1708, %v1623
  %1753 = vst.msk [vmem:[%s4 + $0xb0] sm:$0xf] %vm1708, %v1624
  %1754 = vst.msk [vmem:[%s4 + $0xb4] sm:$0xf] %vm1708, %v1625
  %1755 = vst.msk [vmem:[%s4 + $0xb8] sm:$0xf] %vm1708, %v1626
  %1756 = vst.msk [vmem:[%s4 + $0xbc] sm:$0xf] %vm1708, %v1627
  %1757 = vst.msk [vmem:[%s4 + $0xc0] sm:$0xf] %vm1708, %v1628
  %1758 = vst.msk [vmem:[%s4 + $0xc4] sm:$0xf] %vm1708, %v1629
  %1759 = vst.msk [vmem:[%s4 + $0xc8] sm:$0xf] %vm1708, %v1630
  %1760 = vst.msk [vmem:[%s4 + $0xcc] sm:$0xf] %vm1708, %v1631
  %1761 = vst.msk [vmem:[%s4 + $0xd0] sm:$0xf] %vm1708, %v1632
  %1762 = vst.msk [vmem:[%s4 + $0xd4] sm:$0xf] %vm1708, %v1633
  %1763 = vst.msk [vmem:[%s4 + $0xd8] sm:$0xf] %vm1708, %v1634
  %1764 = vst.msk [vmem:[%s4 + $0xdc] sm:$0xf] %vm1708, %v1635
  %1765 = vst.msk [vmem:[%s4 + $0xe0] sm:$0xf] %vm1708, %v1636
  %1766 = vst.msk [vmem:[%s4 + $0xe4] sm:$0xf] %vm1708, %v1637
  %1767 = vst.msk [vmem:[%s4 + $0xe8] sm:$0xf] %vm1708, %v1638
  %1768 = vst.msk [vmem:[%s4 + $0xec] sm:$0xf] %vm1708, %v1639
  %1769 = vst.msk [vmem:[%s4 + $0xf0] sm:$0xf] %vm1708, %v1640
  %1770 = vst.msk [vmem:[%s4 + $0xf4] sm:$0xf] %vm1708, %v1641
  %1771 = vst.msk [vmem:[%s4 + $0xf8] sm:$0xf] %vm1708, %v1642
  %1772 = vst.msk [vmem:[%s4 + $0xfc] sm:$0xf] %vm1708, %v1643
  // Predicated region
  $region18: #{discriminator_forward.3} parent=0 // pred_check
    _
  $region19: #{discriminator_forward.3} parent=0 // pred_check_branch
    %1774 = sbr.rel (0) target = $region21
  $region20: #{discriminator_forward.3} parent=0 // pred_region
    _
  $region21: #{discriminator_forward.3} parent=0 // pred_fallthru
    _
  // Predicated region
  $region22: #{discriminator_forward.3} parent=0 // pred_check
    _
  $region23: #{discriminator_forward.3} parent=0 // pred_check_branch
    %1776 = sbr.rel (0) target = $region25
  $region24: #{discriminator_forward.3} parent=0 // pred_region
    _
  $region25: #{discriminator_forward.3} parent=0 // pred_fallthru
    _

// kernel: discriminator_forward.4
$region0: #{discriminator_forward.4}
  #allocation0 [shape = 'u32[]', space=smem, size = 0x4, offset = 0x4, fixed_abs, tag = 'smem constant byte address 0x4 - core index']
  #allocation1 [shape = 'u32[144,128]{1,0:T(1,128)}', space=vmem, size = 0x12000, scoped, tag = 'internal scratch']
  %s0 = inlined_call_operand.vmem [shape: bf16[144,64], index: 0, kind: input, shape index: {}]
  %s1 = inlined_call_operand.vmem [shape: bf16[144,64], index: 1, kind: input, shape index: {}]
  %s2 = inlined_call_operand.vmem [shape: bf16[4,64,32], index: 2, kind: input, shape index: {}]
  %s3 = inlined_call_operand.vmem [shape: f32[1,32], index: 3, kind: input, shape index: {}]
  %s4 = inlined_call_operand.vmem [shape: f32[1,32], index: 4, kind: input, shape index: {}]
  %s5 = inlined_call_operand.vmem [shape: bf16[128,32], index: 5, kind: output, shape index: {}]
  %s6 = sld [smem:[#allocation0]]
  $region30: #{discriminator_forward.4} parent=0
    _
  %s8 = ssub.s32 1, %s6
  %s9 = scalar_select 0, %s8, %s6
  // Predicated region
  $region2: #{discriminator_forward.4} parent=0 // pred_check
    _
  $region3: #{discriminator_forward.4} parent=0 // pred_check_branch
    %11 = sbr.rel (0) target = $region5
  $region4: #{discriminator_forward.4} parent=0 // pred_region
    _
  $region5: #{discriminator_forward.4} parent=0 // pred_fallthru
    _
  // Predicated region
  $region6: #{discriminator_forward.4} parent=0 // pred_check
    _
  $region7: #{discriminator_forward.4} parent=0 // pred_check_branch
    %13 = sbr.rel (0) target = $region9
  $region8: #{discriminator_forward.4} parent=0 // pred_region
    _
  $region9: #{discriminator_forward.4} parent=0 // pred_fallthru
    _
  // Predicated region
  $region10: #{discriminator_forward.4} parent=0 // pred_check
    _
  $region11: #{discriminator_forward.4} parent=0 // pred_check_branch
    %15 = sbr.rel (0) target = $region13
  $region12: #{discriminator_forward.4} parent=0 // pred_region
    _
  $region13: #{discriminator_forward.4} parent=0 // pred_fallthru
    _
  // Predicated region
  $region14: #{discriminator_forward.4} parent=0 // pred_check
    _
  $region15: #{discriminator_forward.4} parent=0 // pred_check_branch
    %17 = sbr.rel (0) target = $region17
  $region16: #{discriminator_forward.4} parent=0 // pred_region
    _
  $region17: #{discriminator_forward.4} parent=0 // pred_fallthru
    _
  // Predicated region
  $region18: #{discriminator_forward.4} parent=0 // pred_check
    _
  $region19: #{discriminator_forward.4} parent=0 // pred_check_branch
    %19 = sbr.rel (0) target = $region21
  $region20: #{discriminator_forward.4} parent=0 // pred_region
    _
  $region21: #{discriminator_forward.4} parent=0 // pred_fallthru
    _
  %v21 = vld [vmem:[%s0] sm:$0xf]
  %v22 = vld [vmem:[%s0 + $0x4] sm:$0xf]
  %v23 = vld [vmem:[%s0 + $0x8] sm:$0xf]
  %v24 = vld [vmem:[%s0 + $0xc] sm:$0xf]
  %v25 = vld [vmem:[%s0 + $0x10] sm:$0xf]
  %v26 = vld [vmem:[%s0 + $0x14] sm:$0xf]
  %v27 = vld [vmem:[%s0 + $0x18] sm:$0xf]
  %v28 = vld [vmem:[%s0 + $0x1c] sm:$0xf]
  %v29 = vld [vmem:[%s0 + $0x20] sm:$0xf]
  %v30 = vld [vmem:[%s0 + $0x24] sm:$0xf]
  %v31 = vld [vmem:[%s0 + $0x28] sm:$0xf]
  %v32 = vld [vmem:[%s0 + $0x2c] sm:$0xf]
  %v33 = vld [vmem:[%s0 + $0x30] sm:$0xf]
  %v34 = vld [vmem:[%s0 + $0x34] sm:$0xf]
  %v35 = vld [vmem:[%s0 + $0x38] sm:$0xf]
  %v36 = vld [vmem:[%s0 + $0x3c] sm:$0xf]
  %v37 = vld [vmem:[%s2] sm:$0xf]
  %v38 = vld [vmem:[%s2 + $0x4] sm:$0xf]
  %v39 = vld [vmem:[%s2 + $0x8] sm:$0xf]
  %v40 = vld [vmem:[%s2 + $0xc] sm:$0xf]
  %v41 = vld [vmem:[%s2 + $0x10] sm:$0xf]
  %v42 = vld [vmem:[%s2 + $0x14] sm:$0xf]
  %v43 = vld [vmem:[%s2 + $0x18] sm:$0xf]
  %v44 = vld [vmem:[%s2 + $0x1c] sm:$0xf]
  %v45 = vld [vmem:[%s0 + $0x40] sm:$0xf]
  %v46 = vld [vmem:[%s0 + $0x44] sm:$0xf]
  %s47 = scalar_lea.vmem %s2, 32
  %v48 = vld [vmem:[%s47] sm:$0xf]
  %v49 = vld [vmem:[%s47 + $0x4] sm:$0xf]
  %v50 = vld [vmem:[%s47 + $0x8] sm:$0xf]
  %v51 = vld [vmem:[%s47 + $0xc] sm:$0xf]
  %v52 = vld [vmem:[%s47 + $0x10] sm:$0xf]
  %v53 = vld [vmem:[%s47 + $0x14] sm:$0xf]
  %v54 = vld [vmem:[%s47 + $0x18] sm:$0xf]
  %v55 = vld [vmem:[%s47 + $0x1c] sm:$0xf]
  %v72 = vunpack.c.l.b16 %v23
  %v73 = vunpack.c.l.b16 %v24
  %v74 = vunpack.c.l.b16 %v25
  %v75 = vunpack.c.l.b16 %v26
  %v76 = vunpack.c.l.b16 %v27
  %v77 = vunpack.c.l.b16 %v28
  %v78 = vunpack.c.l.b16 %v29
  %v79 = vunpack.c.l.b16 %v30
  %v80 = vunpack.c.l.b16 %v31
  %v81 = vunpack.c.l.b16 %v32
  %v82 = vunpack.c.l.b16 %v33
  %v83 = vunpack.c.l.b16 %v34
  %v84 = vunpack.c.l.b16 %v35
  %v85 = vunpack.c.l.b16 %v36
  %v86 = vunpack.c.l.b16 %v45
  %v87 = vunpack.c.l.b16 %v46
  %v88 = vpack.c.b16 %v73, %v72
  %v89 = vpack.c.b16 %v75, %v74
  %v90 = vpack.c.b16 %v77, %v76
  %v91 = vpack.c.b16 %v79, %v78
  %v92 = vpack.c.b16 %v81, %v80
  %v93 = vpack.c.b16 %v83, %v82
  %v94 = vpack.c.b16 %v85, %v84
  %v95 = vpack.c.b16 %v87, %v86
  %v104 = vunpack.c.l.b16 %v48
  %v105 = vunpack.c.l.b16 %v49
  %v106 = vunpack.c.l.b16 %v50
  %v107 = vunpack.c.l.b16 %v51
  %v108 = vunpack.c.l.b16 %v52
  %v109 = vunpack.c.l.b16 %v53
  %v110 = vunpack.c.l.b16 %v54
  %v111 = vunpack.c.l.b16 %v55
  %v112 = vpack.c.b16 %v105, %v104
  %v113 = vpack.c.b16 %v107, %v106
  %v114 = vpack.c.b16 %v109, %v108
  %v115 = vpack.c.b16 %v111, %v110
  %vm120 = vcmask 523264
  %v122 = vsel %vm120, %v88, 0
  %v125 = vsel %vm120, %v89, 0
  %v128 = vsel %vm120, %v90, 0
  %v131 = vsel %vm120, %v91, 0
  %v134 = vsel %vm120, %v92, 0
  %v137 = vsel %vm120, %v93, 0
  %v140 = vsel %vm120, %v94, 0
  %v143 = vsel %vm120, %v95, 0
  %145 = vmatprep.subr.bf16.mxu0 0
  %146 = vmatpush1.bf16.msra.mxu0 %v112
  %147 = vmatprep.subr.bf16.mxu0 0
  %148 = vmatpush1.bf16.msra.mxu0 %v113
  %149 = vmatprep.subr.bf16.mxu0 0
  %150 = vmatpush1.bf16.msra.mxu0 %v114
  %151 = vmatprep.subr.bf16.mxu0 0
  %152 = vmatpush1.bf16.msra.mxu0 %v115
  %153 = vmatprep.subr.bf16.mxu0 0
  %154 = vmatpush1.bf16.msra.mxu0 0
  %155 = vmatprep.subr.bf16.mxu0 0
  %156 = vmatpush1.bf16.msra.mxu0 0
  %157 = vmatprep.subr.bf16.mxu0 0
  %158 = vmatpush1.bf16.msra.mxu0 0
  %159 = vmatprep.subr.bf16.mxu0 0
  %160 = vmatpush1.bf16.msra.mxu0 0
  %161 = vmatprep.subr.bf16.mxu0 0
  %162 = vmatpush1.bf16.msra.mxu0 0
  %163 = vmatprep.subr.bf16.mxu0 0
  %164 = vmatpush1.bf16.msra.mxu0 0
  %165 = vmatprep.subr.bf16.mxu0 0
  %166 = vmatpush1.bf16.msra.mxu0 0
  %167 = vmatprep.subr.bf16.mxu0 0
  %168 = vmatpush1.bf16.msra.mxu0 0
  %169 = vmatprep.subr.bf16.mxu0 0
  %170 = vmatpush1.bf16.msra.mxu0 0
  %171 = vmatprep.subr.bf16.mxu0 0
  %172 = vmatpush1.bf16.msra.mxu0 0
  %173 = vmatprep.subr.bf16.mxu0 0
  %174 = vmatpush1.bf16.msra.mxu0 0
  %175 = vmatprep.subr.bf16.mxu0 0
  %176 = vmatpush1.bf16.msra.mxu0 0
  %177 = vmatprep.mubr.bf16.mxu0 0
  %178 = vmatmul.mubr.bf16.gmra.mrb[0].mxu0 %v122
  %v179 = vpop.f32.mrb[0].mxu0
  %v180 = vadd.f32 0.0, %v179
  %v181 = vpop.f32.mrb[0].mxu0
  %v182 = vpop.f32.mrb[0].mxu0
  %v183 = vadd.f32 0.0, %v182
  %v184 = vpop.f32.mrb[0].mxu0
  %185 = vmatprep.mubr.bf16.mxu0 0
  %186 = vmatmul.mubr.bf16.gmra.mrb[0].mxu0 %v125
  %v187 = vpop.f32.mrb[0].mxu0
  %v188 = vadd.f32 0.0, %v187
  %v189 = vpop.f32.mrb[0].mxu0
  %v190 = vpop.f32.mrb[0].mxu0
  %v191 = vadd.f32 0.0, %v190
  %v192 = vpop.f32.mrb[0].mxu0
  %193 = vmatprep.mubr.bf16.mxu0 0
  %194 = vmatmul.mubr.bf16.gmra.mrb[0].mxu0 %v128
  %v195 = vpop.f32.mrb[0].mxu0
  %v196 = vadd.f32 0.0, %v195
  %v197 = vpop.f32.mrb[0].mxu0
  %v198 = vpop.f32.mrb[0].mxu0
  %v199 = vadd.f32 0.0, %v198
  %v200 = vpop.f32.mrb[0].mxu0
  %201 = vmatprep.mubr.bf16.mxu0 0
  %202 = vmatmul.mubr.bf16.gmra.mrb[0].mxu0 %v131
  %v203 = vpop.f32.mrb[0].mxu0
  %v204 = vadd.f32 0.0, %v203
  %v205 = vpop.f32.mrb[0].mxu0
  %v206 = vpop.f32.mrb[0].mxu0
  %v207 = vadd.f32 0.0, %v206
  %v208 = vpop.f32.mrb[0].mxu0
  %209 = vmatprep.mubr.bf16.mxu0 0
  %210 = vmatmul.mubr.bf16.gmra.mrb[0].mxu0 %v134
  %v211 = vpop.f32.mrb[0].mxu0
  %v212 = vadd.f32 0.0, %v211
  %v213 = vpop.f32.mrb[0].mxu0
  %v214 = vpop.f32.mrb[0].mxu0
  %v215 = vadd.f32 0.0, %v214
  %v216 = vpop.f32.mrb[0].mxu0
  %217 = vmatprep.mubr.bf16.mxu0 0
  %218 = vmatmul.mubr.bf16.gmra.mrb[0].mxu0 %v137
  %v219 = vpop.f32.mrb[0].mxu0
  %v220 = vadd.f32 0.0, %v219
  %v221 = vpop.f32.mrb[0].mxu0
  %v222 = vpop.f32.mrb[0].mxu0
  %v223 = vadd.f32 0.0, %v222
  %v224 = vpop.f32.mrb[0].mxu0
  %225 = vmatprep.mubr.bf16.mxu0 0
  %226 = vmatmul.mubr.bf16.gmra.mrb[0].mxu0 %v140
  %v227 = vpop.f32.mrb[0].mxu0
  %v228 = vadd.f32 0.0, %v227
  %v229 = vpop.f32.mrb[0].mxu0
  %v230 = vpop.f32.mrb[0].mxu0
  %v231 = vadd.f32 0.0, %v230
  %v232 = vpop.f32.mrb[0].mxu0
  %233 = vmatprep.mubr.bf16.mxu0 0
  %234 = vmatmul.mubr.bf16.gmra.mrb[0].mxu0 %v143
  %v235 = vpop.f32.mrb[0].mxu0
  %v236 = vadd.f32 0.0, %v235
  %v237 = vpop.f32.mrb[0].mxu0
  %v238 = vpop.f32.mrb[0].mxu0
  %v239 = vadd.f32 0.0, %v238
  %v240 = vpop.f32.mrb[0].mxu0
  %241 = vdwg.mxu0
  %v244 = vunpack.c.l.b16 %v21
  %v245 = vunpack.c.l.b16 %v22
  %v246 = vpack.c.b16 %v245, %v244
  %v255 = vunpack.c.l.b16 %v37
  %v256 = vunpack.c.l.b16 %v38
  %v257 = vunpack.c.l.b16 %v39
  %v258 = vunpack.c.l.b16 %v40
  %v259 = vunpack.c.l.b16 %v41
  %v260 = vunpack.c.l.b16 %v42
  %v261 = vunpack.c.l.b16 %v43
  %v262 = vunpack.c.l.b16 %v44
  %v263 = vpack.c.b16 %v256, %v255
  %v264 = vpack.c.b16 %v258, %v257
  %v265 = vpack.c.b16 %v260, %v259
  %v266 = vpack.c.b16 %v262, %v261
  %v272 = vsel %vm120, %v246, 0
  %274 = vmatprep.subr.bf16.mxu0 0
  %275 = vmatpush1.bf16.msra.mxu0 %v263
  %276 = vmatprep.subr.bf16.mxu0 0
  %277 = vmatpush1.bf16.msra.mxu0 %v264
  %278 = vmatprep.subr.bf16.mxu0 0
  %279 = vmatpush1.bf16.msra.mxu0 %v265
  %280 = vmatprep.subr.bf16.mxu0 0
  %281 = vmatpush1.bf16.msra.mxu0 %v266
  %282 = vmatprep.subr.bf16.mxu0 0
  %283 = vmatpush1.bf16.msra.mxu0 0
  %284 = vmatprep.subr.bf16.mxu0 0
  %285 = vmatpush1.bf16.msra.mxu0 0
  %286 = vmatprep.subr.bf16.mxu0 0
  %287 = vmatpush1.bf16.msra.mxu0 0
  %288 = vmatprep.subr.bf16.mxu0 0
  %289 = vmatpush1.bf16.msra.mxu0 0
  %290 = vmatprep.subr.bf16.mxu0 0
  %291 = vmatpush1.bf16.msra.mxu0 0
  %292 = vmatprep.subr.bf16.mxu0 0
  %293 = vmatpush1.bf16.msra.mxu0 0
  %294 = vmatprep.subr.bf16.mxu0 0
  %295 = vmatpush1.bf16.msra.mxu0 0
  %296 = vmatprep.subr.bf16.mxu0 0
  %297 = vmatpush1.bf16.msra.mxu0 0
  %298 = vmatprep.subr.bf16.mxu0 0
  %299 = vmatpush1.bf16.msra.mxu0 0
  %300 = vmatprep.subr.bf16.mxu0 0
  %301 = vmatpush1.bf16.msra.mxu0 0
  %302 = vmatprep.subr.bf16.mxu0 0
  %303 = vmatpush1.bf16.msra.mxu0 0
  %304 = vmatprep.subr.bf16.mxu0 0
  %305 = vmatpush1.bf16.msra.mxu0 0
  %306 = vmatprep.mubr.bf16.mxu0 0
  %307 = vmatmul.mubr.bf16.gmra.mrb[0].mxu0 %v272
  %v308 = vpop.f32.mrb[0].mxu0
  %v309 = vadd.f32 %v180, %v308
  %v310 = vpop.f32.mrb[0].mxu0
  %v311 = vpop.f32.mrb[0].mxu0
  %v312 = vadd.f32 %v183, %v311
  %v313 = vpop.f32.mrb[0].mxu0
  %314 = vmatprep.mubr.bf16.mxu0 0
  %315 = vmatmul.mubr.bf16.gmra.mrb[0].mxu0 %v122
  %v316 = vpop.f32.mrb[0].mxu0
  %v317 = vadd.f32 %v188, %v316
  %v318 = vpop.f32.mrb[0].mxu0
  %v319 = vpop.f32.mrb[0].mxu0
  %v320 = vadd.f32 %v191, %v319
  %v321 = vpop.f32.mrb[0].mxu0
  %322 = vmatprep.mubr.bf16.mxu0 0
  %323 = vmatmul.mubr.bf16.gmra.mrb[0].mxu0 %v125
  %v324 = vpop.f32.mrb[0].mxu0
  %v325 = vadd.f32 %v196, %v324
  %v326 = vpop.f32.mrb[0].mxu0
  %v327 = vpop.f32.mrb[0].mxu0
  %v328 = vadd.f32 %v199, %v327
  %v329 = vpop.f32.mrb[0].mxu0
  %330 = vmatprep.mubr.bf16.mxu0 0
  %331 = vmatmul.mubr.bf16.gmra.mrb[0].mxu0 %v128
  %v332 = vpop.f32.mrb[0].mxu0
  %v333 = vadd.f32 %v204, %v332
  %v334 = vpop.f32.mrb[0].mxu0
  %v335 = vpop.f32.mrb[0].mxu0
  %v336 = vadd.f32 %v207, %v335
  %v337 = vpop.f32.mrb[0].mxu0
  %338 = vmatprep.mubr.bf16.mxu0 0
  %339 = vmatmul.mubr.bf16.gmra.mrb[0].mxu0 %v131
  %v340 = vpop.f32.mrb[0].mxu0
  %v341 = vadd.f32 %v212, %v340
  %v342 = vpop.f32.mrb[0].mxu0
  %v343 = vpop.f32.mrb[0].mxu0
  %v344 = vadd.f32 %v215, %v343
  %v345 = vpop.f32.mrb[0].mxu0
  %346 = vmatprep.mubr.bf16.mxu0 0
  %347 = vmatmul.mubr.bf16.gmra.mrb[0].mxu0 %v134
  %v348 = vpop.f32.mrb[0].mxu0
  %v349 = vadd.f32 %v220, %v348
  %v350 = vpop.f32.mrb[0].mxu0
  %v351 = vpop.f32.mrb[0].mxu0
  %v352 = vadd.f32 %v223, %v351
  %v353 = vpop.f32.mrb[0].mxu0
  %354 = vmatprep.mubr.bf16.mxu0 0
  %355 = vmatmul.mubr.bf16.gmra.mrb[0].mxu0 %v137
  %v356 = vpop.f32.mrb[0].mxu0
  %v357 = vadd.f32 %v228, %v356
  %v358 = vpop.f32.mrb[0].mxu0
  %v359 = vpop.f32.mrb[0].mxu0
  %v360 = vadd.f32 %v231, %v359
  %v361 = vpop.f32.mrb[0].mxu0
  %362 = vmatprep.mubr.bf16.mxu0 0
  %363 = vmatmul.mubr.bf16.gmra.mrb[0].mxu0 %v140
  %v364 = vpop.f32.mrb[0].mxu0
  %v365 = vadd.f32 %v236, %v364
  %v366 = vpop.f32.mrb[0].mxu0
  %v367 = vpop.f32.mrb[0].mxu0
  %v368 = vadd.f32 %v239, %v367
  %v369 = vpop.f32.mrb[0].mxu0
  %370 = vdwg.mxu0
  %v371 = vld [vmem:[%s1] sm:$0xf]
  %v372 = vld [vmem:[%s1 + $0x4] sm:$0xf]
  %v373 = vld [vmem:[%s1 + $0x8] sm:$0xf]
  %v374 = vld [vmem:[%s1 + $0xc] sm:$0xf]
  %v375 = vld [vmem:[%s1 + $0x10] sm:$0xf]
  %v376 = vld [vmem:[%s1 + $0x14] sm:$0xf]
  %v377 = vld [vmem:[%s1 + $0x18] sm:$0xf]
  %v378 = vld [vmem:[%s1 + $0x1c] sm:$0xf]
  %v379 = vld [vmem:[%s1 + $0x20] sm:$0xf]
  %v380 = vld [vmem:[%s1 + $0x24] sm:$0xf]
  %v381 = vld [vmem:[%s1 + $0x28] sm:$0xf]
  %v382 = vld [vmem:[%s1 + $0x2c] sm:$0xf]
  %v383 = vld [vmem:[%s1 + $0x30] sm:$0xf]
  %v384 = vld [vmem:[%s1 + $0x34] sm:$0xf]
  %v385 = vld [vmem:[%s1 + $0x38] sm:$0xf]
  %v386 = vld [vmem:[%s1 + $0x3c] sm:$0xf]
  %s387 = scalar_lea.vmem %s2, 64
  %v388 = vld [vmem:[%s387] sm:$0xf]
  %v389 = vld [vmem:[%s387 + $0x4] sm:$0xf]
  %v390 = vld [vmem:[%s387 + $0x8] sm:$0xf]
  %v391 = vld [vmem:[%s387 + $0xc] sm:$0xf]
  %v392 = vld [vmem:[%s387 + $0x10] sm:$0xf]
  %v393 = vld [vmem:[%s387 + $0x14] sm:$0xf]
  %v394 = vld [vmem:[%s387 + $0x18] sm:$0xf]
  %v395 = vld [vmem:[%s387 + $0x1c] sm:$0xf]
  %v412 = vunpack.c.l.b16 %v371
  %v413 = vunpack.c.l.b16 %v372
  %v414 = vunpack.c.l.b16 %v373
  %v415 = vunpack.c.l.b16 %v374
  %v416 = vunpack.c.l.b16 %v375
  %v417 = vunpack.c.l.b16 %v376
  %v418 = vunpack.c.l.b16 %v377
  %v419 = vunpack.c.l.b16 %v378
  %v420 = vunpack.c.l.b16 %v379
  %v421 = vunpack.c.l.b16 %v380
  %v422 = vunpack.c.l.b16 %v381
  %v423 = vunpack.c.l.b16 %v382
  %v424 = vunpack.c.l.b16 %v383
  %v425 = vunpack.c.l.b16 %v384
  %v426 = vunpack.c.l.b16 %v385
  %v427 = vunpack.c.l.b16 %v386
  %v428 = vpack.c.b16 %v413, %v412
  %v429 = vpack.c.b16 %v415, %v414
  %v430 = vpack.c.b16 %v417, %v416
  %v431 = vpack.c.b16 %v419, %v418
  %v432 = vpack.c.b16 %v421, %v420
  %v433 = vpack.c.b16 %v423, %v422
  %v434 = vpack.c.b16 %v425, %v424
  %v435 = vpack.c.b16 %v427, %v426
  %v444 = vunpack.c.l.b16 %v388
  %v445 = vunpack.c.l.b16 %v389
  %v446 = vunpack.c.l.b16 %v390
  %v447 = vunpack.c.l.b16 %v391
  %v448 = vunpack.c.l.b16 %v392
  %v449 = vunpack.c.l.b16 %v393
  %v450 = vunpack.c.l.b16 %v394
  %v451 = vunpack.c.l.b16 %v395
  %v452 = vpack.c.b16 %v445, %v444
  %v453 = vpack.c.b16 %v447, %v446
  %v454 = vpack.c.b16 %v449, %v448
  %v455 = vpack.c.b16 %v451, %v450
  %v461 = vsel %vm120, %v428, 0
  %v464 = vsel %vm120, %v429, 0
  %v467 = vsel %vm120, %v430, 0
  %v470 = vsel %vm120, %v431, 0
  %v473 = vsel %vm120, %v432, 0
  %v476 = vsel %vm120, %v433, 0
  %v479 = vsel %vm120, %v434, 0
  %v482 = vsel %vm120, %v435, 0
  %484 = vmatprep.subr.bf16.mxu0 0
  %485 = vmatpush1.bf16.msra.mxu0 %v452
  %486 = vmatprep.subr.bf16.mxu0 0
  %487 = vmatpush1.bf16.msra.mxu0 %v453
  %488 = vmatprep.subr.bf16.mxu0 0
  %489 = vmatpush1.bf16.msra.mxu0 %v454
  %490 = vmatprep.subr.bf16.mxu0 0
  %491 = vmatpush1.bf16.msra.mxu0 %v455
  %492 = vmatprep.subr.bf16.mxu0 0
  %493 = vmatpush1.bf16.msra.mxu0 0
  %494 = vmatprep.subr.bf16.mxu0 0
  %495 = vmatpush1.bf16.msra.mxu0 0
  %496 = vmatprep.subr.bf16.mxu0 0
  %497 = vmatpush1.bf16.msra.mxu0 0
  %498 = vmatprep.subr.bf16.mxu0 0
  %499 = vmatpush1.bf16.msra.mxu0 0
  %500 = vmatprep.subr.bf16.mxu0 0
  %501 = vmatpush1.bf16.msra.mxu0 0
  %502 = vmatprep.subr.bf16.mxu0 0
  %503 = vmatpush1.bf16.msra.mxu0 0
  %504 = vmatprep.subr.bf16.mxu0 0
  %505 = vmatpush1.bf16.msra.mxu0 0
  %506 = vmatprep.subr.bf16.mxu0 0
  %507 = vmatpush1.bf16.msra.mxu0 0
  %508 = vmatprep.subr.bf16.mxu0 0
  %509 = vmatpush1.bf16.msra.mxu0 0
  %510 = vmatprep.subr.bf16.mxu0 0
  %511 = vmatpush1.bf16.msra.mxu0 0
  %512 = vmatprep.subr.bf16.mxu0 0
  %513 = vmatpush1.bf16.msra.mxu0 0
  %514 = vmatprep.subr.bf16.mxu0 0
  %515 = vmatpush1.bf16.msra.mxu0 0
  %516 = vmatprep.mubr.bf16.mxu0 0
  %517 = vmatmul.mubr.bf16.gmra.mrb[0].mxu0 %v461
  %v518 = vpop.f32.mrb[0].mxu0
  %v519 = vadd.f32 0.0, %v518
  %v520 = vpop.f32.mrb[0].mxu0
  %v521 = vpop.f32.mrb[0].mxu0
  %v522 = vadd.f32 0.0, %v521
  %v523 = vpop.f32.mrb[0].mxu0
  %524 = vmatprep.mubr.bf16.mxu0 0
  %525 = vmatmul.mubr.bf16.gmra.mrb[0].mxu0 %v464
  %v526 = vpop.f32.mrb[0].mxu0
  %v527 = vadd.f32 0.0, %v526
  %v528 = vpop.f32.mrb[0].mxu0
  %v529 = vpop.f32.mrb[0].mxu0
  %v530 = vadd.f32 0.0, %v529
  %v531 = vpop.f32.mrb[0].mxu0
  %532 = vmatprep.mubr.bf16.mxu0 0
  %533 = vmatmul.mubr.bf16.gmra.mrb[0].mxu0 %v467
  %v534 = vpop.f32.mrb[0].mxu0
  %v535 = vadd.f32 0.0, %v534
  %v536 = vpop.f32.mrb[0].mxu0
  %v537 = vpop.f32.mrb[0].mxu0
  %v538 = vadd.f32 0.0, %v537
  %v539 = vpop.f32.mrb[0].mxu0
  %540 = vmatprep.mubr.bf16.mxu0 0
  %541 = vmatmul.mubr.bf16.gmra.mrb[0].mxu0 %v470
  %v542 = vpop.f32.mrb[0].mxu0
  %v543 = vadd.f32 0.0, %v542
  %v544 = vpop.f32.mrb[0].mxu0
  %v545 = vpop.f32.mrb[0].mxu0
  %v546 = vadd.f32 0.0, %v545
  %v547 = vpop.f32.mrb[0].mxu0
  %548 = vmatprep.mubr.bf16.mxu0 0
  %549 = vmatmul.mubr.bf16.gmra.mrb[0].mxu0 %v473
  %v550 = vpop.f32.mrb[0].mxu0
  %v551 = vadd.f32 0.0, %v550
  %v552 = vpop.f32.mrb[0].mxu0
  %v553 = vpop.f32.mrb[0].mxu0
  %v554 = vadd.f32 0.0, %v553
  %v555 = vpop.f32.mrb[0].mxu0
  %556 = vmatprep.mubr.bf16.mxu0 0
  %557 = vmatmul.mubr.bf16.gmra.mrb[0].mxu0 %v476
  %v558 = vpop.f32.mrb[0].mxu0
  %v559 = vadd.f32 0.0, %v558
  %v560 = vpop.f32.mrb[0].mxu0
  %v561 = vpop.f32.mrb[0].mxu0
  %v562 = vadd.f32 0.0, %v561
  %v563 = vpop.f32.mrb[0].mxu0
  %564 = vmatprep.mubr.bf16.mxu0 0
  %565 = vmatmul.mubr.bf16.gmra.mrb[0].mxu0 %v479
  %v566 = vpop.f32.mrb[0].mxu0
  %v567 = vadd.f32 0.0, %v566
  %v568 = vpop.f32.mrb[0].mxu0
  %v569 = vpop.f32.mrb[0].mxu0
  %v570 = vadd.f32 0.0, %v569
  %v571 = vpop.f32.mrb[0].mxu0
  %572 = vmatprep.mubr.bf16.mxu0 0
  %573 = vmatmul.mubr.bf16.gmra.mrb[0].mxu0 %v482
  %v574 = vpop.f32.mrb[0].mxu0
  %v575 = vadd.f32 0.0, %v574
  %v576 = vpop.f32.mrb[0].mxu0
  %v577 = vpop.f32.mrb[0].mxu0
  %v578 = vadd.f32 0.0, %v577
  %v579 = vpop.f32.mrb[0].mxu0
  %580 = vdwg.mxu0
  %v581 = vadd.f32 %v309, %v519
  %v582 = vadd.f32 %v312, %v522
  %v583 = vadd.f32 %v317, %v527
  %v584 = vadd.f32 %v320, %v530
  %v585 = vadd.f32 %v325, %v535
  %v586 = vadd.f32 %v328, %v538
  %v587 = vadd.f32 %v333, %v543
  %v588 = vadd.f32 %v336, %v546
  %v589 = vadd.f32 %v341, %v551
  %v590 = vadd.f32 %v344, %v554
  %v591 = vadd.f32 %v349, %v559
  %v592 = vadd.f32 %v352, %v562
  %v593 = vadd.f32 %v357, %v567
  %v594 = vadd.f32 %v360, %v570
  %v595 = vadd.f32 %v365, %v575
  %v596 = vadd.f32 %v368, %v578
  %v597 = vld [vmem:[%s1 + $0x8] sm:$0xf]
  %v598 = vld [vmem:[%s1 + $0xc] sm:$0xf]
  %v599 = vld [vmem:[%s1 + $0x10] sm:$0xf]
  %v600 = vld [vmem:[%s1 + $0x14] sm:$0xf]
  %v601 = vld [vmem:[%s1 + $0x18] sm:$0xf]
  %v602 = vld [vmem:[%s1 + $0x1c] sm:$0xf]
  %v603 = vld [vmem:[%s1 + $0x20] sm:$0xf]
  %v604 = vld [vmem:[%s1 + $0x24] sm:$0xf]
  %v605 = vld [vmem:[%s1 + $0x28] sm:$0xf]
  %v606 = vld [vmem:[%s1 + $0x2c] sm:$0xf]
  %v607 = vld [vmem:[%s1 + $0x30] sm:$0xf]
  %v608 = vld [vmem:[%s1 + $0x34] sm:$0xf]
  %v609 = vld [vmem:[%s1 + $0x38] sm:$0xf]
  %v610 = vld [vmem:[%s1 + $0x3c] sm:$0xf]
  %v611 = vld [vmem:[%s1 + $0x40] sm:$0xf]
  %v612 = vld [vmem:[%s1 + $0x44] sm:$0xf]
  %s613 = scalar_lea.vmem %s2, 96
  %v614 = vld [vmem:[%s613] sm:$0xf]
  %v615 = vld [vmem:[%s613 + $0x4] sm:$0xf]
  %v616 = vld [vmem:[%s613 + $0x8] sm:$0xf]
  %v617 = vld [vmem:[%s613 + $0xc] sm:$0xf]
  %v618 = vld [vmem:[%s613 + $0x10] sm:$0xf]
  %v619 = vld [vmem:[%s613 + $0x14] sm:$0xf]
  %v620 = vld [vmem:[%s613 + $0x18] sm:$0xf]
  %v621 = vld [vmem:[%s613 + $0x1c] sm:$0xf]
  %v638 = vunpack.c.l.b16 %v597
  %v639 = vunpack.c.l.b16 %v598
  %v640 = vunpack.c.l.b16 %v599
  %v641 = vunpack.c.l.b16 %v600
  %v642 = vunpack.c.l.b16 %v601
  %v643 = vunpack.c.l.b16 %v602
  %v644 = vunpack.c.l.b16 %v603
  %v645 = vunpack.c.l.b16 %v604
  %v646 = vunpack.c.l.b16 %v605
  %v647 = vunpack.c.l.b16 %v606
  %v648 = vunpack.c.l.b16 %v607
  %v649 = vunpack.c.l.b16 %v608
  %v650 = vunpack.c.l.b16 %v609
  %v651 = vunpack.c.l.b16 %v610
  %v652 = vunpack.c.l.b16 %v611
  %v653 = vunpack.c.l.b16 %v612
  %v654 = vpack.c.b16 %v639, %v638
  %v655 = vpack.c.b16 %v641, %v640
  %v656 = vpack.c.b16 %v643, %v642
  %v657 = vpack.c.b16 %v645, %v644
  %v658 = vpack.c.b16 %v647, %v646
  %v659 = vpack.c.b16 %v649, %v648
  %v660 = vpack.c.b16 %v651, %v650
  %v661 = vpack.c.b16 %v653, %v652
  %v670 = vunpack.c.l.b16 %v614
  %v671 = vunpack.c.l.b16 %v615
  %v672 = vunpack.c.l.b16 %v616
  %v673 = vunpack.c.l.b16 %v617
  %v674 = vunpack.c.l.b16 %v618
  %v675 = vunpack.c.l.b16 %v619
  %v676 = vunpack.c.l.b16 %v620
  %v677 = vunpack.c.l.b16 %v621
  %v678 = vpack.c.b16 %v671, %v670
  %v679 = vpack.c.b16 %v673, %v672
  %v680 = vpack.c.b16 %v675, %v674
  %v681 = vpack.c.b16 %v677, %v676
  %v687 = vsel %vm120, %v654, 0
  %v690 = vsel %vm120, %v655, 0
  %v693 = vsel %vm120, %v656, 0
  %v696 = vsel %vm120, %v657, 0
  %v699 = vsel %vm120, %v658, 0
  %v702 = vsel %vm120, %v659, 0
  %v705 = vsel %vm120, %v660, 0
  %v708 = vsel %vm120, %v661, 0
  %710 = vmatprep.subr.bf16.mxu0 0
  %711 = vmatpush1.bf16.msra.mxu0 %v678
  %712 = vmatprep.subr.bf16.mxu0 0
  %713 = vmatpush1.bf16.msra.mxu0 %v679
  %714 = vmatprep.subr.bf16.mxu0 0
  %715 = vmatpush1.bf16.msra.mxu0 %v680
  %716 = vmatprep.subr.bf16.mxu0 0
  %717 = vmatpush1.bf16.msra.mxu0 %v681
  %718 = vmatprep.subr.bf16.mxu0 0
  %719 = vmatpush1.bf16.msra.mxu0 0
  %720 = vmatprep.subr.bf16.mxu0 0
  %721 = vmatpush1.bf16.msra.mxu0 0
  %722 = vmatprep.subr.bf16.mxu0 0
  %723 = vmatpush1.bf16.msra.mxu0 0
  %724 = vmatprep.subr.bf16.mxu0 0
  %725 = vmatpush1.bf16.msra.mxu0 0
  %726 = vmatprep.subr.bf16.mxu0 0
  %727 = vmatpush1.bf16.msra.mxu0 0
  %728 = vmatprep.subr.bf16.mxu0 0
  %729 = vmatpush1.bf16.msra.mxu0 0
  %730 = vmatprep.subr.bf16.mxu0 0
  %731 = vmatpush1.bf16.msra.mxu0 0
  %732 = vmatprep.subr.bf16.mxu0 0
  %733 = vmatpush1.bf16.msra.mxu0 0
  %734 = vmatprep.subr.bf16.mxu0 0
  %735 = vmatpush1.bf16.msra.mxu0 0
  %736 = vmatprep.subr.bf16.mxu0 0
  %737 = vmatpush1.bf16.msra.mxu0 0
  %738 = vmatprep.subr.bf16.mxu0 0
  %739 = vmatpush1.bf16.msra.mxu0 0
  %740 = vmatprep.subr.bf16.mxu0 0
  %741 = vmatpush1.bf16.msra.mxu0 0
  %742 = vmatprep.mubr.bf16.mxu0 0
  %743 = vmatmul.mubr.bf16.gmra.mrb[0].mxu0 %v687
  %v744 = vpop.f32.mrb[0].mxu0
  %v745 = vadd.f32 0.0, %v744
  %v746 = vpop.f32.mrb[0].mxu0
  %v747 = vpop.f32.mrb[0].mxu0
  %v748 = vadd.f32 0.0, %v747
  %v749 = vpop.f32.mrb[0].mxu0
  %750 = vmatprep.mubr.bf16.mxu0 0
  %751 = vmatmul.mubr.bf16.gmra.mrb[0].mxu0 %v690
  %v752 = vpop.f32.mrb[0].mxu0
  %v753 = vadd.f32 0.0, %v752
  %v754 = vpop.f32.mrb[0].mxu0
  %v755 = vpop.f32.mrb[0].mxu0
  %v756 = vadd.f32 0.0, %v755
  %v757 = vpop.f32.mrb[0].mxu0
  %758 = vmatprep.mubr.bf16.mxu0 0
  %759 = vmatmul.mubr.bf16.gmra.mrb[0].mxu0 %v693
  %v760 = vpop.f32.mrb[0].mxu0
  %v761 = vadd.f32 0.0, %v760
  %v762 = vpop.f32.mrb[0].mxu0
  %v763 = vpop.f32.mrb[0].mxu0
  %v764 = vadd.f32 0.0, %v763
  %v765 = vpop.f32.mrb[0].mxu0
  %766 = vmatprep.mubr.bf16.mxu0 0
  %767 = vmatmul.mubr.bf16.gmra.mrb[0].mxu0 %v696
  %v768 = vpop.f32.mrb[0].mxu0
  %v769 = vadd.f32 0.0, %v768
  %v770 = vpop.f32.mrb[0].mxu0
  %v771 = vpop.f32.mrb[0].mxu0
  %v772 = vadd.f32 0.0, %v771
  %v773 = vpop.f32.mrb[0].mxu0
  %774 = vmatprep.mubr.bf16.mxu0 0
  %775 = vmatmul.mubr.bf16.gmra.mrb[0].mxu0 %v699
  %v776 = vpop.f32.mrb[0].mxu0
  %v777 = vadd.f32 0.0, %v776
  %v778 = vpop.f32.mrb[0].mxu0
  %v779 = vpop.f32.mrb[0].mxu0
  %v780 = vadd.f32 0.0, %v779
  %v781 = vpop.f32.mrb[0].mxu0
  %782 = vmatprep.mubr.bf16.mxu0 0
  %783 = vmatmul.mubr.bf16.gmra.mrb[0].mxu0 %v702
  %v784 = vpop.f32.mrb[0].mxu0
  %v785 = vadd.f32 0.0, %v784
  %v786 = vpop.f32.mrb[0].mxu0
  %v787 = vpop.f32.mrb[0].mxu0
  %v788 = vadd.f32 0.0, %v787
  %v789 = vpop.f32.mrb[0].mxu0
  %790 = vmatprep.mubr.bf16.mxu0 0
  %791 = vmatmul.mubr.bf16.gmra.mrb[0].mxu0 %v705
  %v792 = vpop.f32.mrb[0].mxu0
  %v793 = vadd.f32 0.0, %v792
  %v794 = vpop.f32.mrb[0].mxu0
  %v795 = vpop.f32.mrb[0].mxu0
  %v796 = vadd.f32 0.0, %v795
  %v797 = vpop.f32.mrb[0].mxu0
  %798 = vmatprep.mubr.bf16.mxu0 0
  %799 = vmatmul.mubr.bf16.gmra.mrb[0].mxu0 %v708
  %v800 = vpop.f32.mrb[0].mxu0
  %v801 = vadd.f32 0.0, %v800
  %v802 = vpop.f32.mrb[0].mxu0
  %v803 = vpop.f32.mrb[0].mxu0
  %v804 = vadd.f32 0.0, %v803
  %v805 = vpop.f32.mrb[0].mxu0
  %806 = vdwg.mxu0
  %v807 = vadd.f32 %v581, %v745
  %v808 = vadd.f32 %v582, %v748
  %v809 = vadd.f32 %v583, %v753
  %v810 = vadd.f32 %v584, %v756
  %v811 = vadd.f32 %v585, %v761
  %v812 = vadd.f32 %v586, %v764
  %v813 = vadd.f32 %v587, %v769
  %v814 = vadd.f32 %v588, %v772
  %v815 = vadd.f32 %v589, %v777
  %v816 = vadd.f32 %v590, %v780
  %v817 = vadd.f32 %v591, %v785
  %v818 = vadd.f32 %v592, %v788
  %v819 = vadd.f32 %v593, %v793
  %v820 = vadd.f32 %v594, %v796
  %v821 = vadd.f32 %v595, %v801
  %v822 = vadd.f32 %v596, %v804
  %v823 = vld [vmem:[%s3] sm:$0x1]
  %v824 = vld [vmem:[%s4] sm:$0x1]
  %vm825 = vcmask 261120
  %v826 = vsel %vm825, %v807, 0.0
  %v827 = vsel %vm825, %v808, 0.0
  %v828 = vadd.f32 %v826, %v827
  %v829 = vsel %vm825, %v809, 0.0
  %v830 = vadd.f32 %v828, %v829
  %v831 = vsel %vm825, %v810, 0.0
  %v832 = vadd.f32 %v830, %v831
  %v833 = vsel %vm825, %v811, 0.0
  %v834 = vadd.f32 %v832, %v833
  %v835 = vsel %vm825, %v812, 0.0
  %v836 = vadd.f32 %v834, %v835
  %v837 = vsel %vm825, %v813, 0.0
  %v838 = vadd.f32 %v836, %v837
  %v839 = vsel %vm825, %v814, 0.0
  %v840 = vadd.f32 %v838, %v839
  %v841 = vsel %vm825, %v815, 0.0
  %v842 = vadd.f32 %v840, %v841
  %v843 = vsel %vm825, %v816, 0.0
  %v844 = vadd.f32 %v842, %v843
  %v845 = vsel %vm825, %v817, 0.0
  %v846 = vadd.f32 %v844, %v845
  %v847 = vsel %vm825, %v818, 0.0
  %v848 = vadd.f32 %v846, %v847
  %v849 = vsel %vm825, %v819, 0.0
  %v850 = vadd.f32 %v848, %v849
  %v851 = vsel %vm825, %v820, 0.0
  %v852 = vadd.f32 %v850, %v851
  %v853 = vsel %vm825, %v821, 0.0
  %v854 = vadd.f32 %v852, %v853
  %v855 = vsel %vm825, %v822, 0.0
  %v856 = vadd.f32 %v854, %v855
  %v857 = vrot.slane %v856, 4
  %v858 = vadd.f32 %v856, %v857
  %v859 = vrot.slane %v858, 2
  %v860 = vadd.f32 %v858, %v859
  %v861 = vrot.slane %v860, 1
  %v862 = vadd.f32 %v860, %v861
  %v863 = vmul.f32 %v862, 0.0078125
  %v864 = vmul.f32 %v807, %v807
  %v865 = vmul.f32 %v808, %v808
  %v866 = vmul.f32 %v809, %v809
  %v867 = vmul.f32 %v810, %v810
  %v868 = vmul.f32 %v811, %v811
  %v869 = vmul.f32 %v812, %v812
  %v870 = vmul.f32 %v813, %v813
  %v871 = vmul.f32 %v814, %v814
  %v872 = vmul.f32 %v815, %v815
  %v873 = vmul.f32 %v816, %v816
  %v874 = vmul.f32 %v817, %v817
  %v875 = vmul.f32 %v818, %v818
  %v876 = vmul.f32 %v819, %v819
  %v877 = vmul.f32 %v820, %v820
  %v878 = vmul.f32 %v821, %v821
  %v879 = vmul.f32 %v822, %v822
  %v880 = vsel %vm825, %v864, 0.0
  %v881 = vsel %vm825, %v865, 0.0
  %v882 = vadd.f32 %v880, %v881
  %v883 = vsel %vm825, %v866, 0.0
  %v884 = vadd.f32 %v882, %v883
  %v885 = vsel %vm825, %v867, 0.0
  %v886 = vadd.f32 %v884, %v885
  %v887 = vsel %vm825, %v868, 0.0
  %v888 = vadd.f32 %v886, %v887
  %v889 = vsel %vm825, %v869, 0.0
  %v890 = vadd.f32 %v888, %v889
  %v891 = vsel %vm825, %v870, 0.0
  %v892 = vadd.f32 %v890, %v891
  %v893 = vsel %vm825, %v871, 0.0
  %v894 = vadd.f32 %v892, %v893
  %v895 = vsel %vm825, %v872, 0.0
  %v896 = vadd.f32 %v894, %v895
  %v897 = vsel %vm825, %v873, 0.0
  %v898 = vadd.f32 %v896, %v897
  %v899 = vsel %vm825, %v874, 0.0
  %v900 = vadd.f32 %v898, %v899
  %v901 = vsel %vm825, %v875, 0.0
  %v902 = vadd.f32 %v900, %v901
  %v903 = vsel %vm825, %v876, 0.0
  %v904 = vadd.f32 %v902, %v903
  %v905 = vsel %vm825, %v877, 0.0
  %v906 = vadd.f32 %v904, %v905
  %v907 = vsel %vm825, %v878, 0.0
  %v908 = vadd.f32 %v906, %v907
  %v909 = vsel %vm825, %v879, 0.0
  %v910 = vadd.f32 %v908, %v909
  %v911 = vrot.slane %v910, 4
  %v912 = vadd.f32 %v910, %v911
  %v913 = vrot.slane %v912, 2
  %v914 = vadd.f32 %v912, %v913
  %v915 = vrot.slane %v914, 1
  %v916 = vadd.f32 %v914, %v915
  %v917 = vmul.f32 %v916, 0.0078125
  %v918 = vmul.f32 %v863, %v863
  %v919 = vsub.f32 %v917, %v918
  %v920 = vmax.f32 %v919, 0.0
  %v921 = vsub.f32 %v807, %v863
  %v922 = vsub.f32 %v808, %v863
  %v923 = vsub.f32 %v809, %v863
  %v924 = vsub.f32 %v810, %v863
  %v925 = vsub.f32 %v811, %v863
  %v926 = vsub.f32 %v812, %v863
  %v927 = vsub.f32 %v813, %v863
  %v928 = vsub.f32 %v814, %v863
  %v929 = vsub.f32 %v815, %v863
  %v930 = vsub.f32 %v816, %v863
  %v931 = vsub.f32 %v817, %v863
  %v932 = vsub.f32 %v818, %v863
  %v933 = vsub.f32 %v819, %v863
  %v934 = vsub.f32 %v820, %v863
  %v935 = vsub.f32 %v821, %v863
  %v936 = vsub.f32 %v822, %v863
  %v937 = vadd.f32 %v920, 1e-05
  %v938 = vrsqrt.pop %v937
  %v939 = vmul.f32 %v921, %v938
  %v940 = vmul.f32 %v922, %v938
  %v941 = vmul.f32 %v923, %v938
  %v942 = vmul.f32 %v924, %v938
  %v943 = vmul.f32 %v925, %v938
  %v944 = vmul.f32 %v926, %v938
  %v945 = vmul.f32 %v927, %v938
  %v946 = vmul.f32 %v928, %v938
  %v947 = vmul.f32 %v929, %v938
  %v948 = vmul.f32 %v930, %v938
  %v949 = vmul.f32 %v931, %v938
  %v950 = vmul.f32 %v932, %v938
  %v951 = vmul.f32 %v933, %v938
  %v952 = vmul.f32 %v934, %v938
  %v953 = vmul.f32 %v935, %v938
  %v954 = vmul.f32 %v936, %v938
  %v956 = vlaneseq
  %v957 = vshrl.u32 %v956, 7
  %v958 = vsub.s32 0, %v957
  %v959 = vrot.slane %v823, %v958
  %v961 = vmul.f32 %v939, %v959
  %v962 = vmul.f32 %v940, %v959
  %v963 = vmul.f32 %v941, %v959
  %v964 = vmul.f32 %v942, %v959
  %v965 = vmul.f32 %v943, %v959
  %v966 = vmul.f32 %v944, %v959
  %v967 = vmul.f32 %v945, %v959
  %v968 = vmul.f32 %v946, %v959
  %v969 = vmul.f32 %v947, %v959
  %v970 = vmul.f32 %v948, %v959
  %v971 = vmul.f32 %v949, %v959
  %v972 = vmul.f32 %v950, %v959
  %v973 = vmul.f32 %v951, %v959
  %v974 = vmul.f32 %v952, %v959
  %v975 = vmul.f32 %v953, %v959
  %v976 = vmul.f32 %v954, %v959
  %v978 = vlaneseq
  %v979 = vshrl.u32 %v978, 7
  %v980 = vsub.s32 0, %v979
  %v981 = vrot.slane %v824, %v980
  %v983 = vadd.f32 %v961, %v981
  %v984 = vadd.f32 %v962, %v981
  %v985 = vadd.f32 %v963, %v981
  %v986 = vadd.f32 %v964, %v981
  %v987 = vadd.f32 %v965, %v981
  %v988 = vadd.f32 %v966, %v981
  %v989 = vadd.f32 %v967, %v981
  %v990 = vadd.f32 %v968, %v981
  %v991 = vadd.f32 %v969, %v981
  %v992 = vadd.f32 %v970, %v981
  %v993 = vadd.f32 %v971, %v981
  %v994 = vadd.f32 %v972, %v981
  %v995 = vadd.f32 %v973, %v981
  %v996 = vadd.f32 %v974, %v981
  %v997 = vadd.f32 %v975, %v981
  %v998 = vadd.f32 %v976, %v981
  %vm999 = vcmp.ge.f32.partialorder %v983, 0.0
  %vm1000 = vcmp.ge.f32.partialorder %v984, 0.0
  %vm1001 = vcmp.ge.f32.partialorder %v985, 0.0
  %vm1002 = vcmp.ge.f32.partialorder %v986, 0.0
  %vm1003 = vcmp.ge.f32.partialorder %v987, 0.0
  %vm1004 = vcmp.ge.f32.partialorder %v988, 0.0
  %vm1005 = vcmp.ge.f32.partialorder %v989, 0.0
  %vm1006 = vcmp.ge.f32.partialorder %v990, 0.0
  %vm1007 = vcmp.ge.f32.partialorder %v991, 0.0
  %vm1008 = vcmp.ge.f32.partialorder %v992, 0.0
  %vm1009 = vcmp.ge.f32.partialorder %v993, 0.0
  %vm1010 = vcmp.ge.f32.partialorder %v994, 0.0
  %vm1011 = vcmp.ge.f32.partialorder %v995, 0.0
  %vm1012 = vcmp.ge.f32.partialorder %v996, 0.0
  %vm1013 = vcmp.ge.f32.partialorder %v997, 0.0
  %vm1014 = vcmp.ge.f32.partialorder %v998, 0.0
  %v1015 = vmul.f32 %v983, 0.2
  %v1016 = vmul.f32 %v984, 0.2
  %v1017 = vmul.f32 %v985, 0.2
  %v1018 = vmul.f32 %v986, 0.2
  %v1019 = vmul.f32 %v987, 0.2
  %v1020 = vmul.f32 %v988, 0.2
  %v1021 = vmul.f32 %v989, 0.2
  %v1022 = vmul.f32 %v990, 0.2
  %v1023 = vmul.f32 %v991, 0.2
  %v1024 = vmul.f32 %v992, 0.2
  %v1025 = vmul.f32 %v993, 0.2
  %v1026 = vmul.f32 %v994, 0.2
  %v1027 = vmul.f32 %v995, 0.2
  %v1028 = vmul.f32 %v996, 0.2
  %v1029 = vmul.f32 %v997, 0.2
  %v1030 = vmul.f32 %v998, 0.2
  %v1031 = vsel %vm999, %v983, %v1015
  %v1032 = vsel %vm1000, %v984, %v1016
  %v1033 = vsel %vm1001, %v985, %v1017
  %v1034 = vsel %vm1002, %v986, %v1018
  %v1035 = vsel %vm1003, %v987, %v1019
  %v1036 = vsel %vm1004, %v988, %v1020
  %v1037 = vsel %vm1005, %v989, %v1021
  %v1038 = vsel %vm1006, %v990, %v1022
  %v1039 = vsel %vm1007, %v991, %v1023
  %v1040 = vsel %vm1008, %v992, %v1024
  %v1041 = vsel %vm1009, %v993, %v1025
  %v1042 = vsel %vm1010, %v994, %v1026
  %v1043 = vsel %vm1011, %v995, %v1027
  %v1044 = vsel %vm1012, %v996, %v1028
  %v1045 = vsel %vm1013, %v997, %v1029
  %v1046 = vsel %vm1014, %v998, %v1030
  %v1047 = vpack.c.bf16 %v1032, %v1031
  %v1048 = vpack.c.bf16 %v1034, %v1033
  %v1049 = vpack.c.bf16 %v1036, %v1035
  %v1050 = vpack.c.bf16 %v1038, %v1037
  %v1051 = vpack.c.bf16 %v1040, %v1039
  %v1052 = vpack.c.bf16 %v1042, %v1041
  %v1053 = vpack.c.bf16 %v1044, %v1043
  %v1054 = vpack.c.bf16 %v1046, %v1045
  %v1063 = vunpack.c.l.b16 %v1047
  %v1064 = vunpack.c.h.b16 %v1047
  %v1065 = vunpack.c.l.b16 %v1048
  %v1066 = vunpack.c.h.b16 %v1048
  %v1067 = vunpack.c.l.b16 %v1049
  %v1068 = vunpack.c.h.b16 %v1049
  %v1069 = vunpack.c.l.b16 %v1050
  %v1070 = vunpack.c.h.b16 %v1050
  %v1071 = vunpack.c.l.b16 %v1051
  %v1072 = vunpack.c.h.b16 %v1051
  %v1073 = vunpack.c.l.b16 %v1052
  %v1074 = vunpack.c.h.b16 %v1052
  %v1075 = vunpack.c.l.b16 %v1053
  %v1076 = vunpack.c.h.b16 %v1053
  %v1077 = vunpack.c.l.b16 %v1054
  %v1078 = vunpack.c.h.b16 %v1054
  %v1079 = vpack.c.b16 %v1063, %v1063
  %v1080 = vpack.c.b16 %v1064, %v1064
  %v1081 = vpack.c.b16 %v1065, %v1065
  %v1082 = vpack.c.b16 %v1066, %v1066
  %v1083 = vpack.c.b16 %v1067, %v1067
  %v1084 = vpack.c.b16 %v1068, %v1068
  %v1085 = vpack.c.b16 %v1069, %v1069
  %v1086 = vpack.c.b16 %v1070, %v1070
  %v1087 = vpack.c.b16 %v1071, %v1071
  %v1088 = vpack.c.b16 %v1072, %v1072
  %v1089 = vpack.c.b16 %v1073, %v1073
  %v1090 = vpack.c.b16 %v1074, %v1074
  %v1091 = vpack.c.b16 %v1075, %v1075
  %v1092 = vpack.c.b16 %v1076, %v1076
  %v1093 = vpack.c.b16 %v1077, %v1077
  %v1094 = vpack.c.b16 %v1078, %v1078
  %vm1111 = vcmask 257024
  %1112 = vst.msk [vmem:[%s5] sm:$0xf] %vm1111, %v1079
  %1113 = vst.msk [vmem:[%s5 + $0x4] sm:$0xf] %vm1111, %v1080
  %1114 = vst.msk [vmem:[%s5 + $0x8] sm:$0xf] %vm1111, %v1081
  %1115 = vst.msk [vmem:[%s5 + $0xc] sm:$0xf] %vm1111, %v1082
  %1116 = vst.msk [vmem:[%s5 + $0x10] sm:$0xf] %vm1111, %v1083
  %1117 = vst.msk [vmem:[%s5 + $0x14] sm:$0xf] %vm1111, %v1084
  %1118 = vst.msk [vmem:[%s5 + $0x18] sm:$0xf] %vm1111, %v1085
  %1119 = vst.msk [vmem:[%s5 + $0x1c] sm:$0xf] %vm1111, %v1086
  %1120 = vst.msk [vmem:[%s5 + $0x20] sm:$0xf] %vm1111, %v1087
  %1121 = vst.msk [vmem:[%s5 + $0x24] sm:$0xf] %vm1111, %v1088
  %1122 = vst.msk [vmem:[%s5 + $0x28] sm:$0xf] %vm1111, %v1089
  %1123 = vst.msk [vmem:[%s5 + $0x2c] sm:$0xf] %vm1111, %v1090
  %1124 = vst.msk [vmem:[%s5 + $0x30] sm:$0xf] %vm1111, %v1091
  %1125 = vst.msk [vmem:[%s5 + $0x34] sm:$0xf] %vm1111, %v1092
  %1126 = vst.msk [vmem:[%s5 + $0x38] sm:$0xf] %vm1111, %v1093
  %1127 = vst.msk [vmem:[%s5 + $0x3c] sm:$0xf] %vm1111, %v1094
  // Predicated region
  $region22: #{discriminator_forward.4} parent=0 // pred_check
    _
  $region23: #{discriminator_forward.4} parent=0 // pred_check_branch
    %1129 = sbr.rel (0) target = $region25
  $region24: #{discriminator_forward.4} parent=0 // pred_region
    _
  $region25: #{discriminator_forward.4} parent=0 // pred_fallthru
    _
  // Predicated region
  $region26: #{discriminator_forward.4} parent=0 // pred_check
    _
  $region27: #{discriminator_forward.4} parent=0 // pred_check_branch
    %1131 = sbr.rel (0) target = $region29
  $region28: #{discriminator_forward.4} parent=0 // pred_region
    _
  $region29: #{discriminator_forward.4} parent=0 // pred_fallthru
    _

// kernel: discriminator_forward.5
$region0: #{discriminator_forward.5}
  #allocation0 [shape = 'u32[]', space=smem, size = 0x4, offset = 0x4, fixed_abs, tag = 'smem constant byte address 0x4 - core index']
  #allocation1 [shape = 'u32[144,128]{1,0:T(1,128)}', space=vmem, size = 0x12000, scoped, tag = 'internal scratch']
  %s0 = inlined_call_operand.vmem [shape: bf16[40,128], index: 0, kind: input, shape index: {}]
  %s1 = inlined_call_operand.vmem [shape: bf16[40,128], index: 1, kind: input, shape index: {}]
  %s2 = inlined_call_operand.vmem [shape: bf16[4,128,64], index: 2, kind: input, shape index: {}]
  %s3 = inlined_call_operand.vmem [shape: f32[1,64], index: 3, kind: input, shape index: {}]
  %s4 = inlined_call_operand.vmem [shape: f32[1,64], index: 4, kind: input, shape index: {}]
  %s5 = inlined_call_operand.vmem [shape: f32[16,64], index: 5, kind: input, shape index: {}]
  %s6 = inlined_call_operand.vmem [shape: f32[2,1], index: 6, kind: output, shape index: {}]
  %s7 = sld [smem:[#allocation0]]
  $region34: #{discriminator_forward.5} parent=0
    _
  %s9 = ssub.s32 1, %s7
  %s10 = scalar_select 0, %s9, %s7
  // Predicated region
  $region2: #{discriminator_forward.5} parent=0 // pred_check
    _
  $region3: #{discriminator_forward.5} parent=0 // pred_check_branch
    %12 = sbr.rel (0) target = $region5
  $region4: #{discriminator_forward.5} parent=0 // pred_region
    _
  $region5: #{discriminator_forward.5} parent=0 // pred_fallthru
    _
  // Predicated region
  $region6: #{discriminator_forward.5} parent=0 // pred_check
    _
  $region7: #{discriminator_forward.5} parent=0 // pred_check_branch
    %14 = sbr.rel (0) target = $region9
  $region8: #{discriminator_forward.5} parent=0 // pred_region
    _
  $region9: #{discriminator_forward.5} parent=0 // pred_fallthru
    _
  // Predicated region
  $region10: #{discriminator_forward.5} parent=0 // pred_check
    _
  $region11: #{discriminator_forward.5} parent=0 // pred_check_branch
    %16 = sbr.rel (0) target = $region13
  $region12: #{discriminator_forward.5} parent=0 // pred_region
    _
  $region13: #{discriminator_forward.5} parent=0 // pred_fallthru
    _
  // Predicated region
  $region14: #{discriminator_forward.5} parent=0 // pred_check
    _
  $region15: #{discriminator_forward.5} parent=0 // pred_check_branch
    %18 = sbr.rel (0) target = $region17
  $region16: #{discriminator_forward.5} parent=0 // pred_region
    _
  $region17: #{discriminator_forward.5} parent=0 // pred_fallthru
    _
  // Predicated region
  $region18: #{discriminator_forward.5} parent=0 // pred_check
    _
  $region19: #{discriminator_forward.5} parent=0 // pred_check_branch
    %20 = sbr.rel (0) target = $region21
  $region20: #{discriminator_forward.5} parent=0 // pred_region
    _
  $region21: #{discriminator_forward.5} parent=0 // pred_fallthru
    _
  // Predicated region
  $region22: #{discriminator_forward.5} parent=0 // pred_check
    _
  $region23: #{discriminator_forward.5} parent=0 // pred_check_branch
    %22 = sbr.rel (0) target = $region25
  $region24: #{discriminator_forward.5} parent=0 // pred_region
    _
  $region25: #{discriminator_forward.5} parent=0 // pred_fallthru
    _
  %v24 = vld [vmem:[%s0] sm:$0xf]
  %v25 = vld [vmem:[%s0 + $0x4] sm:$0xf]
  %v26 = vld [vmem:[%s0 + $0x8] sm:$0xf]
  %v27 = vld [vmem:[%s0 + $0xc] sm:$0xf]
  %v28 = vld [vmem:[%s2] sm:$0xf]
  %v29 = vld [vmem:[%s2 + $0x4] sm:$0xf]
  %v30 = vld [vmem:[%s2 + $0x8] sm:$0xf]
  %v31 = vld [vmem:[%s2 + $0xc] sm:$0xf]
  %v32 = vld [vmem:[%s2 + $0x10] sm:$0xf]
  %v33 = vld [vmem:[%s2 + $0x14] sm:$0xf]
  %v34 = vld [vmem:[%s2 + $0x18] sm:$0xf]
  %v35 = vld [vmem:[%s2 + $0x1c] sm:$0xf]
  %v36 = vld [vmem:[%s2 + $0x20] sm:$0xf]
  %v37 = vld [vmem:[%s2 + $0x24] sm:$0xf]
  %v38 = vld [vmem:[%s2 + $0x28] sm:$0xf]
  %v39 = vld [vmem:[%s2 + $0x2c] sm:$0xf]
  %v40 = vld [vmem:[%s2 + $0x30] sm:$0xf]
  %v41 = vld [vmem:[%s2 + $0x34] sm:$0xf]
  %v42 = vld [vmem:[%s2 + $0x38] sm:$0xf]
  %v43 = vld [vmem:[%s2 + $0x3c] sm:$0xf]
  %v44 = vld [vmem:[%s0 + $0x4] sm:$0xf]
  %v45 = vld [vmem:[%s0 + $0x8] sm:$0xf]
  %v46 = vld [vmem:[%s0 + $0xc] sm:$0xf]
  %v47 = vld [vmem:[%s0 + $0x10] sm:$0xf]
  %s48 = scalar_lea.vmem %s2, 64
  %v49 = vld [vmem:[%s48] sm:$0xf]
  %v50 = vld [vmem:[%s48 + $0x4] sm:$0xf]
  %v51 = vld [vmem:[%s48 + $0x8] sm:$0xf]
  %v52 = vld [vmem:[%s48 + $0xc] sm:$0xf]
  %v53 = vld [vmem:[%s48 + $0x10] sm:$0xf]
  %v54 = vld [vmem:[%s48 + $0x14] sm:$0xf]
  %v55 = vld [vmem:[%s48 + $0x18] sm:$0xf]
  %v56 = vld [vmem:[%s48 + $0x1c] sm:$0xf]
  %v57 = vld [vmem:[%s48 + $0x20] sm:$0xf]
  %v58 = vld [vmem:[%s48 + $0x24] sm:$0xf]
  %v59 = vld [vmem:[%s48 + $0x28] sm:$0xf]
  %v60 = vld [vmem:[%s48 + $0x2c] sm:$0xf]
  %v61 = vld [vmem:[%s48 + $0x30] sm:$0xf]
  %v62 = vld [vmem:[%s48 + $0x34] sm:$0xf]
  %v63 = vld [vmem:[%s48 + $0x38] sm:$0xf]
  %v64 = vld [vmem:[%s48 + $0x3c] sm:$0xf]
  %v69 = vunpack.c.l.b16 %v44
  %v70 = vunpack.c.l.b16 %v45
  %v71 = vunpack.c.l.b16 %v46
  %v72 = vunpack.c.l.b16 %v47
  %v73 = vpack.c.b16 %v70, %v69
  %v74 = vpack.c.b16 %v72, %v71
  %v93 = vunpack.c.l.b16 %v49
  %v94 = vunpack.c.l.b16 %v50
  %v95 = vunpack.c.l.b16 %v51
  %v96 = vunpack.c.l.b16 %v52
  %v97 = vunpack.c.l.b16 %v53
  %v98 = vunpack.c.l.b16 %v54
  %v99 = vunpack.c.l.b16 %v55
  %v100 = vunpack.c.l.b16 %v56
  %v101 = vunpack.c.l.b16 %v57
  %v102 = vunpack.c.l.b16 %v58
  %v103 = vunpack.c.l.b16 %v59
  %v104 = vunpack.c.l.b16 %v60
  %v105 = vunpack.c.l.b16 %v61
  %v106 = vunpack.c.l.b16 %v62
  %v107 = vunpack.c.l.b16 %v63
  %v108 = vunpack.c.l.b16 %v64
  %v109 = vpack.c.b16 %v94, %v93
  %v110 = vpack.c.b16 %v96, %v95
  %v111 = vpack.c.b16 %v98, %v97
  %v112 = vpack.c.b16 %v100, %v99
  %v113 = vpack.c.b16 %v102, %v101
  %v114 = vpack.c.b16 %v104, %v103
  %v115 = vpack.c.b16 %v106, %v105
  %v116 = vpack.c.b16 %v108, %v107
  %125 = vmatprep.subr.bf16.mxu0 0
  %126 = vmatpush1.bf16.msra.mxu0 %v109
  %127 = vmatprep.subr.bf16.mxu0 0
  %128 = vmatpush1.bf16.msra.mxu0 %v110
  %129 = vmatprep.subr.bf16.mxu0 0
  %130 = vmatpush1.bf16.msra.mxu0 %v111
  %131 = vmatprep.subr.bf16.mxu0 0
  %132 = vmatpush1.bf16.msra.mxu0 %v112
  %133 = vmatprep.subr.bf16.mxu0 0
  %134 = vmatpush1.bf16.msra.mxu0 %v113
  %135 = vmatprep.subr.bf16.mxu0 0
  %136 = vmatpush1.bf16.msra.mxu0 %v114
  %137 = vmatprep.subr.bf16.mxu0 0
  %138 = vmatpush1.bf16.msra.mxu0 %v115
  %139 = vmatprep.subr.bf16.mxu0 0
  %140 = vmatpush1.bf16.msra.mxu0 %v116
  %141 = vmatprep.subr.bf16.mxu0 0
  %142 = vmatpush1.bf16.msra.mxu0 0
  %143 = vmatprep.subr.bf16.mxu0 0
  %144 = vmatpush1.bf16.msra.mxu0 0
  %145 = vmatprep.subr.bf16.mxu0 0
  %146 = vmatpush1.bf16.msra.mxu0 0
  %147 = vmatprep.subr.bf16.mxu0 0
  %148 = vmatpush1.bf16.msra.mxu0 0
  %149 = vmatprep.subr.bf16.mxu0 0
  %150 = vmatpush1.bf16.msra.mxu0 0
  %151 = vmatprep.subr.bf16.mxu0 0
  %152 = vmatpush1.bf16.msra.mxu0 0
  %153 = vmatprep.subr.bf16.mxu0 0
  %154 = vmatpush1.bf16.msra.mxu0 0
  %155 = vmatprep.subr.bf16.mxu0 0
  %156 = vmatpush1.bf16.msra.mxu0 0
  %157 = vmatprep.mubr.bf16.mxu0 0
  %158 = vmatmul.mubr.bf16.gmra.mrb[0].mxu0 %v73
  %v159 = vpop.f32.mrb[0].mxu0
  %v160 = vadd.f32 0.0, %v159
  %v161 = vpop.f32.mrb[0].mxu0
  %v162 = vpop.f32.mrb[0].mxu0
  %v163 = vadd.f32 0.0, %v162
  %v164 = vpop.f32.mrb[0].mxu0
  %165 = vmatprep.mubr.bf16.mxu0 0
  %166 = vmatmul.mubr.bf16.gmra.mrb[0].mxu0 %v74
  %v167 = vpop.f32.mrb[0].mxu0
  %v168 = vadd.f32 0.0, %v167
  %v169 = vpop.f32.mrb[0].mxu0
  %v170 = vpop.f32.mrb[0].mxu0
  %v171 = vadd.f32 0.0, %v170
  %v172 = vpop.f32.mrb[0].mxu0
  %173 = vdwg.mxu0
  %v178 = vunpack.c.l.b16 %v24
  %v179 = vunpack.c.l.b16 %v25
  %v180 = vunpack.c.l.b16 %v26
  %v181 = vunpack.c.l.b16 %v27
  %v182 = vpack.c.b16 %v179, %v178
  %v183 = vpack.c.b16 %v181, %v180
  %v202 = vunpack.c.l.b16 %v28
  %v203 = vunpack.c.l.b16 %v29
  %v204 = vunpack.c.l.b16 %v30
  %v205 = vunpack.c.l.b16 %v31
  %v206 = vunpack.c.l.b16 %v32
  %v207 = vunpack.c.l.b16 %v33
  %v208 = vunpack.c.l.b16 %v34
  %v209 = vunpack.c.l.b16 %v35
  %v210 = vunpack.c.l.b16 %v36
  %v211 = vunpack.c.l.b16 %v37
  %v212 = vunpack.c.l.b16 %v38
  %v213 = vunpack.c.l.b16 %v39
  %v214 = vunpack.c.l.b16 %v40
  %v215 = vunpack.c.l.b16 %v41
  %v216 = vunpack.c.l.b16 %v42
  %v217 = vunpack.c.l.b16 %v43
  %v218 = vpack.c.b16 %v203, %v202
  %v219 = vpack.c.b16 %v205, %v204
  %v220 = vpack.c.b16 %v207, %v206
  %v221 = vpack.c.b16 %v209, %v208
  %v222 = vpack.c.b16 %v211, %v210
  %v223 = vpack.c.b16 %v213, %v212
  %v224 = vpack.c.b16 %v215, %v214
  %v225 = vpack.c.b16 %v217, %v216
  %234 = vmatprep.subr.bf16.mxu0 0
  %235 = vmatpush1.bf16.msra.mxu0 %v218
  %236 = vmatprep.subr.bf16.mxu0 0
  %237 = vmatpush1.bf16.msra.mxu0 %v219
  %238 = vmatprep.subr.bf16.mxu0 0
  %239 = vmatpush1.bf16.msra.mxu0 %v220
  %240 = vmatprep.subr.bf16.mxu0 0
  %241 = vmatpush1.bf16.msra.mxu0 %v221
  %242 = vmatprep.subr.bf16.mxu0 0
  %243 = vmatpush1.bf16.msra.mxu0 %v222
  %244 = vmatprep.subr.bf16.mxu0 0
  %245 = vmatpush1.bf16.msra.mxu0 %v223
  %246 = vmatprep.subr.bf16.mxu0 0
  %247 = vmatpush1.bf16.msra.mxu0 %v224
  %248 = vmatprep.subr.bf16.mxu0 0
  %249 = vmatpush1.bf16.msra.mxu0 %v225
  %250 = vmatprep.subr.bf16.mxu0 0
  %251 = vmatpush1.bf16.msra.mxu0 0
  %252 = vmatprep.subr.bf16.mxu0 0
  %253 = vmatpush1.bf16.msra.mxu0 0
  %254 = vmatprep.subr.bf16.mxu0 0
  %255 = vmatpush1.bf16.msra.mxu0 0
  %256 = vmatprep.subr.bf16.mxu0 0
  %257 = vmatpush1.bf16.msra.mxu0 0
  %258 = vmatprep.subr.bf16.mxu0 0
  %259 = vmatpush1.bf16.msra.mxu0 0
  %260 = vmatprep.subr.bf16.mxu0 0
  %261 = vmatpush1.bf16.msra.mxu0 0
  %262 = vmatprep.subr.bf16.mxu0 0
  %263 = vmatpush1.bf16.msra.mxu0 0
  %264 = vmatprep.subr.bf16.mxu0 0
  %265 = vmatpush1.bf16.msra.mxu0 0
  %266 = vmatprep.mubr.bf16.mxu0 0
  %267 = vmatmul.mubr.bf16.gmra.mrb[0].mxu0 %v182
  %v268 = vpop.f32.mrb[0].mxu0
  %v269 = vadd.f32 %v160, %v268
  %v270 = vpop.f32.mrb[0].mxu0
  %v271 = vpop.f32.mrb[0].mxu0
  %v272 = vadd.f32 %v163, %v271
  %v273 = vpop.f32.mrb[0].mxu0
  %274 = vmatprep.mubr.bf16.mxu0 0
  %275 = vmatmul.mubr.bf16.gmra.mrb[0].mxu0 %v183
  %v276 = vpop.f32.mrb[0].mxu0
  %v277 = vadd.f32 %v168, %v276
  %v278 = vpop.f32.mrb[0].mxu0
  %v279 = vpop.f32.mrb[0].mxu0
  %v280 = vadd.f32 %v171, %v279
  %v281 = vpop.f32.mrb[0].mxu0
  %282 = vdwg.mxu0
  %v283 = vld [vmem:[%s1] sm:$0xf]
  %v284 = vld [vmem:[%s1 + $0x4] sm:$0xf]
  %v285 = vld [vmem:[%s1 + $0x8] sm:$0xf]
  %v286 = vld [vmem:[%s1 + $0xc] sm:$0xf]
  %s287 = scalar_lea.vmem %s2, 128
  %v288 = vld [vmem:[%s287] sm:$0xf]
  %v289 = vld [vmem:[%s287 + $0x4] sm:$0xf]
  %v290 = vld [vmem:[%s287 + $0x8] sm:$0xf]
  %v291 = vld [vmem:[%s287 + $0xc] sm:$0xf]
  %v292 = vld [vmem:[%s287 + $0x10] sm:$0xf]
  %v293 = vld [vmem:[%s287 + $0x14] sm:$0xf]
  %v294 = vld [vmem:[%s287 + $0x18] sm:$0xf]
  %v295 = vld [vmem:[%s287 + $0x1c] sm:$0xf]
  %v296 = vld [vmem:[%s287 + $0x20] sm:$0xf]
  %v297 = vld [vmem:[%s287 + $0x24] sm:$0xf]
  %v298 = vld [vmem:[%s287 + $0x28] sm:$0xf]
  %v299 = vld [vmem:[%s287 + $0x2c] sm:$0xf]
  %v300 = vld [vmem:[%s287 + $0x30] sm:$0xf]
  %v301 = vld [vmem:[%s287 + $0x34] sm:$0xf]
  %v302 = vld [vmem:[%s287 + $0x38] sm:$0xf]
  %v303 = vld [vmem:[%s287 + $0x3c] sm:$0xf]
  %v308 = vunpack.c.l.b16 %v283
  %v309 = vunpack.c.l.b16 %v284
  %v310 = vunpack.c.l.b16 %v285
  %v311 = vunpack.c.l.b16 %v286
  %v312 = vpack.c.b16 %v309, %v308
  %v313 = vpack.c.b16 %v311, %v310
  %v332 = vunpack.c.l.b16 %v288
  %v333 = vunpack.c.l.b16 %v289
  %v334 = vunpack.c.l.b16 %v290
  %v335 = vunpack.c.l.b16 %v291
  %v336 = vunpack.c.l.b16 %v292
  %v337 = vunpack.c.l.b16 %v293
  %v338 = vunpack.c.l.b16 %v294
  %v339 = vunpack.c.l.b16 %v295
  %v340 = vunpack.c.l.b16 %v296
  %v341 = vunpack.c.l.b16 %v297
  %v342 = vunpack.c.l.b16 %v298
  %v343 = vunpack.c.l.b16 %v299
  %v344 = vunpack.c.l.b16 %v300
  %v345 = vunpack.c.l.b16 %v301
  %v346 = vunpack.c.l.b16 %v302
  %v347 = vunpack.c.l.b16 %v303
  %v348 = vpack.c.b16 %v333, %v332
  %v349 = vpack.c.b16 %v335, %v334
  %v350 = vpack.c.b16 %v337, %v336
  %v351 = vpack.c.b16 %v339, %v338
  %v352 = vpack.c.b16 %v341, %v340
  %v353 = vpack.c.b16 %v343, %v342
  %v354 = vpack.c.b16 %v345, %v344
  %v355 = vpack.c.b16 %v347, %v346
  %364 = vmatprep.subr.bf16.mxu0 0
  %365 = vmatpush1.bf16.msra.mxu0 %v348
  %366 = vmatprep.subr.bf16.mxu0 0
  %367 = vmatpush1.bf16.msra.mxu0 %v349
  %368 = vmatprep.subr.bf16.mxu0 0
  %369 = vmatpush1.bf16.msra.mxu0 %v350
  %370 = vmatprep.subr.bf16.mxu0 0
  %371 = vmatpush1.bf16.msra.mxu0 %v351
  %372 = vmatprep.subr.bf16.mxu0 0
  %373 = vmatpush1.bf16.msra.mxu0 %v352
  %374 = vmatprep.subr.bf16.mxu0 0
  %375 = vmatpush1.bf16.msra.mxu0 %v353
  %376 = vmatprep.subr.bf16.mxu0 0
  %377 = vmatpush1.bf16.msra.mxu0 %v354
  %378 = vmatprep.subr.bf16.mxu0 0
  %379 = vmatpush1.bf16.msra.mxu0 %v355
  %380 = vmatprep.subr.bf16.mxu0 0
  %381 = vmatpush1.bf16.msra.mxu0 0
  %382 = vmatprep.subr.bf16.mxu0 0
  %383 = vmatpush1.bf16.msra.mxu0 0
  %384 = vmatprep.subr.bf16.mxu0 0
  %385 = vmatpush1.bf16.msra.mxu0 0
  %386 = vmatprep.subr.bf16.mxu0 0
  %387 = vmatpush1.bf16.msra.mxu0 0
  %388 = vmatprep.subr.bf16.mxu0 0
  %389 = vmatpush1.bf16.msra.mxu0 0
  %390 = vmatprep.subr.bf16.mxu0 0
  %391 = vmatpush1.bf16.msra.mxu0 0
  %392 = vmatprep.subr.bf16.mxu0 0
  %393 = vmatpush1.bf16.msra.mxu0 0
  %394 = vmatprep.subr.bf16.mxu0 0
  %395 = vmatpush1.bf16.msra.mxu0 0
  %396 = vmatprep.mubr.bf16.mxu0 0
  %397 = vmatmul.mubr.bf16.gmra.mrb[0].mxu0 %v312
  %v398 = vpop.f32.mrb[0].mxu0
  %v399 = vadd.f32 0.0, %v398
  %v400 = vpop.f32.mrb[0].mxu0
  %v401 = vpop.f32.mrb[0].mxu0
  %v402 = vadd.f32 0.0, %v401
  %v403 = vpop.f32.mrb[0].mxu0
  %404 = vmatprep.mubr.bf16.mxu0 0
  %405 = vmatmul.mubr.bf16.gmra.mrb[0].mxu0 %v313
  %v406 = vpop.f32.mrb[0].mxu0
  %v407 = vadd.f32 0.0, %v406
  %v408 = vpop.f32.mrb[0].mxu0
  %v409 = vpop.f32.mrb[0].mxu0
  %v410 = vadd.f32 0.0, %v409
  %v411 = vpop.f32.mrb[0].mxu0
  %412 = vdwg.mxu0
  %v413 = vadd.f32 %v269, %v399
  %v414 = vadd.f32 %v272, %v402
  %v415 = vadd.f32 %v277, %v407
  %v416 = vadd.f32 %v280, %v410
  %v417 = vld [vmem:[%s1 + $0x4] sm:$0xf]
  %v418 = vld [vmem:[%s1 + $0x8] sm:$0xf]
  %v419 = vld [vmem:[%s1 + $0xc] sm:$0xf]
  %v420 = vld [vmem:[%s1 + $0x10] sm:$0xf]
  %s421 = scalar_lea.vmem %s2, 192
  %v422 = vld [vmem:[%s421] sm:$0xf]
  %v423 = vld [vmem:[%s421 + $0x4] sm:$0xf]
  %v424 = vld [vmem:[%s421 + $0x8] sm:$0xf]
  %v425 = vld [vmem:[%s421 + $0xc] sm:$0xf]
  %v426 = vld [vmem:[%s421 + $0x10] sm:$0xf]
  %v427 = vld [vmem:[%s421 + $0x14] sm:$0xf]
  %v428 = vld [vmem:[%s421 + $0x18] sm:$0xf]
  %v429 = vld [vmem:[%s421 + $0x1c] sm:$0xf]
  %v430 = vld [vmem:[%s421 + $0x20] sm:$0xf]
  %v431 = vld [vmem:[%s421 + $0x24] sm:$0xf]
  %v432 = vld [vmem:[%s421 + $0x28] sm:$0xf]
  %v433 = vld [vmem:[%s421 + $0x2c] sm:$0xf]
  %v434 = vld [vmem:[%s421 + $0x30] sm:$0xf]
  %v435 = vld [vmem:[%s421 + $0x34] sm:$0xf]
  %v436 = vld [vmem:[%s421 + $0x38] sm:$0xf]
  %v437 = vld [vmem:[%s421 + $0x3c] sm:$0xf]
  %v442 = vunpack.c.l.b16 %v417
  %v443 = vunpack.c.l.b16 %v418
  %v444 = vunpack.c.l.b16 %v419
  %v445 = vunpack.c.l.b16 %v420
  %v446 = vpack.c.b16 %v443, %v442
  %v447 = vpack.c.b16 %v445, %v444
  %v466 = vunpack.c.l.b16 %v422
  %v467 = vunpack.c.l.b16 %v423
  %v468 = vunpack.c.l.b16 %v424
  %v469 = vunpack.c.l.b16 %v425
  %v470 = vunpack.c.l.b16 %v426
  %v471 = vunpack.c.l.b16 %v427
  %v472 = vunpack.c.l.b16 %v428
  %v473 = vunpack.c.l.b16 %v429
  %v474 = vunpack.c.l.b16 %v430
  %v475 = vunpack.c.l.b16 %v431
  %v476 = vunpack.c.l.b16 %v432
  %v477 = vunpack.c.l.b16 %v433
  %v478 = vunpack.c.l.b16 %v434
  %v479 = vunpack.c.l.b16 %v435
  %v480 = vunpack.c.l.b16 %v436
  %v481 = vunpack.c.l.b16 %v437
  %v482 = vpack.c.b16 %v467, %v466
  %v483 = vpack.c.b16 %v469, %v468
  %v484 = vpack.c.b16 %v471, %v470
  %v485 = vpack.c.b16 %v473, %v472
  %v486 = vpack.c.b16 %v475, %v474
  %v487 = vpack.c.b16 %v477, %v476
  %v488 = vpack.c.b16 %v479, %v478
  %v489 = vpack.c.b16 %v481, %v480
  %498 = vmatprep.subr.bf16.mxu0 0
  %499 = vmatpush1.bf16.msra.mxu0 %v482
  %500 = vmatprep.subr.bf16.mxu0 0
  %501 = vmatpush1.bf16.msra.mxu0 %v483
  %502 = vmatprep.subr.bf16.mxu0 0
  %503 = vmatpush1.bf16.msra.mxu0 %v484
  %504 = vmatprep.subr.bf16.mxu0 0
  %505 = vmatpush1.bf16.msra.mxu0 %v485
  %506 = vmatprep.subr.bf16.mxu0 0
  %507 = vmatpush1.bf16.msra.mxu0 %v486
  %508 = vmatprep.subr.bf16.mxu0 0
  %509 = vmatpush1.bf16.msra.mxu0 %v487
  %510 = vmatprep.subr.bf16.mxu0 0
  %511 = vmatpush1.bf16.msra.mxu0 %v488
  %512 = vmatprep.subr.bf16.mxu0 0
  %513 = vmatpush1.bf16.msra.mxu0 %v489
  %514 = vmatprep.subr.bf16.mxu0 0
  %515 = vmatpush1.bf16.msra.mxu0 0
  %516 = vmatprep.subr.bf16.mxu0 0
  %517 = vmatpush1.bf16.msra.mxu0 0
  %518 = vmatprep.subr.bf16.mxu0 0
  %519 = vmatpush1.bf16.msra.mxu0 0
  %520 = vmatprep.subr.bf16.mxu0 0
  %521 = vmatpush1.bf16.msra.mxu0 0
  %522 = vmatprep.subr.bf16.mxu0 0
  %523 = vmatpush1.bf16.msra.mxu0 0
  %524 = vmatprep.subr.bf16.mxu0 0
  %525 = vmatpush1.bf16.msra.mxu0 0
  %526 = vmatprep.subr.bf16.mxu0 0
  %527 = vmatpush1.bf16.msra.mxu0 0
  %528 = vmatprep.subr.bf16.mxu0 0
  %529 = vmatpush1.bf16.msra.mxu0 0
  %530 = vmatprep.mubr.bf16.mxu0 0
  %531 = vmatmul.mubr.bf16.gmra.mrb[0].mxu0 %v446
  %v532 = vpop.f32.mrb[0].mxu0
  %v533 = vadd.f32 0.0, %v532
  %v534 = vpop.f32.mrb[0].mxu0
  %v535 = vpop.f32.mrb[0].mxu0
  %v536 = vadd.f32 0.0, %v535
  %v537 = vpop.f32.mrb[0].mxu0
  %538 = vmatprep.mubr.bf16.mxu0 0
  %539 = vmatmul.mubr.bf16.gmra.mrb[0].mxu0 %v447
  %v540 = vpop.f32.mrb[0].mxu0
  %v541 = vadd.f32 0.0, %v540
  %v542 = vpop.f32.mrb[0].mxu0
  %v543 = vpop.f32.mrb[0].mxu0
  %v544 = vadd.f32 0.0, %v543
  %v545 = vpop.f32.mrb[0].mxu0
  %546 = vdwg.mxu0
  %v547 = vadd.f32 %v413, %v533
  %v548 = vadd.f32 %v414, %v536
  %v549 = vadd.f32 %v415, %v541
  %v550 = vadd.f32 %v416, %v544
  %v551 = vld [vmem:[%s3] sm:$0x1]
  %v552 = vld [vmem:[%s4] sm:$0x1]
  %vm553 = vcmask 523264
  %v554 = vsel %vm553, %v547, 0.0
  %v555 = vsel %vm553, %v548, 0.0
  %v556 = vadd.f32 %v554, %v555
  %v557 = vsel %vm553, %v549, 0.0
  %v558 = vadd.f32 %v556, %v557
  %v559 = vsel %vm553, %v550, 0.0
  %v560 = vadd.f32 %v558, %v559
  %v561 = vrot.slane %v560, 4
  %v562 = vadd.f32 %v560, %v561
  %v563 = vrot.slane %v562, 2
  %v564 = vadd.f32 %v562, %v563
  %v565 = vrot.slane %v564, 1
  %v566 = vadd.f32 %v564, %v565
  %v567 = vmul.f32 %v566, 0.03125
  %v568 = vmul.f32 %v547, %v547
  %v569 = vmul.f32 %v548, %v548
  %v570 = vmul.f32 %v549, %v549
  %v571 = vmul.f32 %v550, %v550
  %v572 = vsel %vm553, %v568, 0.0
  %v573 = vsel %vm553, %v569, 0.0
  %v574 = vadd.f32 %v572, %v573
  %v575 = vsel %vm553, %v570, 0.0
  %v576 = vadd.f32 %v574, %v575
  %v577 = vsel %vm553, %v571, 0.0
  %v578 = vadd.f32 %v576, %v577
  %v579 = vrot.slane %v578, 4
  %v580 = vadd.f32 %v578, %v579
  %v581 = vrot.slane %v580, 2
  %v582 = vadd.f32 %v580, %v581
  %v583 = vrot.slane %v582, 1
  %v584 = vadd.f32 %v582, %v583
  %v585 = vmul.f32 %v584, 0.03125
  %v586 = vmul.f32 %v567, %v567
  %v587 = vsub.f32 %v585, %v586
  %v588 = vmax.f32 %v587, 0.0
  %v589 = vsub.f32 %v547, %v567
  %v590 = vsub.f32 %v548, %v567
  %v591 = vsub.f32 %v549, %v567
  %v592 = vsub.f32 %v550, %v567
  %v593 = vadd.f32 %v588, 1e-05
  %v594 = vrsqrt.pop %v593
  %v595 = vmul.f32 %v589, %v594
  %v596 = vmul.f32 %v590, %v594
  %v597 = vmul.f32 %v591, %v594
  %v598 = vmul.f32 %v592, %v594
  %v600 = vlaneseq
  %v601 = vshrl.u32 %v600, 7
  %v602 = vsub.s32 0, %v601
  %v603 = vrot.slane %v551, %v602
  %v605 = vmul.f32 %v595, %v603
  %v606 = vmul.f32 %v596, %v603
  %v607 = vmul.f32 %v597, %v603
  %v608 = vmul.f32 %v598, %v603
  %v610 = vlaneseq
  %v611 = vshrl.u32 %v610, 7
  %v612 = vsub.s32 0, %v611
  %v613 = vrot.slane %v552, %v612
  %v615 = vadd.f32 %v605, %v613
  %v616 = vadd.f32 %v606, %v613
  %v617 = vadd.f32 %v607, %v613
  %v618 = vadd.f32 %v608, %v613
  %vm619 = vcmp.ge.f32.partialorder %v615, 0.0
  %vm620 = vcmp.ge.f32.partialorder %v616, 0.0
  %vm621 = vcmp.ge.f32.partialorder %v617, 0.0
  %vm622 = vcmp.ge.f32.partialorder %v618, 0.0
  %v623 = vmul.f32 %v615, 0.2
  %v624 = vmul.f32 %v616, 0.2
  %v625 = vmul.f32 %v617, 0.2
  %v626 = vmul.f32 %v618, 0.2
  %v627 = vsel %vm619, %v615, %v623
  %v628 = vsel %vm620, %v616, %v624
  %v629 = vsel %vm621, %v617, %v625
  %v630 = vsel %vm622, %v618, %v626
  %v631 = vld [vmem:[%s5] sm:$0xff]
  %v632 = vld [vmem:[%s5 + $0x8] sm:$0xff]
  %v633 = vlaneseq
  %v634 = vshrl.u32 %v633, 7
  %v635 = vsub.s32 0, %v634
  %v636 = vrot.slane %v631, %v635
  %v637 = vmul.f32 %v627, %v636
  %v638 = vadd.f32 %v637, 0.0
  %v639 = vlaneseq
  %v640 = vshrl.u32 %v639, 7
  %v641 = vsub.s32 1, %v640
  %v642 = vrot.slane %v631, %v641
  %v643 = vmul.f32 %v627, %v642
  %v645 = vrot.slane %v643, 2
  %v647 = vadd.f32 %v638, %v645
  %v648 = vlaneseq
  %v649 = vshrl.u32 %v648, 7
  %v650 = vsub.s32 2, %v649
  %v651 = vrot.slane %v631, %v650
  %v652 = vmul.f32 %v627, %v651
  %v654 = vrot.slane %v652, 4
  %v656 = vadd.f32 %v647, %v654
  %v657 = vlaneseq
  %v658 = vshrl.u32 %v657, 7
  %v659 = vsub.s32 3, %v658
  %v660 = vrot.slane %v631, %v659
  %v661 = vmul.f32 %v627, %v660
  %v663 = vrot.slane %v661, 6
  %v665 = vadd.f32 %v656, %v663
  %v666 = vlaneseq
  %v667 = vshrl.u32 %v666, 7
  %v668 = vsub.s32 4, %v667
  %v669 = vrot.slane %v631, %v668
  %v670 = vmul.f32 %v628, %v669
  %v671 = vadd.f32 %v665, %v670
  %v672 = vlaneseq
  %v673 = vshrl.u32 %v672, 7
  %v674 = vsub.s32 5, %v673
  %v675 = vrot.slane %v631, %v674
  %v676 = vmul.f32 %v628, %v675
  %v678 = vrot.slane %v676, 2
  %v680 = vadd.f32 %v671, %v678
  %v681 = vlaneseq
  %v682 = vshrl.u32 %v681, 7
  %v683 = vsub.s32 6, %v682
  %v684 = vrot.slane %v631, %v683
  %v685 = vmul.f32 %v628, %v684
  %v687 = vrot.slane %v685, 4
  %v689 = vadd.f32 %v680, %v687
  %v690 = vlaneseq
  %v691 = vshrl.u32 %v690, 7
  %v692 = vsub.s32 7, %v691
  %v693 = vrot.slane %v631, %v692
  %v694 = vmul.f32 %v628, %v693
  %v696 = vrot.slane %v694, 6
  %v698 = vadd.f32 %v689, %v696
  %v699 = vlaneseq
  %v700 = vshrl.u32 %v699, 7
  %v701 = vsub.s32 0, %v700
  %v702 = vrot.slane %v632, %v701
  %v703 = vmul.f32 %v629, %v702
  %v704 = vadd.f32 %v698, %v703
  %v705 = vlaneseq
  %v706 = vshrl.u32 %v705, 7
  %v707 = vsub.s32 1, %v706
  %v708 = vrot.slane %v632, %v707
  %v709 = vmul.f32 %v629, %v708
  %v711 = vrot.slane %v709, 2
  %v713 = vadd.f32 %v704, %v711
  %v714 = vlaneseq
  %v715 = vshrl.u32 %v714, 7
  %v716 = vsub.s32 2, %v715
  %v717 = vrot.slane %v632, %v716
  %v718 = vmul.f32 %v629, %v717
  %v720 = vrot.slane %v718, 4
  %v722 = vadd.f32 %v713, %v720
  %v723 = vlaneseq
  %v724 = vshrl.u32 %v723, 7
  %v725 = vsub.s32 3, %v724
  %v726 = vrot.slane %v632, %v725
  %v727 = vmul.f32 %v629, %v726
  %v729 = vrot.slane %v727, 6
  %v731 = vadd.f32 %v722, %v729
  %v732 = vlaneseq
  %v733 = vshrl.u32 %v732, 7
  %v734 = vsub.s32 4, %v733
  %v735 = vrot.slane %v632, %v734
  %v736 = vmul.f32 %v630, %v735
  %v737 = vadd.f32 %v731, %v736
  %v738 = vlaneseq
  %v739 = vshrl.u32 %v738, 7
  %v740 = vsub.s32 5, %v739
  %v741 = vrot.slane %v632, %v740
  %v742 = vmul.f32 %v630, %v741
  %v744 = vrot.slane %v742, 2
  %v746 = vadd.f32 %v737, %v744
  %v747 = vlaneseq
  %v748 = vshrl.u32 %v747, 7
  %v749 = vsub.s32 6, %v748
  %v750 = vrot.slane %v632, %v749
  %v751 = vmul.f32 %v630, %v750
  %v753 = vrot.slane %v751, 4
  %v755 = vadd.f32 %v746, %v753
  %v756 = vlaneseq
  %v757 = vshrl.u32 %v756, 7
  %v758 = vsub.s32 7, %v757
  %v759 = vrot.slane %v632, %v758
  %v760 = vmul.f32 %v630, %v759
  %v762 = vrot.slane %v760, 6
  %v764 = vadd.f32 %v755, %v762
  %vm765 = vcmask 517120
  %v766 = vsel %vm765, %v764, 0.0
  %767 = vadd.xlane.f32.xlu0 %v766
  %v768 = vpop.xlane.xlu0 %767
  %vm769 = vcmask 1024
  %770 = vst.msk [vmem:[%s6] sm:$0x3] %vm769, %v768
  // Predicated region
  $region26: #{discriminator_forward.5} parent=0 // pred_check
    _
  $region27: #{discriminator_forward.5} parent=0 // pred_check_branch
    %772 = sbr.rel (0) target = $region29
  $region28: #{discriminator_forward.5} parent=0 // pred_region
    _
  $region29: #{discriminator_forward.5} parent=0 // pred_fallthru
    _
  // Predicated region
  $region30: #{discriminator_forward.5} parent=0 // pred_check
    _
  $region31: #{discriminator_forward.5} parent=0 // pred_check_branch
    %774 = sbr.rel (0) target = $region33
  $region32: #{discriminator_forward.5} parent=0 // pred_region
    _
  $region33: #{discriminator_forward.5} parent=0 // pred_fallthru
    _

</llo_original>
